<compile_context>
chip_gen: v7x
topology: tpu7x:2x2x1
jax: 0.10.0
libtpu: 0.0.40
codegen_flags: <defaults>
</compile_context>

<pallas_src>
import math
import functools

import jax
import jax.numpy as jnp
from jax.experimental import pallas as pl
from jax.experimental.pallas import tpu as pltpu

LN_EPS = 1e-5            # nn.LayerNorm default
NEG_INF = -1e30          # finite "masked_fill(-inf)" replacement (NaN-safe)
_VMEM_LIMIT = 48 * 1024 * 1024

_MHA_KEYS = ("wq", "bq", "wk", "bk", "wv", "bv", "wo", "bo", "ln_g", "ln_b")
_FF_KEYS = ("w1", "b1", "w2", "b2", "ln_g", "ln_b")
_N_MHA = len(_MHA_KEYS)
_N_FF = len(_FF_KEYS)


def _compiler_params(n_grid_axes):
    cp_cls = getattr(pltpu, "CompilerParams", None) or getattr(pltpu, "TPUCompilerParams", None)
    if cp_cls is None:
        return None
    return cp_cls(dimension_semantics=("parallel",) * n_grid_axes,
                  vmem_limit_bytes=_VMEM_LIMIT)


# ----------------------------------------------------------------------------
# In-kernel helpers (all math on values, f32)
# ----------------------------------------------------------------------------
def _layernorm(x, gamma, beta):
    mean = jnp.mean(x, axis=-1, keepdims=True)
    var = jnp.mean(jnp.square(x - mean), axis=-1, keepdims=True)
    return (x - mean) * jax.lax.rsqrt(var + LN_EPS) * gamma + beta


def _softmax(s):
    m = jnp.max(s, axis=-1, keepdims=True)
    e = jnp.exp(s - m)
    denom = jnp.sum(e, axis=-1, keepdims=True)
    if hasattr(pl, "reciprocal"):
        return e * pl.reciprocal(denom, approx=True)
    return e / denom


def _attention(x_q, x_kv, refs, *, n_heads, d_head, scale, causal):
    """MHA sub-block: LayerNorm(x_q + Wo(softmax(Q K^T / sqrt(dh)) V)).

    x_q: (Sq, D), x_kv: (Skv, D) in storage dtype. Heads are batched via a
    leading head dim on the per-head weights; all dot_generals are canonical
    leading-batch batched matmuls.
    """
    (wq_r, bq_r, wk_r, bk_r, wv_r, bv_r, wo_r, bo_r, g_r, b_r) = refs
    cdt = x_q.dtype
    sq, d = x_q.shape
    skv = x_kv.shape[0]
    bdims = (((2,), (1,)), ((0,), (0,)))      # (b, m, k) x (b, k, n) -> (b, m, n)

    xq_b = jnp.broadcast_to(x_q, (n_heads, sq, d))
    xkv_b = jnp.broadcast_to(x_kv, (n_heads, skv, d))

    # Per-head projections (f32 accumulation).
    q = jax.lax.dot_general(xq_b, wq_r[...], bdims, preferred_element_type=jnp.float32)
    q = q + bq_r[...].astype(jnp.float32)                       # (H, Sq, dh)
    if scale:
        q = q * (1.0 / math.sqrt(d_head))                       # fold scale into Q
    k = jax.lax.dot_general(xkv_b, wk_r[...], bdims, preferred_element_type=jnp.float32)
    k = k + bk_r[...].astype(jnp.float32)                       # (H, Skv, dh)
    v = jax.lax.dot_general(xkv_b, wv_r[...], bdims, preferred_element_type=jnp.float32)
    v = v + bv_r[...].astype(jnp.float32)                       # (H, Skv, dh)

    # Scores: (H, Sq, Skv)  ==  einsum('hqd,hkd->hqk')
    s = jax.lax.dot_general(q.astype(cdt), k.astype(cdt),
                            (((2,), (2,)), ((0,), (0,))),
                            preferred_element_type=jnp.float32)
    if causal:
        row = jax.lax.broadcasted_iota(jnp.int32, (sq, skv), 0)
        col = jax.lax.broadcasted_iota(jnp.int32, (sq, skv), 1)
        s = jnp.where((col > row)[None, :, :], NEG_INF, s)       # get_output_mask
    p = _softmax(s)                                              # f32 softmax

    # Context: (H, Sq, dh)  ==  einsum('hqk,hkd->hqd')
    ctx = jax.lax.dot_general(p.astype(cdt), v.astype(cdt), bdims,
                              preferred_element_type=jnp.float32)

    # Output projection: sum_h ctx_h @ Wo_h  ==  concat(heads) @ Wo
    proj = jax.lax.dot_general(ctx.astype(cdt), wo_r[...], bdims,
                               preferred_element_type=jnp.float32)   # (H, Sq, D)
    proj = jnp.sum(proj, axis=0) + bo_r[...].astype(jnp.float32)     # (Sq, D)

    y = _layernorm(x_q.astype(jnp.float32) + proj,
                   g_r[...].astype(jnp.float32), b_r[...].astype(jnp.float32))
    return y.astype(cdt)


def _ffn(x, refs):
    """FFN sub-block: LayerNorm(x + W2 relu(W1 x + b1) + b2)."""
    w1_r, b1_r, w2_r, b2_r, g_r, b_r = refs
    cdt = x.dtype
    h = jnp.dot(x, w1_r[...], preferred_element_type=jnp.float32) + b1_r[...].astype(jnp.float32)
    h = jnp.maximum(h, 0.0).astype(cdt)
    y = jnp.dot(h, w2_r[...], preferred_element_type=jnp.float32) + b2_r[...].astype(jnp.float32)
    out = _layernorm(x.astype(jnp.float32) + y,
                     g_r[...].astype(jnp.float32), b_r[...].astype(jnp.float32))
    return out.astype(cdt)


# ----------------------------------------------------------------------------
# Fused layer kernels (one pallas_call per Encoder/Decoder block)
# ----------------------------------------------------------------------------
def encoder_layer_kernel(x_ref, *refs, n_heads, d_head, scale):
    mha = refs[:_N_MHA]
    ff = refs[_N_MHA:_N_MHA + _N_FF]
    o_ref = refs[-1]
    x = x_ref[0]                                   # (S, D)
    y = _attention(x, x, mha, n_heads=n_heads, d_head=d_head, scale=scale, causal=False)
    o_ref[0] = _ffn(y, ff).astype(o_ref.dtype)


def decoder_layer_kernel(x_ref, enc_ref, *refs, n_heads, d_head, scale):
    mha1 = refs[:_N_MHA]
    mha2 = refs[_N_MHA:2 * _N_MHA]
    ff = refs[2 * _N_MHA:2 * _N_MHA + _N_FF]
    o_ref = refs[-1]
    x = x_ref[0]                                   # (Sd, D) decoder stream
    enc = enc_ref[0]                               # (Se, D) encoder memory
    y = _attention(x, x, mha1, n_heads=n_heads, d_head=d_head, scale=scale, causal=True)
    y = _attention(y, enc, mha2, n_heads=n_heads, d_head=d_head, scale=scale, causal=False)
    o_ref[0] = _ffn(y, ff).astype(o_ref.dtype)


def output_proj_kernel(x_ref, w_ref, b_ref, o_ref):
    y = jnp.dot(x_ref[...], w_ref[...], preferred_element_type=jnp.float32)
    y = y + b_ref[...].astype(jnp.float32)
    o_ref[...] = y.astype(o_ref.dtype)


# ----------------------------------------------------------------------------
# pallas_call wrappers
# ----------------------------------------------------------------------------
def _resident_spec(arr):
    nd = arr.ndim
    return pl.BlockSpec(arr.shape, lambda b, _nd=nd: (0,) * _nd)


def encoder_layer(x, layer, *, n_heads, d_head, scale=True):
    bs, s, d = x.shape
    weights = [layer["mha"][k] for k in _MHA_KEYS] + [layer["ff"][k] for k in _FF_KEYS]
    kern = functools.partial(encoder_layer_kernel, n_heads=n_heads, d_head=d_head, scale=scale)
    return pl.pallas_call(
        kern,
        out_shape=jax.ShapeDtypeStruct((bs, s, d), x.dtype),
        grid=(bs,),
        in_specs=[pl.BlockSpec((1, s, d), lambda b: (b, 0, 0))]
                 + [_resident_spec(w) for w in weights],
        out_specs=pl.BlockSpec((1, s, d), lambda b: (b, 0, 0)),
        compiler_params=_compiler_params(1),
    )(x, *weights)


def decoder_layer(x, enc, layer, *, n_heads, d_head, scale=True):
    bs, sd, d = x.shape
    se = enc.shape[1]
    weights = ([layer["mha1"][k] for k in _MHA_KEYS]
               + [layer["mha2"][k] for k in _MHA_KEYS]
               + [layer["ff"][k] for k in _FF_KEYS])
    kern = functools.partial(decoder_layer_kernel, n_heads=n_heads, d_head=d_head, scale=scale)
    return pl.pallas_call(
        kern,
        out_shape=jax.ShapeDtypeStruct((bs, sd, d), x.dtype),
        grid=(bs,),
        in_specs=[pl.BlockSpec((1, sd, d), lambda b: (b, 0, 0)),
                  pl.BlockSpec((1, se, d), lambda b: (b, 0, 0))]
                 + [_resident_spec(w) for w in weights],
        out_specs=pl.BlockSpec((1, sd, d), lambda b: (b, 0, 0)),
        compiler_params=_compiler_params(1),
    )(x, enc, *weights)


def output_projection(x, w, b, *, tile_rows=256, tile_vocab=512):
    """Tied output head: (bs*S, D) @ (D, V) + b, tiled over rows and vocab."""
    bs, s, d = x.shape
    v = w.shape[1]
    rows = bs * s
    x2 = x.reshape(rows, d)
    tr = min(tile_rows, rows)
    if rows % tr:
        tr = rows
    tv = min(tile_vocab, v)
    if v % tv:
        tv = v
    out = pl.pallas_call(
        output_proj_kernel,
        out_shape=jax.ShapeDtypeStruct((rows, v), x.dtype),
        grid=(rows // tr, v // tv),
        in_specs=[pl.BlockSpec((tr, d), lambda i, j: (i, 0)),
                  pl.BlockSpec((d, tv), lambda i, j: (0, j)),
                  pl.BlockSpec((1, tv), lambda i, j: (0, j))],
        out_specs=pl.BlockSpec((tr, tv), lambda i, j: (i, j)),
        compiler_params=_compiler_params(2),
    )(x2, w, b)
    return out.reshape(bs, s, v)


# ----------------------------------------------------------------------------
# Plain-JAX glue: embedding lookup + sinusoidal positional encoding (tiny gather)
# ----------------------------------------------------------------------------
def positional_encoding(seq_len, d, dtype):
    pos = jnp.arange(seq_len, dtype=jnp.float32)
    freq = 1.0 / (10000.0 ** (jnp.arange(0.0, d, 2.0) / d))
    inp = pos[:, None] * freq[None, :]
    return jnp.concatenate([jnp.sin(inp), jnp.cos(inp)], axis=-1).astype(dtype)


def transformer_embedding(tokens, emb_table):
    # TODO(synk): the reference hard-codes emb_sz=300; parameterized by d_model here
    # (shapes only work when the embedding dim equals d_model).
    d = emb_table.shape[1]
    pe = positional_encoding(tokens.shape[1], d, emb_table.dtype)
    return emb_table[tokens] * jnp.asarray(math.sqrt(d), emb_table.dtype) + pe[None]


# ----------------------------------------------------------------------------
# Parameter construction (deterministic, synthetic, bf16 storage)
# ----------------------------------------------------------------------------
def _nrm(key, shape, dtype):
    return (jax.random.normal(key, shape, jnp.float32) * 0.02).astype(dtype)


def _mha_params(key, d_model, n_heads, d_head, dtype):
    ks = jax.random.split(key, 8)
    return dict(
        wq=_nrm(ks[0], (n_heads, d_model, d_head), dtype),
        bq=_nrm(ks[1], (n_heads, 1, d_head), dtype),
        wk=_nrm(ks[2], (n_heads, d_model, d_head), dtype),
        bk=_nrm(ks[3], (n_heads, 1, d_head), dtype),
        wv=_nrm(ks[4], (n_heads, d_model, d_head), dtype),
        bv=_nrm(ks[5], (n_heads, 1, d_head), dtype),
        wo=_nrm(ks[6], (n_heads, d_head, d_model), dtype),
        bo=_nrm(ks[7], (1, d_model), dtype),
        ln_g=jnp.ones((1, d_model), dtype),
        ln_b=jnp.zeros((1, d_model), dtype))


def _ff_params(key, d_model, d_inner, dtype):
    ks = jax.random.split(key, 4)
    return dict(
        w1=_nrm(ks[0], (d_model, d_inner), dtype),
        b1=_nrm(ks[1], (1, d_inner), dtype),
        w2=_nrm(ks[2], (d_inner, d_model), dtype),
        b2=_nrm(ks[3], (1, d_model), dtype),
        ln_g=jnp.ones((1, d_model), dtype),
        ln_b=jnp.zeros((1, d_model), dtype))


def init_transformer_params(key, enc_size, dec_size, n_layers, n_heads,
                            d_model, d_head, d_inner, dtype=jnp.float32):
    keys = jax.random.split(key, 3 + 3 * n_layers)
    emb_enc = _nrm(keys[0], (enc_size, d_model), dtype)
    emb_dec = _nrm(keys[1], (dec_size, d_model), dtype)
    encoder, decoder = [], []
    for i in range(n_layers):
        encoder.append(dict(
            mha=_mha_params(keys[2 + i], d_model, n_heads, d_head, dtype),
            ff=_ff_params(keys[2 + n_layers + i], d_model, d_inner, dtype)))
        kd = jax.random.split(keys[2 + 2 * n_layers + i], 3)
        decoder.append(dict(
            mha1=_mha_params(kd[0], d_model, n_heads, d_head, dtype),
            mha2=_mha_params(kd[1], d_model, n_heads, d_head, dtype),
            ff=_ff_params(kd[2], d_model, d_inner, dtype)))
    b_out = _nrm(keys[2 + 3 * n_layers], (1, dec_size), dtype)
    return dict(emb_enc=emb_enc, emb_dec=emb_dec,
                encoder=encoder, decoder=decoder,
                w_out=jnp.transpose(emb_dec),   # tied: out.weight = dec embedding weight
                b_out=b_out)


# ----------------------------------------------------------------------------
# Full forward pass
# ----------------------------------------------------------------------------
def transformer_forward(inp, out_tok, params, *, n_heads, d_head, scale=True):
    enc = transformer_embedding(inp, params["emb_enc"])
    dec = transformer_embedding(out_tok, params["emb_dec"])

    for layer in params["encoder"]:
        enc = encoder_layer(enc, layer, n_heads=n_heads, d_head=d_head, scale=scale)
    for layer in params["decoder"]:
        dec = decoder_layer(dec, enc, layer, n_heads=n_heads, d_head=d_head, scale=scale)

    return output_projection(dec, params["w_out"], params["b_out"])


# ----------------------------------------------------------------------------
if __name__ == "__main__":
    # Small but lane-dense configuration (d_model and n_heads*d_head = 128,
    # dec vocab = 128) so all kernel tiles are (8k, 128m)-aligned.
    bs, seq = 2, 8
    enc_size, dec_size = 160, 128
    n_layers, n_heads, d_model, d_head, d_inner = 2, 4, 128, 32, 256
    pad_idx = 1          # unused by the active causal mask, kept for fidelity
    dtype = jnp.bfloat16  # bf16 storage; kernels accumulate / normalize in f32

    key = jax.random.PRNGKey(0)
    k_par, k_inp, k_out = jax.random.split(key, 3)

    params = init_transformer_params(
        k_par, enc_size, dec_size, n_layers, n_heads, d_model, d_head, d_inner,
        dtype=dtype)

    inp = jax.random.randint(k_inp, (bs, seq), 0, enc_size, dtype=jnp.int32)
    out = jax.random.randint(k_out, (bs, seq), 0, dec_size, dtype=jnp.int32)

    logits = transformer_forward(inp, out, params,
                                 n_heads=n_heads, d_head=d_head, scale=True)
    logits = jax.block_until_ready(logits)
    assert logits.shape == (bs, seq, dec_size)
    assert bool(jnp.all(jnp.isfinite(logits.astype(jnp.float32))))
    print("KERNEL_OK")
</pallas_src>

<mosaic_0001>
module attributes {stable_mosaic.version = 11 : i64} {
  func.func @encoder_layer_kernel(%arg0: i32, %arg1: memref<1x8x128xbf16, #tpu.memory_space<vmem>>, %arg2: memref<4x128x32xbf16, #tpu.memory_space<vmem>>, %arg3: memref<4x1x32xbf16, #tpu.memory_space<vmem>>, %arg4: memref<4x128x32xbf16, #tpu.memory_space<vmem>>, %arg5: memref<4x1x32xbf16, #tpu.memory_space<vmem>>, %arg6: memref<4x128x32xbf16, #tpu.memory_space<vmem>>, %arg7: memref<4x1x32xbf16, #tpu.memory_space<vmem>>, %arg8: memref<4x32x128xbf16, #tpu.memory_space<vmem>>, %arg9: memref<1x128xbf16, #tpu.memory_space<vmem>>, %arg10: memref<1x128xbf16, #tpu.memory_space<vmem>>, %arg11: memref<1x128xbf16, #tpu.memory_space<vmem>>, %arg12: memref<128x256xbf16, #tpu.memory_space<vmem>>, %arg13: memref<1x256xbf16, #tpu.memory_space<vmem>>, %arg14: memref<256x128xbf16, #tpu.memory_space<vmem>>, %arg15: memref<1x128xbf16, #tpu.memory_space<vmem>>, %arg16: memref<1x128xbf16, #tpu.memory_space<vmem>>, %arg17: memref<1x128xbf16, #tpu.memory_space<vmem>>, %arg18: memref<1x8x128xbf16, #tpu.memory_space<vmem>>) attributes {dimension_semantics = [#tpu.dimension_semantics<parallel>], iteration_bounds = array<i64: 2>, scalar_prefetch = 0 : i64, scratch_operands = 0 : i64, tpu.core_type = #tpu.core_type<tc>, window_params = [{transform_indices = @transform_0, window_bounds = array<i64: 1, 8, 128>}, {pipeline_mode = #tpu.pipeline_mode<synchronous>, transform_indices = @transform_1, window_bounds = array<i64: 4, 128, 32>}, {pipeline_mode = #tpu.pipeline_mode<synchronous>, transform_indices = @transform_2, window_bounds = array<i64: 4, 1, 32>}, {pipeline_mode = #tpu.pipeline_mode<synchronous>, transform_indices = @transform_3, window_bounds = array<i64: 4, 128, 32>}, {pipeline_mode = #tpu.pipeline_mode<synchronous>, transform_indices = @transform_4, window_bounds = array<i64: 4, 1, 32>}, {pipeline_mode = #tpu.pipeline_mode<synchronous>, transform_indices = @transform_5, window_bounds = array<i64: 4, 128, 32>}, {pipeline_mode = #tpu.pipeline_mode<synchronous>, transform_indices = @transform_6, window_bounds = array<i64: 4, 1, 32>}, {pipeline_mode = #tpu.pipeline_mode<synchronous>, transform_indices = @transform_7, window_bounds = array<i64: 4, 32, 128>}, {pipeline_mode = #tpu.pipeline_mode<synchronous>, transform_indices = @transform_8, window_bounds = array<i64: 1, 128>}, {pipeline_mode = #tpu.pipeline_mode<synchronous>, transform_indices = @transform_9, window_bounds = array<i64: 1, 128>}, {pipeline_mode = #tpu.pipeline_mode<synchronous>, transform_indices = @transform_10, window_bounds = array<i64: 1, 128>}, {pipeline_mode = #tpu.pipeline_mode<synchronous>, transform_indices = @transform_11, window_bounds = array<i64: 128, 256>}, {pipeline_mode = #tpu.pipeline_mode<synchronous>, transform_indices = @transform_12, window_bounds = array<i64: 1, 256>}, {pipeline_mode = #tpu.pipeline_mode<synchronous>, transform_indices = @transform_13, window_bounds = array<i64: 256, 128>}, {pipeline_mode = #tpu.pipeline_mode<synchronous>, transform_indices = @transform_14, window_bounds = array<i64: 1, 128>}, {pipeline_mode = #tpu.pipeline_mode<synchronous>, transform_indices = @transform_15, window_bounds = array<i64: 1, 128>}, {pipeline_mode = #tpu.pipeline_mode<synchronous>, transform_indices = @transform_16, window_bounds = array<i64: 1, 128>}, {transform_indices = @transform_17, window_bounds = array<i64: 1, 8, 128>}]} {
    %c0 = arith.constant 0 : index
    %c0_0 = arith.constant 0 : index
    %c0_1 = arith.constant 0 : index
    %0 = vector.load %arg1[%c0, %c0_0, %c0_1] : memref<1x8x128xbf16, #tpu.memory_space<vmem>>, vector<1x8x128xbf16>
    %1 = vector.shape_cast %0 : vector<1x8x128xbf16> to vector<8x128xbf16>
    %2 = vector.shape_cast %1 : vector<8x128xbf16> to vector<1x8x128xbf16>
    %3 = vector.broadcast %2 : vector<1x8x128xbf16> to vector<4x8x128xbf16>
    %4 = vector.shape_cast %1 : vector<8x128xbf16> to vector<1x8x128xbf16>
    %5 = vector.broadcast %4 : vector<1x8x128xbf16> to vector<4x8x128xbf16>
    %c0_2 = arith.constant 0 : index
    %c0_3 = arith.constant 0 : index
    %c0_4 = arith.constant 0 : index
    %6 = vector.load %arg2[%c0_2, %c0_3, %c0_4] : memref<4x128x32xbf16, #tpu.memory_space<vmem>>, vector<4x128x32xbf16>
    %cst = arith.constant dense<0.000000e+00> : vector<4x8x32xf32>
    %7 = tpu.matmul %3, %6, %cst {dimension_numbers = #tpu.dot_dimension_numbers<[2], [1], [1], [2], [0, 0, 0, 1, 1, 2], [0], [0]>} : vector<4x8x128xbf16>, vector<4x128x32xbf16>, vector<4x8x32xf32> -> vector<4x8x32xf32>
    %c0_5 = arith.constant 0 : index
    %c0_6 = arith.constant 0 : index
    %c0_7 = arith.constant 0 : index
    %8 = vector.load %arg3[%c0_5, %c0_6, %c0_7] : memref<4x1x32xbf16, #tpu.memory_space<vmem>>, vector<4x1x32xbf16>
    %9 = arith.extf %8 : vector<4x1x32xbf16> to vector<4x1x32xf32>
    %10 = vector.broadcast %9 : vector<4x1x32xf32> to vector<4x8x32xf32>
    %11 = arith.addf %7, %10 : vector<4x8x32xf32>
    %cst_8 = arith.constant 0.176776692 : f32
    %12 = vector.broadcast %cst_8 : f32 to vector<4x8x32xf32>
    %13 = arith.mulf %11, %12 : vector<4x8x32xf32>
    %c0_9 = arith.constant 0 : index
    %c0_10 = arith.constant 0 : index
    %c0_11 = arith.constant 0 : index
    %14 = vector.load %arg4[%c0_9, %c0_10, %c0_11] : memref<4x128x32xbf16, #tpu.memory_space<vmem>>, vector<4x128x32xbf16>
    %cst_12 = arith.constant dense<0.000000e+00> : vector<4x8x32xf32>
    %15 = tpu.matmul %5, %14, %cst_12 {dimension_numbers = #tpu.dot_dimension_numbers<[2], [1], [1], [2], [0, 0, 0, 1, 1, 2], [0], [0]>} : vector<4x8x128xbf16>, vector<4x128x32xbf16>, vector<4x8x32xf32> -> vector<4x8x32xf32>
    %c0_13 = arith.constant 0 : index
    %c0_14 = arith.constant 0 : index
    %c0_15 = arith.constant 0 : index
    %16 = vector.load %arg5[%c0_13, %c0_14, %c0_15] : memref<4x1x32xbf16, #tpu.memory_space<vmem>>, vector<4x1x32xbf16>
    %17 = arith.extf %16 : vector<4x1x32xbf16> to vector<4x1x32xf32>
    %18 = vector.broadcast %17 : vector<4x1x32xf32> to vector<4x8x32xf32>
    %19 = arith.addf %15, %18 : vector<4x8x32xf32>
    %c0_16 = arith.constant 0 : index
    %c0_17 = arith.constant 0 : index
    %c0_18 = arith.constant 0 : index
    %20 = vector.load %arg6[%c0_16, %c0_17, %c0_18] : memref<4x128x32xbf16, #tpu.memory_space<vmem>>, vector<4x128x32xbf16>
    %cst_19 = arith.constant dense<0.000000e+00> : vector<4x8x32xf32>
    %21 = tpu.matmul %5, %20, %cst_19 {dimension_numbers = #tpu.dot_dimension_numbers<[2], [1], [1], [2], [0, 0, 0, 1, 1, 2], [0], [0]>} : vector<4x8x128xbf16>, vector<4x128x32xbf16>, vector<4x8x32xf32> -> vector<4x8x32xf32>
    %c0_20 = arith.constant 0 : index
    %c0_21 = arith.constant 0 : index
    %c0_22 = arith.constant 0 : index
    %22 = vector.load %arg7[%c0_20, %c0_21, %c0_22] : memref<4x1x32xbf16, #tpu.memory_space<vmem>>, vector<4x1x32xbf16>
    %23 = arith.extf %22 : vector<4x1x32xbf16> to vector<4x1x32xf32>
    %24 = vector.broadcast %23 : vector<4x1x32xf32> to vector<4x8x32xf32>
    %25 = arith.addf %21, %24 : vector<4x8x32xf32>
    %26 = arith.truncf %13 : vector<4x8x32xf32> to vector<4x8x32xbf16>
    %27 = arith.truncf %19 : vector<4x8x32xf32> to vector<4x8x32xbf16>
    %cst_23 = arith.constant dense<0.000000e+00> : vector<4x8x8xf32>
    %28 = tpu.matmul %26, %27, %cst_23 {dimension_numbers = #tpu.dot_dimension_numbers<[2], [2], [1], [1], [0, 0, 0, 1, 1, 1], [0], [0]>} : vector<4x8x32xbf16>, vector<4x8x32xbf16>, vector<4x8x8xf32> -> vector<4x8x8xf32>
    %cst_24 = arith.constant dense<0xFF800000> : vector<4x8xf32>
    %29 = vector.multi_reduction <maximumf>, %28, %cst_24 [2] : vector<4x8x8xf32> to vector<4x8xf32>
    %30 = vector.shape_cast %29 : vector<4x8xf32> to vector<4x8x1xf32>
    %31 = vector.broadcast %30 : vector<4x8x1xf32> to vector<4x8x8xf32>
    %32 = arith.subf %28, %31 : vector<4x8x8xf32>
    %33 = math.exp %32 : vector<4x8x8xf32>
    %cst_25 = arith.constant dense<0.000000e+00> : vector<4x8xf32>
    %34 = vector.multi_reduction <add>, %33, %cst_25 [2] : vector<4x8x8xf32> to vector<4x8xf32>
    %35 = vector.shape_cast %34 : vector<4x8xf32> to vector<4x8x1xf32>
    %36 = tpu.reciprocal %35 {approx = true} : vector<4x8x1xf32> -> vector<4x8x1xf32>
    %37 = vector.broadcast %36 : vector<4x8x1xf32> to vector<4x8x8xf32>
    %38 = arith.mulf %33, %37 : vector<4x8x8xf32>
    %39 = arith.truncf %38 : vector<4x8x8xf32> to vector<4x8x8xbf16>
    %40 = arith.truncf %25 : vector<4x8x32xf32> to vector<4x8x32xbf16>
    %cst_26 = arith.constant dense<0.000000e+00> : vector<4x8x32xf32>
    %41 = tpu.matmul %39, %40, %cst_26 {dimension_numbers = #tpu.dot_dimension_numbers<[2], [1], [1], [2], [0, 0, 0, 1, 1, 2], [0], [0]>} : vector<4x8x8xbf16>, vector<4x8x32xbf16>, vector<4x8x32xf32> -> vector<4x8x32xf32>
    %42 = arith.truncf %41 : vector<4x8x32xf32> to vector<4x8x32xbf16>
    %c0_27 = arith.constant 0 : index
    %c0_28 = arith.constant 0 : index
    %c0_29 = arith.constant 0 : index
    %43 = vector.load %arg8[%c0_27, %c0_28, %c0_29] : memref<4x32x128xbf16, #tpu.memory_space<vmem>>, vector<4x32x128xbf16>
    %cst_30 = arith.constant dense<0.000000e+00> : vector<4x8x128xf32>
    %44 = tpu.matmul %42, %43, %cst_30 {dimension_numbers = #tpu.dot_dimension_numbers<[2], [1], [1], [2], [0, 0, 0, 1, 1, 2], [0], [0]>} : vector<4x8x32xbf16>, vector<4x32x128xbf16>, vector<4x8x128xf32> -> vector<4x8x128xf32>
    %cst_31 = arith.constant dense<0.000000e+00> : vector<8x128xf32>
    %45 = vector.multi_reduction <add>, %44, %cst_31 [0] : vector<4x8x128xf32> to vector<8x128xf32>
    %c0_32 = arith.constant 0 : index
    %c0_33 = arith.constant 0 : index
    %46 = vector.load %arg9[%c0_32, %c0_33] : memref<1x128xbf16, #tpu.memory_space<vmem>>, vector<1x128xbf16>
    %47 = arith.extf %46 : vector<1x128xbf16> to vector<1x128xf32>
    %48 = vector.broadcast %47 : vector<1x128xf32> to vector<8x128xf32>
    %49 = arith.addf %45, %48 : vector<8x128xf32>
    %50 = arith.extf %1 : vector<8x128xbf16> to vector<8x128xf32>
    %51 = arith.addf %50, %49 : vector<8x128xf32>
    %c0_34 = arith.constant 0 : index
    %c0_35 = arith.constant 0 : index
    %52 = vector.load %arg10[%c0_34, %c0_35] : memref<1x128xbf16, #tpu.memory_space<vmem>>, vector<1x128xbf16>
    %53 = arith.extf %52 : vector<1x128xbf16> to vector<1x128xf32>
    %c0_36 = arith.constant 0 : index
    %c0_37 = arith.constant 0 : index
    %54 = vector.load %arg11[%c0_36, %c0_37] : memref<1x128xbf16, #tpu.memory_space<vmem>>, vector<1x128xbf16>
    %55 = arith.extf %54 : vector<1x128xbf16> to vector<1x128xf32>
    %cst_38 = arith.constant dense<0.000000e+00> : vector<8xf32>
    %56 = vector.multi_reduction <add>, %51, %cst_38 [1] : vector<8x128xf32> to vector<8xf32>
    %57 = vector.shape_cast %56 : vector<8xf32> to vector<8x1xf32>
    %cst_39 = arith.constant 1.280000e+02 : f32
    %58 = vector.broadcast %cst_39 : f32 to vector<8x1xf32>
    %59 = arith.divf %57, %58 : vector<8x1xf32>
    %60 = vector.broadcast %59 : vector<8x1xf32> to vector<8x128xf32>
    %61 = arith.subf %51, %60 : vector<8x128xf32>
    %62 = arith.mulf %61, %61 : vector<8x128xf32>
    %cst_40 = arith.constant dense<0.000000e+00> : vector<8xf32>
    %63 = vector.multi_reduction <add>, %62, %cst_40 [1] : vector<8x128xf32> to vector<8xf32>
    %64 = vector.shape_cast %63 : vector<8xf32> to vector<8x1xf32>
    %cst_41 = arith.constant 1.280000e+02 : f32
    %65 = vector.broadcast %cst_41 : f32 to vector<8x1xf32>
    %66 = arith.divf %64, %65 : vector<8x1xf32>
    %67 = vector.broadcast %59 : vector<8x1xf32> to vector<8x128xf32>
    %68 = arith.subf %51, %67 : vector<8x128xf32>
    %cst_42 = arith.constant 9.99999974E-6 : f32
    %69 = vector.broadcast %cst_42 : f32 to vector<8x1xf32>
    %70 = arith.addf %66, %69 : vector<8x1xf32>
    %71 = math.rsqrt %70 : vector<8x1xf32>
    %72 = vector.broadcast %71 : vector<8x1xf32> to vector<8x128xf32>
    %73 = arith.mulf %68, %72 : vector<8x128xf32>
    %74 = vector.broadcast %53 : vector<1x128xf32> to vector<8x128xf32>
    %75 = arith.mulf %73, %74 : vector<8x128xf32>
    %76 = vector.broadcast %55 : vector<1x128xf32> to vector<8x128xf32>
    %77 = arith.addf %75, %76 : vector<8x128xf32>
    %78 = arith.truncf %77 : vector<8x128xf32> to vector<8x128xbf16>
    %c0_43 = arith.constant 0 : index
    %c0_44 = arith.constant 0 : index
    %79 = vector.load %arg12[%c0_43, %c0_44] : memref<128x256xbf16, #tpu.memory_space<vmem>>, vector<128x256xbf16>
    %cst_45 = arith.constant dense<0.000000e+00> : vector<8x256xf32>
    %80 = tpu.matmul %78, %79, %cst_45 {dimension_numbers = #tpu.dot_dimension_numbers<[1], [0], [0], [1], [0, 0, 1, 1], [], []>} : vector<8x128xbf16>, vector<128x256xbf16>, vector<8x256xf32> -> vector<8x256xf32>
    %c0_46 = arith.constant 0 : index
    %c0_47 = arith.constant 0 : index
    %81 = vector.load %arg13[%c0_46, %c0_47] : memref<1x256xbf16, #tpu.memory_space<vmem>>, vector<1x256xbf16>
    %82 = arith.extf %81 : vector<1x256xbf16> to vector<1x256xf32>
    %83 = vector.broadcast %82 : vector<1x256xf32> to vector<8x256xf32>
    %84 = arith.addf %80, %83 : vector<8x256xf32>
    %cst_48 = arith.constant 0.000000e+00 : f32
    %85 = vector.broadcast %cst_48 : f32 to vector<8x256xf32>
    %86 = arith.maximumf %84, %85 : vector<8x256xf32>
    %87 = arith.truncf %86 : vector<8x256xf32> to vector<8x256xbf16>
    %c0_49 = arith.constant 0 : index
    %c0_50 = arith.constant 0 : index
    %88 = vector.load %arg14[%c0_49, %c0_50] : memref<256x128xbf16, #tpu.memory_space<vmem>>, vector<256x128xbf16>
    %cst_51 = arith.constant dense<0.000000e+00> : vector<8x128xf32>
    %89 = tpu.matmul %87, %88, %cst_51 {dimension_numbers = #tpu.dot_dimension_numbers<[1], [0], [0], [1], [0, 0, 1, 1], [], []>} : vector<8x256xbf16>, vector<256x128xbf16>, vector<8x128xf32> -> vector<8x128xf32>
    %c0_52 = arith.constant 0 : index
    %c0_53 = arith.constant 0 : index
    %90 = vector.load %arg15[%c0_52, %c0_53] : memref<1x128xbf16, #tpu.memory_space<vmem>>, vector<1x128xbf16>
    %91 = arith.extf %90 : vector<1x128xbf16> to vector<1x128xf32>
    %92 = vector.broadcast %91 : vector<1x128xf32> to vector<8x128xf32>
    %93 = arith.addf %89, %92 : vector<8x128xf32>
    %94 = arith.extf %78 : vector<8x128xbf16> to vector<8x128xf32>
    %95 = arith.addf %94, %93 : vector<8x128xf32>
    %c0_54 = arith.constant 0 : index
    %c0_55 = arith.constant 0 : index
    %96 = vector.load %arg16[%c0_54, %c0_55] : memref<1x128xbf16, #tpu.memory_space<vmem>>, vector<1x128xbf16>
    %97 = arith.extf %96 : vector<1x128xbf16> to vector<1x128xf32>
    %c0_56 = arith.constant 0 : index
    %c0_57 = arith.constant 0 : index
    %98 = vector.load %arg17[%c0_56, %c0_57] : memref<1x128xbf16, #tpu.memory_space<vmem>>, vector<1x128xbf16>
    %99 = arith.extf %98 : vector<1x128xbf16> to vector<1x128xf32>
    %cst_58 = arith.constant dense<0.000000e+00> : vector<8xf32>
    %100 = vector.multi_reduction <add>, %95, %cst_58 [1] : vector<8x128xf32> to vector<8xf32>
    %101 = vector.shape_cast %100 : vector<8xf32> to vector<8x1xf32>
    %cst_59 = arith.constant 1.280000e+02 : f32
    %102 = vector.broadcast %cst_59 : f32 to vector<8x1xf32>
    %103 = arith.divf %101, %102 : vector<8x1xf32>
    %104 = vector.broadcast %103 : vector<8x1xf32> to vector<8x128xf32>
    %105 = arith.subf %95, %104 : vector<8x128xf32>
    %106 = arith.mulf %105, %105 : vector<8x128xf32>
    %cst_60 = arith.constant dense<0.000000e+00> : vector<8xf32>
    %107 = vector.multi_reduction <add>, %106, %cst_60 [1] : vector<8x128xf32> to vector<8xf32>
    %108 = vector.shape_cast %107 : vector<8xf32> to vector<8x1xf32>
    %cst_61 = arith.constant 1.280000e+02 : f32
    %109 = vector.broadcast %cst_61 : f32 to vector<8x1xf32>
    %110 = arith.divf %108, %109 : vector<8x1xf32>
    %111 = vector.broadcast %103 : vector<8x1xf32> to vector<8x128xf32>
    %112 = arith.subf %95, %111 : vector<8x128xf32>
    %cst_62 = arith.constant 9.99999974E-6 : f32
    %113 = vector.broadcast %cst_62 : f32 to vector<8x1xf32>
    %114 = arith.addf %110, %113 : vector<8x1xf32>
    %115 = math.rsqrt %114 : vector<8x1xf32>
    %116 = vector.broadcast %115 : vector<8x1xf32> to vector<8x128xf32>
    %117 = arith.mulf %112, %116 : vector<8x128xf32>
    %118 = vector.broadcast %97 : vector<1x128xf32> to vector<8x128xf32>
    %119 = arith.mulf %117, %118 : vector<8x128xf32>
    %120 = vector.broadcast %99 : vector<1x128xf32> to vector<8x128xf32>
    %121 = arith.addf %119, %120 : vector<8x128xf32>
    %122 = arith.truncf %121 : vector<8x128xf32> to vector<8x128xbf16>
    %c0_63 = arith.constant 0 : index
    %c0_64 = arith.constant 0 : index
    %c0_65 = arith.constant 0 : index
    %123 = vector.load %arg18[%c0_63, %c0_64, %c0_65] : memref<1x8x128xbf16, #tpu.memory_space<vmem>>, vector<1x8x128xbf16>
    %124 = vector.shape_cast %123 : vector<1x8x128xbf16> to vector<8x128xbf16>
    %125 = vector.shape_cast %122 : vector<8x128xbf16> to vector<1x8x128xbf16>
    tpu.vector_store %arg18[%c0_63, %c0_64, %c0_65], %125 {strides = array<i32>} : memref<1x8x128xbf16, #tpu.memory_space<vmem>>, vector<1x8x128xbf16>,
    return
  }
  func.func @transform_0(%arg0: i32) -> (i32, i32, i32) {
    %c0_i32 = arith.constant 0 : i32
    %c0_i32_0 = arith.constant 0 : i32
    %c0_i32_1 = arith.constant 0 : i32
    return %arg0, %c0_i32, %c0_i32_0 : i32, i32, i32
  }
  func.func @transform_1(%arg0: i32) -> (i32, i32, i32) {
    %c0_i32 = arith.constant 0 : i32
    %c0_i32_0 = arith.constant 0 : i32
    %c0_i32_1 = arith.constant 0 : i32
    %c0_i32_2 = arith.constant 0 : i32
    return %c0_i32, %c0_i32_0, %c0_i32_1 : i32, i32, i32
  }
  func.func @transform_2(%arg0: i32) -> (i32, i32, i32) {
    %c0_i32 = arith.constant 0 : i32
    %c0_i32_0 = arith.constant 0 : i32
    %c0_i32_1 = arith.constant 0 : i32
    %c0_i32_2 = arith.constant 0 : i32
    return %c0_i32, %c0_i32_0, %c0_i32_1 : i32, i32, i32
  }
  func.func @transform_3(%arg0: i32) -> (i32, i32, i32) {
    %c0_i32 = arith.constant 0 : i32
    %c0_i32_0 = arith.constant 0 : i32
    %c0_i32_1 = arith.constant 0 : i32
    %c0_i32_2 = arith.constant 0 : i32
    return %c0_i32, %c0_i32_0, %c0_i32_1 : i32, i32, i32
  }
  func.func @transform_4(%arg0: i32) -> (i32, i32, i32) {
    %c0_i32 = arith.constant 0 : i32
    %c0_i32_0 = arith.constant 0 : i32
    %c0_i32_1 = arith.constant 0 : i32
    %c0_i32_2 = arith.constant 0 : i32
    return %c0_i32, %c0_i32_0, %c0_i32_1 : i32, i32, i32
  }
  func.func @transform_5(%arg0: i32) -> (i32, i32, i32) {
    %c0_i32 = arith.constant 0 : i32
    %c0_i32_0 = arith.constant 0 : i32
    %c0_i32_1 = arith.constant 0 : i32
    %c0_i32_2 = arith.constant 0 : i32
    return %c0_i32, %c0_i32_0, %c0_i32_1 : i32, i32, i32
  }
  func.func @transform_6(%arg0: i32) -> (i32, i32, i32) {
    %c0_i32 = arith.constant 0 : i32
    %c0_i32_0 = arith.constant 0 : i32
    %c0_i32_1 = arith.constant 0 : i32
    %c0_i32_2 = arith.constant 0 : i32
    return %c0_i32, %c0_i32_0, %c0_i32_1 : i32, i32, i32
  }
  func.func @transform_7(%arg0: i32) -> (i32, i32, i32) {
    %c0_i32 = arith.constant 0 : i32
    %c0_i32_0 = arith.constant 0 : i32
    %c0_i32_1 = arith.constant 0 : i32
    %c0_i32_2 = arith.constant 0 : i32
    return %c0_i32, %c0_i32_0, %c0_i32_1 : i32, i32, i32
  }
  func.func @transform_8(%arg0: i32) -> (i32, i32) {
    %c0_i32 = arith.constant 0 : i32
    %c0_i32_0 = arith.constant 0 : i32
    %c0_i32_1 = arith.constant 0 : i32
    return %c0_i32, %c0_i32_0 : i32, i32
  }
  func.func @transform_9(%arg0: i32) -> (i32, i32) {
    %c0_i32 = arith.constant 0 : i32
    %c0_i32_0 = arith.constant 0 : i32
    %c0_i32_1 = arith.constant 0 : i32
    return %c0_i32, %c0_i32_0 : i32, i32
  }
  func.func @transform_10(%arg0: i32) -> (i32, i32) {
    %c0_i32 = arith.constant 0 : i32
    %c0_i32_0 = arith.constant 0 : i32
    %c0_i32_1 = arith.constant 0 : i32
    return %c0_i32, %c0_i32_0 : i32, i32
  }
  func.func @transform_11(%arg0: i32) -> (i32, i32) {
    %c0_i32 = arith.constant 0 : i32
    %c0_i32_0 = arith.constant 0 : i32
    %c0_i32_1 = arith.constant 0 : i32
    return %c0_i32, %c0_i32_0 : i32, i32
  }
  func.func @transform_12(%arg0: i32) -> (i32, i32) {
    %c0_i32 = arith.constant 0 : i32
    %c0_i32_0 = arith.constant 0 : i32
    %c0_i32_1 = arith.constant 0 : i32
    return %c0_i32, %c0_i32_0 : i32, i32
  }
  func.func @transform_13(%arg0: i32) -> (i32, i32) {
    %c0_i32 = arith.constant 0 : i32
    %c0_i32_0 = arith.constant 0 : i32
    %c0_i32_1 = arith.constant 0 : i32
    return %c0_i32, %c0_i32_0 : i32, i32
  }
  func.func @transform_14(%arg0: i32) -> (i32, i32) {
    %c0_i32 = arith.constant 0 : i32
    %c0_i32_0 = arith.constant 0 : i32
    %c0_i32_1 = arith.constant 0 : i32
    return %c0_i32, %c0_i32_0 : i32, i32
  }
  func.func @transform_15(%arg0: i32) -> (i32, i32) {
    %c0_i32 = arith.constant 0 : i32
    %c0_i32_0 = arith.constant 0 : i32
    %c0_i32_1 = arith.constant 0 : i32
    return %c0_i32, %c0_i32_0 : i32, i32
  }
  func.func @transform_16(%arg0: i32) -> (i32, i32) {
    %c0_i32 = arith.constant 0 : i32
    %c0_i32_0 = arith.constant 0 : i32
    %c0_i32_1 = arith.constant 0 : i32
    return %c0_i32, %c0_i32_0 : i32, i32
  }
  func.func @transform_17(%arg0: i32) -> (i32, i32, i32) {
    %c0_i32 = arith.constant 0 : i32
    %c0_i32_0 = arith.constant 0 : i32
    %c0_i32_1 = arith.constant 0 : i32
    return %arg0, %c0_i32, %c0_i32_0 : i32, i32, i32
  }
}

</mosaic_0001>

<llo_original>
// kernel: tpu_custom_call.1
$region0: #{tpu_custom_call.1}
  #allocation0 [shape = 'u32[]', space=smem, size = 0x4, offset = 0x4, fixed_abs, tag = 'smem constant byte address 0x4 - core index']
  #allocation1 [shape = 'u32[144,128]{1,0:T(1,128)}', space=vmem, size = 0x12000, scoped, tag = 'internal scratch']
  %s0 = inlined_call_operand.vmem [shape: bf16[2,8,128], index: 0, kind: input, shape index: {}]
  %s1 = inlined_call_operand.vmem [shape: bf16[4,128,32], index: 1, kind: input, shape index: {}]
  %s2 = inlined_call_operand.vmem [shape: bf16[4,1,32], index: 2, kind: input, shape index: {}]
  %s3 = inlined_call_operand.vmem [shape: bf16[4,128,32], index: 3, kind: input, shape index: {}]
  %s4 = inlined_call_operand.vmem [shape: bf16[4,1,32], index: 4, kind: input, shape index: {}]
  %s5 = inlined_call_operand.vmem [shape: bf16[4,128,32], index: 5, kind: input, shape index: {}]
  %s6 = inlined_call_operand.vmem [shape: bf16[4,1,32], index: 6, kind: input, shape index: {}]
  %s7 = inlined_call_operand.vmem [shape: bf16[4,32,128], index: 7, kind: input, shape index: {}]
  %s8 = inlined_call_operand.vmem [shape: bf16[1,128], index: 8, kind: input, shape index: {}]
  %s9 = inlined_call_operand.vmem [shape: bf16[1,128], index: 9, kind: input, shape index: {}]
  %s10 = inlined_call_operand.vmem [shape: bf16[1,128], index: 10, kind: input, shape index: {}]
  %s11 = inlined_call_operand.vmem [shape: bf16[128,256], index: 11, kind: input, shape index: {}]
  %s12 = inlined_call_operand.vmem [shape: bf16[1,256], index: 12, kind: input, shape index: {}]
  %s13 = inlined_call_operand.vmem [shape: bf16[256,128], index: 13, kind: input, shape index: {}]
  %s14 = inlined_call_operand.vmem [shape: bf16[1,128], index: 14, kind: input, shape index: {}]
  %s15 = inlined_call_operand.vmem [shape: bf16[1,128], index: 15, kind: input, shape index: {}]
  %s16 = inlined_call_operand.vmem [shape: bf16[1,128], index: 16, kind: input, shape index: {}]
  %s17 = inlined_call_operand.hbm [shape: bf16[2,8,128], index: 17, kind: output, shape index: {}]
  %s18 = sld [smem:[#allocation0]]
  $region101: #{tpu_custom_call.1} parent=0
    _
  %s20 = ssub.s32 1, %s18
  %s21 = scalar_select 0, %s20, %s18
  $region1: #{tpu_custom_call.1} parent=0
    #allocation2 [shape = 'u8[4096]{0}', space=vmem, size = 0x1000, scoped, tag = 'output window, operand 0']
    #allocation3 [shape = 's32[2]{0}', space=sflag, size = 0x8, scoped, tag = 'scoped memory for tpu_custom_call.1']
    %22 = vsyncpa [#allocation3], 0
    %s23 = scalar_lea.sflag [#allocation3], 1
    %24 = vsyncpa %s23, 0
    loop: start=0, step=1, limit=4
    $region2: #{tpu_custom_call.1} parent=1 // loop_pre_header
      _
    $region3: #{tpu_custom_call.1} parent=1 // loop_header
      %s26 = sphi 0, %s30
      %p27 = scmp.ge.s32.totalorder %s26, 4
      %s36 = sphi 0, %s38
      %s39 = sphi 0, %s36
      %s40 = sphi 0, %s39
      %s56 = sphi 0, %s40
      %s60 = sphi 0, %s60
      %s62 = sphi 0, %s60
      %s63 = sphi 0, %s62
      %s77 = sphi 0, %s63
      %s81 = sphi 0, %s81
      %s83 = sphi 0, %s81
      %s84 = sphi 0, %s83
      %s98 = sphi 0, %s84
      %s102 = sphi 0, %s102
      %s104 = sphi 0, %s102
      %s105 = sphi 0, %s104
      %s119 = sphi 0, %s105
      %s123 = sphi 0, %s123
      %s125 = sphi 0, %s123
      %s126 = sphi 0, %s125
      %s140 = sphi 0, %s126
      %s144 = sphi 0, %s144
      %s146 = sphi 0, %s144
      %s147 = sphi 0, %s146
      %s161 = sphi 0, %s147
      %s165 = sphi 0, %s165
      %s167 = sphi 0, %s165
      %s168 = sphi 0, %s167
      %s182 = sphi 0, %s168
      %s186 = sphi 0, %s186
      %s188 = sphi 0, %s186
      %s189 = sphi 0, %s188
      %s203 = sphi 0, %s189
      %s207 = sphi 0, %s207
      %s209 = sphi 0, %s207
      %s210 = sphi 0, %s209
      %s224 = sphi 0, %s210
      %s228 = sphi 0, %s228
      %s230 = sphi 0, %s228
      %s231 = sphi 0, %s230
      %s245 = sphi 0, %s231
      %s249 = sphi 0, %s249
      %s251 = sphi 0, %s249
      %s252 = sphi 0, %s251
      %s266 = sphi 0, %s252
      %s270 = sphi 0, %s270
      %s272 = sphi 0, %s270
      %s273 = sphi 0, %s272
      %s287 = sphi 0, %s273
      %s291 = sphi 0, %s291
      %s293 = sphi 0, %s291
      %s294 = sphi 0, %s293
      %s308 = sphi 0, %s294
      %s312 = sphi 0, %s312
      %s314 = sphi 0, %s312
      %s315 = sphi 0, %s314
      %s329 = sphi 0, %s315
      %s333 = sphi 0, %s333
      %s335 = sphi 0, %s333
      %s336 = sphi 0, %s335
      %s350 = sphi 0, %s336
      %s354 = sphi 0, %s354
      %s356 = sphi 0, %s354
      %s357 = sphi 0, %s356
      %s371 = sphi 0, %s357
      %s375 = sphi 0, %s375
      %s377 = sphi 0, %s375
      %s378 = sphi 0, %s377
      %s392 = sphi 0, %s378
      %s398 = sphi 0, %s400
      %s401 = sphi 0, %s398
      %s402 = sphi 0, %s401
      %s418 = sphi 0, %s402
    $region4: #{tpu_custom_call.1} parent=1 // loop_header_branch
      %29 = sbr.rel (%p27) target = $region8
    $region5: #{tpu_custom_call.1} parent=1 // loop_body
      %s31 = ssub.s32 %s26, 1
      %s32 = ssub.s32 %s26, 2
      %s33 = sadd.s32 %s26, 1
      %s34 = ssub.s32 %s26, %s33
      %p35 = scmp.eq.s32.totalorder %s34, 0
      %s37 = sadd.s32 %s36, 1
      %s38 = scalar_select %p35, %s36, %s37
      %p41 = pneg %p35
      %p42 = scmp.eq.s32.totalorder %s26, 1
      %p43 = por %p41, %p42
      %p44 = scmp.ne.s32.totalorder %s36, %s39
      %p45 = scmp.eq.s32.totalorder %s26, 0
      %p46 = por %p44, %p45
      %p47 = scmp.ne.s32.totalorder %s36, %s39
      %p48 = scmp.eq.s32.totalorder %s31, 1
      %p49 = por %p47, %p48
      %p50 = scmp.ne.s32.totalorder %s39, %s40
      %p51 = scmp.eq.s32.totalorder %s31, 0
      %p52 = por %p50, %p51
      %p53 = scmp.ne.s32.totalorder %s39, %s40
      %p54 = scmp.eq.s32.totalorder %s32, 1
      %p55 = por %p53, %p54
      %p57 = scmp.ne.s32.totalorder %s40, %s56
      %p58 = scmp.eq.s32.totalorder %s32, 0
      %p59 = por %p57, %p58
      %s61 = sadd.s32 %s60, 1
      %p64 = scmp.eq.s32.totalorder %s26, 1
      %p65 = scmp.ne.s32.totalorder %s60, %s62
      %p66 = scmp.eq.s32.totalorder %s26, 0
      %p67 = por %p65, %p66
      %p68 = scmp.ne.s32.totalorder %s60, %s62
      %p69 = scmp.eq.s32.totalorder %s31, 1
      %p70 = por %p68, %p69
      %p71 = scmp.ne.s32.totalorder %s62, %s63
      %p72 = scmp.eq.s32.totalorder %s31, 0
      %p73 = por %p71, %p72
      %p74 = scmp.ne.s32.totalorder %s62, %s63
      %p75 = scmp.eq.s32.totalorder %s32, 1
      %p76 = por %p74, %p75
      %p78 = scmp.ne.s32.totalorder %s63, %s77
      %p79 = scmp.eq.s32.totalorder %s32, 0
      %p80 = por %p78, %p79
      %s82 = sadd.s32 %s81, 1
      %p85 = scmp.eq.s32.totalorder %s26, 1
      %p86 = scmp.ne.s32.totalorder %s81, %s83
      %p87 = scmp.eq.s32.totalorder %s26, 0
      %p88 = por %p86, %p87
      %p89 = scmp.ne.s32.totalorder %s81, %s83
      %p90 = scmp.eq.s32.totalorder %s31, 1
      %p91 = por %p89, %p90
      %p92 = scmp.ne.s32.totalorder %s83, %s84
      %p93 = scmp.eq.s32.totalorder %s31, 0
      %p94 = por %p92, %p93
      %p95 = scmp.ne.s32.totalorder %s83, %s84
      %p96 = scmp.eq.s32.totalorder %s32, 1
      %p97 = por %p95, %p96
      %p99 = scmp.ne.s32.totalorder %s84, %s98
      %p100 = scmp.eq.s32.totalorder %s32, 0
      %p101 = por %p99, %p100
      %s103 = sadd.s32 %s102, 1
      %p106 = scmp.eq.s32.totalorder %s26, 1
      %p107 = scmp.ne.s32.totalorder %s102, %s104
      %p108 = scmp.eq.s32.totalorder %s26, 0
      %p109 = por %p107, %p108
      %p110 = scmp.ne.s32.totalorder %s102, %s104
      %p111 = scmp.eq.s32.totalorder %s31, 1
      %p112 = por %p110, %p111
      %p113 = scmp.ne.s32.totalorder %s104, %s105
      %p114 = scmp.eq.s32.totalorder %s31, 0
      %p115 = por %p113, %p114
      %p116 = scmp.ne.s32.totalorder %s104, %s105
      %p117 = scmp.eq.s32.totalorder %s32, 1
      %p118 = por %p116, %p117
      %p120 = scmp.ne.s32.totalorder %s105, %s119
      %p121 = scmp.eq.s32.totalorder %s32, 0
      %p122 = por %p120, %p121
      %s124 = sadd.s32 %s123, 1
      %p127 = scmp.eq.s32.totalorder %s26, 1
      %p128 = scmp.ne.s32.totalorder %s123, %s125
      %p129 = scmp.eq.s32.totalorder %s26, 0
      %p130 = por %p128, %p129
      %p131 = scmp.ne.s32.totalorder %s123, %s125
      %p132 = scmp.eq.s32.totalorder %s31, 1
      %p133 = por %p131, %p132
      %p134 = scmp.ne.s32.totalorder %s125, %s126
      %p135 = scmp.eq.s32.totalorder %s31, 0
      %p136 = por %p134, %p135
      %p137 = scmp.ne.s32.totalorder %s125, %s126
      %p138 = scmp.eq.s32.totalorder %s32, 1
      %p139 = por %p137, %p138
      %p141 = scmp.ne.s32.totalorder %s126, %s140
      %p142 = scmp.eq.s32.totalorder %s32, 0
      %p143 = por %p141, %p142
      %s145 = sadd.s32 %s144, 1
      %p148 = scmp.eq.s32.totalorder %s26, 1
      %p149 = scmp.ne.s32.totalorder %s144, %s146
      %p150 = scmp.eq.s32.totalorder %s26, 0
      %p151 = por %p149, %p150
      %p152 = scmp.ne.s32.totalorder %s144, %s146
      %p153 = scmp.eq.s32.totalorder %s31, 1
      %p154 = por %p152, %p153
      %p155 = scmp.ne.s32.totalorder %s146, %s147
      %p156 = scmp.eq.s32.totalorder %s31, 0
      %p157 = por %p155, %p156
      %p158 = scmp.ne.s32.totalorder %s146, %s147
      %p159 = scmp.eq.s32.totalorder %s32, 1
      %p160 = por %p158, %p159
      %p162 = scmp.ne.s32.totalorder %s147, %s161
      %p163 = scmp.eq.s32.totalorder %s32, 0
      %p164 = por %p162, %p163
      %s166 = sadd.s32 %s165, 1
      %p169 = scmp.eq.s32.totalorder %s26, 1
      %p170 = scmp.ne.s32.totalorder %s165, %s167
      %p171 = scmp.eq.s32.totalorder %s26, 0
      %p172 = por %p170, %p171
      %p173 = scmp.ne.s32.totalorder %s165, %s167
      %p174 = scmp.eq.s32.totalorder %s31, 1
      %p175 = por %p173, %p174
      %p176 = scmp.ne.s32.totalorder %s167, %s168
      %p177 = scmp.eq.s32.totalorder %s31, 0
      %p178 = por %p176, %p177
      %p179 = scmp.ne.s32.totalorder %s167, %s168
      %p180 = scmp.eq.s32.totalorder %s32, 1
      %p181 = por %p179, %p180
      %p183 = scmp.ne.s32.totalorder %s168, %s182
      %p184 = scmp.eq.s32.totalorder %s32, 0
      %p185 = por %p183, %p184
      %s187 = sadd.s32 %s186, 1
      %p190 = scmp.eq.s32.totalorder %s26, 1
      %p191 = scmp.ne.s32.totalorder %s186, %s188
      %p192 = scmp.eq.s32.totalorder %s26, 0
      %p193 = por %p191, %p192
      %p194 = scmp.ne.s32.totalorder %s186, %s188
      %p195 = scmp.eq.s32.totalorder %s31, 1
      %p196 = por %p194, %p195
      %p197 = scmp.ne.s32.totalorder %s188, %s189
      %p198 = scmp.eq.s32.totalorder %s31, 0
      %p199 = por %p197, %p198
      %p200 = scmp.ne.s32.totalorder %s188, %s189
      %p201 = scmp.eq.s32.totalorder %s32, 1
      %p202 = por %p200, %p201
      %p204 = scmp.ne.s32.totalorder %s189, %s203
      %p205 = scmp.eq.s32.totalorder %s32, 0
      %p206 = por %p204, %p205
      %s208 = sadd.s32 %s207, 1
      %p211 = scmp.eq.s32.totalorder %s26, 1
      %p212 = scmp.ne.s32.totalorder %s207, %s209
      %p213 = scmp.eq.s32.totalorder %s26, 0
      %p214 = por %p212, %p213
      %p215 = scmp.ne.s32.totalorder %s207, %s209
      %p216 = scmp.eq.s32.totalorder %s31, 1
      %p217 = por %p215, %p216
      %p218 = scmp.ne.s32.totalorder %s209, %s210
      %p219 = scmp.eq.s32.totalorder %s31, 0
      %p220 = por %p218, %p219
      %p221 = scmp.ne.s32.totalorder %s209, %s210
      %p222 = scmp.eq.s32.totalorder %s32, 1
      %p223 = por %p221, %p222
      %p225 = scmp.ne.s32.totalorder %s210, %s224
      %p226 = scmp.eq.s32.totalorder %s32, 0
      %p227 = por %p225, %p226
      %s229 = sadd.s32 %s228, 1
      %p232 = scmp.eq.s32.totalorder %s26, 1
      %p233 = scmp.ne.s32.totalorder %s228, %s230
      %p234 = scmp.eq.s32.totalorder %s26, 0
      %p235 = por %p233, %p234
      %p236 = scmp.ne.s32.totalorder %s228, %s230
      %p237 = scmp.eq.s32.totalorder %s31, 1
      %p238 = por %p236, %p237
      %p239 = scmp.ne.s32.totalorder %s230, %s231
      %p240 = scmp.eq.s32.totalorder %s31, 0
      %p241 = por %p239, %p240
      %p242 = scmp.ne.s32.totalorder %s230, %s231
      %p243 = scmp.eq.s32.totalorder %s32, 1
      %p244 = por %p242, %p243
      %p246 = scmp.ne.s32.totalorder %s231, %s245
      %p247 = scmp.eq.s32.totalorder %s32, 0
      %p248 = por %p246, %p247
      %s250 = sadd.s32 %s249, 1
      %p253 = scmp.eq.s32.totalorder %s26, 1
      %p254 = scmp.ne.s32.totalorder %s249, %s251
      %p255 = scmp.eq.s32.totalorder %s26, 0
      %p256 = por %p254, %p255
      %p257 = scmp.ne.s32.totalorder %s249, %s251
      %p258 = scmp.eq.s32.totalorder %s31, 1
      %p259 = por %p257, %p258
      %p260 = scmp.ne.s32.totalorder %s251, %s252
      %p261 = scmp.eq.s32.totalorder %s31, 0
      %p262 = por %p260, %p261
      %p263 = scmp.ne.s32.totalorder %s251, %s252
      %p264 = scmp.eq.s32.totalorder %s32, 1
      %p265 = por %p263, %p264
      %p267 = scmp.ne.s32.totalorder %s252, %s266
      %p268 = scmp.eq.s32.totalorder %s32, 0
      %p269 = por %p267, %p268
      %s271 = sadd.s32 %s270, 1
      %p274 = scmp.eq.s32.totalorder %s26, 1
      %p275 = scmp.ne.s32.totalorder %s270, %s272
      %p276 = scmp.eq.s32.totalorder %s26, 0
      %p277 = por %p275, %p276
      %p278 = scmp.ne.s32.totalorder %s270, %s272
      %p279 = scmp.eq.s32.totalorder %s31, 1
      %p280 = por %p278, %p279
      %p281 = scmp.ne.s32.totalorder %s272, %s273
      %p282 = scmp.eq.s32.totalorder %s31, 0
      %p283 = por %p281, %p282
      %p284 = scmp.ne.s32.totalorder %s272, %s273
      %p285 = scmp.eq.s32.totalorder %s32, 1
      %p286 = por %p284, %p285
      %p288 = scmp.ne.s32.totalorder %s273, %s287
      %p289 = scmp.eq.s32.totalorder %s32, 0
      %p290 = por %p288, %p289
      %s292 = sadd.s32 %s291, 1
      %p295 = scmp.eq.s32.totalorder %s26, 1
      %p296 = scmp.ne.s32.totalorder %s291, %s293
      %p297 = scmp.eq.s32.totalorder %s26, 0
      %p298 = por %p296, %p297
      %p299 = scmp.ne.s32.totalorder %s291, %s293
      %p300 = scmp.eq.s32.totalorder %s31, 1
      %p301 = por %p299, %p300
      %p302 = scmp.ne.s32.totalorder %s293, %s294
      %p303 = scmp.eq.s32.totalorder %s31, 0
      %p304 = por %p302, %p303
      %p305 = scmp.ne.s32.totalorder %s293, %s294
      %p306 = scmp.eq.s32.totalorder %s32, 1
      %p307 = por %p305, %p306
      %p309 = scmp.ne.s32.totalorder %s294, %s308
      %p310 = scmp.eq.s32.totalorder %s32, 0
      %p311 = por %p309, %p310
      %s313 = sadd.s32 %s312, 1
      %p316 = scmp.eq.s32.totalorder %s26, 1
      %p317 = scmp.ne.s32.totalorder %s312, %s314
      %p318 = scmp.eq.s32.totalorder %s26, 0
      %p319 = por %p317, %p318
      %p320 = scmp.ne.s32.totalorder %s312, %s314
      %p321 = scmp.eq.s32.totalorder %s31, 1
      %p322 = por %p320, %p321
      %p323 = scmp.ne.s32.totalorder %s314, %s315
      %p324 = scmp.eq.s32.totalorder %s31, 0
      %p325 = por %p323, %p324
      %p326 = scmp.ne.s32.totalorder %s314, %s315
      %p327 = scmp.eq.s32.totalorder %s32, 1
      %p328 = por %p326, %p327
      %p330 = scmp.ne.s32.totalorder %s315, %s329
      %p331 = scmp.eq.s32.totalorder %s32, 0
      %p332 = por %p330, %p331
      %s334 = sadd.s32 %s333, 1
      %p337 = scmp.eq.s32.totalorder %s26, 1
      %p338 = scmp.ne.s32.totalorder %s333, %s335
      %p339 = scmp.eq.s32.totalorder %s26, 0
      %p340 = por %p338, %p339
      %p341 = scmp.ne.s32.totalorder %s333, %s335
      %p342 = scmp.eq.s32.totalorder %s31, 1
      %p343 = por %p341, %p342
      %p344 = scmp.ne.s32.totalorder %s335, %s336
      %p345 = scmp.eq.s32.totalorder %s31, 0
      %p346 = por %p344, %p345
      %p347 = scmp.ne.s32.totalorder %s335, %s336
      %p348 = scmp.eq.s32.totalorder %s32, 1
      %p349 = por %p347, %p348
      %p351 = scmp.ne.s32.totalorder %s336, %s350
      %p352 = scmp.eq.s32.totalorder %s32, 0
      %p353 = por %p351, %p352
      %s355 = sadd.s32 %s354, 1
      %p358 = scmp.eq.s32.totalorder %s26, 1
      %p359 = scmp.ne.s32.totalorder %s354, %s356
      %p360 = scmp.eq.s32.totalorder %s26, 0
      %p361 = por %p359, %p360
      %p362 = scmp.ne.s32.totalorder %s354, %s356
      %p363 = scmp.eq.s32.totalorder %s31, 1
      %p364 = por %p362, %p363
      %p365 = scmp.ne.s32.totalorder %s356, %s357
      %p366 = scmp.eq.s32.totalorder %s31, 0
      %p367 = por %p365, %p366
      %p368 = scmp.ne.s32.totalorder %s356, %s357
      %p369 = scmp.eq.s32.totalorder %s32, 1
      %p370 = por %p368, %p369
      %p372 = scmp.ne.s32.totalorder %s357, %s371
      %p373 = scmp.eq.s32.totalorder %s32, 0
      %p374 = por %p372, %p373
      %s376 = sadd.s32 %s375, 1
      %p379 = scmp.eq.s32.totalorder %s26, 1
      %p380 = scmp.ne.s32.totalorder %s375, %s377
      %p381 = scmp.eq.s32.totalorder %s26, 0
      %p382 = por %p380, %p381
      %p383 = scmp.ne.s32.totalorder %s375, %s377
      %p384 = scmp.eq.s32.totalorder %s31, 1
      %p385 = por %p383, %p384
      %p386 = scmp.ne.s32.totalorder %s377, %s378
      %p387 = scmp.eq.s32.totalorder %s31, 0
      %p388 = por %p386, %p387
      %p389 = scmp.ne.s32.totalorder %s377, %s378
      %p390 = scmp.eq.s32.totalorder %s32, 1
      %p391 = por %p389, %p390
      %p393 = scmp.ne.s32.totalorder %s378, %s392
      %p394 = scmp.eq.s32.totalorder %s32, 0
      %p395 = por %p393, %p394
      %s396 = ssub.s32 %s26, %s33
      %p397 = scmp.eq.s32.totalorder %s396, 0
      %s399 = sadd.s32 %s398, 1
      %s400 = scalar_select %p397, %s398, %s399
      %p403 = pneg %p397
      %p404 = scmp.eq.s32.totalorder %s26, 1
      %p405 = por %p403, %p404
      %p406 = scmp.ne.s32.totalorder %s398, %s401
      %p407 = scmp.eq.s32.totalorder %s26, 0
      %p408 = por %p406, %p407
      %p409 = scmp.ne.s32.totalorder %s398, %s401
      %p410 = scmp.eq.s32.totalorder %s31, 1
      %p411 = por %p409, %p410
      %p412 = scmp.ne.s32.totalorder %s401, %s402
      %p413 = scmp.eq.s32.totalorder %s31, 0
      %p414 = por %p412, %p413
      %p415 = scmp.ne.s32.totalorder %s401, %s402
      %p416 = scmp.eq.s32.totalorder %s32, 1
      %p417 = por %p415, %p416
      %p419 = scmp.ne.s32.totalorder %s402, %s418
      %p420 = scmp.eq.s32.totalorder %s32, 0
      %p421 = por %p419, %p420
      %p422 = scmp.le.s32.totalorder 1, %s26
      %p423 = scmp.lt.s32.totalorder %s26, 3
      %p424 = pnand %p422, %p423
      %p425 = pneg %p424
      // Predicated region
      $region9: #{tpu_custom_call.1} parent=5 // pred_check
        _
      $region10: #{tpu_custom_call.1} parent=5 // pred_check_branch
        %427 = sbr.rel (%p424) target = $region12
      $region11: #{tpu_custom_call.1} parent=5 // pred_region
        %s428 = ssub.s32 %s26, 1
        // Predicated region
        $region13: #{tpu_custom_call.1} parent=11 // pred_check
          %p429 = pneg %p73
        $region14: #{tpu_custom_call.1} parent=11 // pred_check_branch
          %431 = sbr.rel (%p429) target = $region16
        $region15: #{tpu_custom_call.1} parent=11 // pred_region
          _
        $region16: #{tpu_custom_call.1} parent=11 // pred_fallthru
          _
        // Predicated region
        $region17: #{tpu_custom_call.1} parent=11 // pred_check
          %p432 = pneg %p94
        $region18: #{tpu_custom_call.1} parent=11 // pred_check_branch
          %434 = sbr.rel (%p432) target = $region20
        $region19: #{tpu_custom_call.1} parent=11 // pred_region
          _
        $region20: #{tpu_custom_call.1} parent=11 // pred_fallthru
          _
        // Predicated region
        $region21: #{tpu_custom_call.1} parent=11 // pred_check
          %p435 = pneg %p115
        $region22: #{tpu_custom_call.1} parent=11 // pred_check_branch
          %437 = sbr.rel (%p435) target = $region24
        $region23: #{tpu_custom_call.1} parent=11 // pred_region
          _
        $region24: #{tpu_custom_call.1} parent=11 // pred_fallthru
          _
        // Predicated region
        $region25: #{tpu_custom_call.1} parent=11 // pred_check
          %p438 = pneg %p136
        $region26: #{tpu_custom_call.1} parent=11 // pred_check_branch
          %440 = sbr.rel (%p438) target = $region28
        $region27: #{tpu_custom_call.1} parent=11 // pred_region
          _
        $region28: #{tpu_custom_call.1} parent=11 // pred_fallthru
          _
        // Predicated region
        $region29: #{tpu_custom_call.1} parent=11 // pred_check
          %p441 = pneg %p157
        $region30: #{tpu_custom_call.1} parent=11 // pred_check_branch
          %443 = sbr.rel (%p441) target = $region32
        $region31: #{tpu_custom_call.1} parent=11 // pred_region
          _
        $region32: #{tpu_custom_call.1} parent=11 // pred_fallthru
          _
        // Predicated region
        $region33: #{tpu_custom_call.1} parent=11 // pred_check
          %p444 = pneg %p178
        $region34: #{tpu_custom_call.1} parent=11 // pred_check_branch
          %446 = sbr.rel (%p444) target = $region36
        $region35: #{tpu_custom_call.1} parent=11 // pred_region
          _
        $region36: #{tpu_custom_call.1} parent=11 // pred_fallthru
          _
        // Predicated region
        $region37: #{tpu_custom_call.1} parent=11 // pred_check
          %p447 = pneg %p199
        $region38: #{tpu_custom_call.1} parent=11 // pred_check_branch
          %449 = sbr.rel (%p447) target = $region40
        $region39: #{tpu_custom_call.1} parent=11 // pred_region
          _
        $region40: #{tpu_custom_call.1} parent=11 // pred_fallthru
          _
        // Predicated region
        $region41: #{tpu_custom_call.1} parent=11 // pred_check
          %p450 = pneg %p220
        $region42: #{tpu_custom_call.1} parent=11 // pred_check_branch
          %452 = sbr.rel (%p450) target = $region44
        $region43: #{tpu_custom_call.1} parent=11 // pred_region
          _
        $region44: #{tpu_custom_call.1} parent=11 // pred_fallthru
          _
        // Predicated region
        $region45: #{tpu_custom_call.1} parent=11 // pred_check
          %p453 = pneg %p241
        $region46: #{tpu_custom_call.1} parent=11 // pred_check_branch
          %455 = sbr.rel (%p453) target = $region48
        $region47: #{tpu_custom_call.1} parent=11 // pred_region
          _
        $region48: #{tpu_custom_call.1} parent=11 // pred_fallthru
          _
        // Predicated region
        $region49: #{tpu_custom_call.1} parent=11 // pred_check
          %p456 = pneg %p262
        $region50: #{tpu_custom_call.1} parent=11 // pred_check_branch
          %458 = sbr.rel (%p456) target = $region52
        $region51: #{tpu_custom_call.1} parent=11 // pred_region
          _
        $region52: #{tpu_custom_call.1} parent=11 // pred_fallthru
          _
        // Predicated region
        $region53: #{tpu_custom_call.1} parent=11 // pred_check
          %p459 = pneg %p283
        $region54: #{tpu_custom_call.1} parent=11 // pred_check_branch
          %461 = sbr.rel (%p459) target = $region56
        $region55: #{tpu_custom_call.1} parent=11 // pred_region
          _
        $region56: #{tpu_custom_call.1} parent=11 // pred_fallthru
          _
        // Predicated region
        $region57: #{tpu_custom_call.1} parent=11 // pred_check
          %p462 = pneg %p304
        $region58: #{tpu_custom_call.1} parent=11 // pred_check_branch
          %464 = sbr.rel (%p462) target = $region60
        $region59: #{tpu_custom_call.1} parent=11 // pred_region
          _
        $region60: #{tpu_custom_call.1} parent=11 // pred_fallthru
          _
        // Predicated region
        $region61: #{tpu_custom_call.1} parent=11 // pred_check
          %p465 = pneg %p325
        $region62: #{tpu_custom_call.1} parent=11 // pred_check_branch
          %467 = sbr.rel (%p465) target = $region64
        $region63: #{tpu_custom_call.1} parent=11 // pred_region
          _
        $region64: #{tpu_custom_call.1} parent=11 // pred_fallthru
          _
        // Predicated region
        $region65: #{tpu_custom_call.1} parent=11 // pred_check
          %p468 = pneg %p346
        $region66: #{tpu_custom_call.1} parent=11 // pred_check_branch
          %470 = sbr.rel (%p468) target = $region68
        $region67: #{tpu_custom_call.1} parent=11 // pred_region
          _
        $region68: #{tpu_custom_call.1} parent=11 // pred_fallthru
          _
        // Predicated region
        $region69: #{tpu_custom_call.1} parent=11 // pred_check
          %p471 = pneg %p367
        $region70: #{tpu_custom_call.1} parent=11 // pred_check_branch
          %473 = sbr.rel (%p471) target = $region72
        $region71: #{tpu_custom_call.1} parent=11 // pred_region
          _
        $region72: #{tpu_custom_call.1} parent=11 // pred_fallthru
          _
        // Predicated region
        $region73: #{tpu_custom_call.1} parent=11 // pred_check
          %p474 = pneg %p388
        $region74: #{tpu_custom_call.1} parent=11 // pred_check_branch
          %476 = sbr.rel (%p474) target = $region76
        $region75: #{tpu_custom_call.1} parent=11 // pred_region
          _
        $region76: #{tpu_custom_call.1} parent=11 // pred_fallthru
          _
      $region12: #{tpu_custom_call.1} parent=5 // pred_fallthru
        _
      %p477 = scmp.lt.s32.totalorder %s26, 2
      // Predicated region
      $region77: #{tpu_custom_call.1} parent=5 // pred_check
        %p478 = pneg %p477
      $region78: #{tpu_custom_call.1} parent=5 // pred_check_branch
        %480 = sbr.rel (%p478) target = $region80
      $region79: #{tpu_custom_call.1} parent=5 // pred_region
        // Predicated region
        $region81: #{tpu_custom_call.1} parent=79 // pred_check
          %p481 = pneg %p46
        $region82: #{tpu_custom_call.1} parent=79 // pred_check_branch
          %483 = sbr.rel (%p481) target = $region84
        $region83: #{tpu_custom_call.1} parent=79 // pred_region
          %p484 = scmp.lt.s32.totalorder %s26, 1
          %s485 = scalar_select %p484, %s26, 1
          %s486 = smul.addr %s485, 4
          %s487 = scalar_lea.vmem %s0, %s486
        $region84: #{tpu_custom_call.1} parent=79 // pred_fallthru
          _
      $region80: #{tpu_custom_call.1} parent=5 // pred_fallthru
        _
      %p488 = scmp.le.s32.totalorder 1, %s26
      %p489 = scmp.lt.s32.totalorder %s26, 3
      %p490 = pnand %p488, %p489
      %p491 = pneg %p490
      // Predicated region
      $region85: #{tpu_custom_call.1} parent=5 // pred_check
        _
      $region86: #{tpu_custom_call.1} parent=5 // pred_check_branch
        %493 = sbr.rel (%p490) target = $region88
      $region87: #{tpu_custom_call.1} parent=5 // pred_region
        %s494 = ssub.s32 %s26, 1
        %p495 = scmp.lt.s32.totalorder %s31, 1
        %s496 = scalar_select %p495, %s31, 1
        %s497 = smul.addr %s496, 4
        %s498 = scalar_lea.vmem %s0, %s497
        %p499 = pneg %p52
        %p500 = pneg %p49
        %p501 = pneg %p73
        %p502 = pneg %p70
        %p503 = pneg %p94
        %p504 = pneg %p91
        %p505 = pneg %p115
        %p506 = pneg %p112
        %p507 = pneg %p136
        %p508 = pneg %p133
        %p509 = pneg %p157
        %p510 = pneg %p154
        %p511 = pneg %p178
        %p512 = pneg %p175
        %p513 = pneg %p199
        %p514 = pneg %p196
        %p515 = pneg %p220
        %p516 = pneg %p217
        %p517 = pneg %p241
        %p518 = pneg %p238
        %p519 = pneg %p262
        %p520 = pneg %p259
        %p521 = pneg %p283
        %p522 = pneg %p280
        %p523 = pneg %p304
        %p524 = pneg %p301
        %p525 = pneg %p325
        %p526 = pneg %p322
        %p527 = pneg %p346
        %p528 = pneg %p343
        %p529 = pneg %p367
        %p530 = pneg %p364
        %p531 = pneg %p388
        %p532 = pneg %p385
        %p533 = pneg %p414
        %p534 = pneg %p411
        %s535 = sand.u32 %s401, 1
        %s536 = scalar_lea.sflag [#allocation3], %s535
        %s537 = sand.u32 %s401, 1
        %s538 = smul.addr %s537, 4
        %s539 = scalar_lea.vmem [#allocation2], %s538
        %p540 = scmp.lt.s32.totalorder %s31, 1
        %s541 = scalar_select %p540, %s31, 1
        %s542 = smul.addr %s541, 4
        %s543 = scalar_lea.vmem %s0, %s542
        %v545 = vld [vmem:[%s543] sm:$0xf]
        %v546 = vld [vmem:[%s1] sm:$0xf]
        %v547 = vld [vmem:[%s1 + $0x4] sm:$0xf]
        %v548 = vld [vmem:[%s1 + $0x8] sm:$0xf]
        %v549 = vld [vmem:[%s1 + $0xc] sm:$0xf]
        %v550 = vld [vmem:[%s1 + $0x10] sm:$0xf]
        %v551 = vld [vmem:[%s1 + $0x14] sm:$0xf]
        %v552 = vld [vmem:[%s1 + $0x18] sm:$0xf]
        %v553 = vld [vmem:[%s1 + $0x1c] sm:$0xf]
        %v554 = vld [vmem:[%s1 + $0x20] sm:$0xf]
        %v555 = vld [vmem:[%s1 + $0x24] sm:$0xf]
        %v556 = vld [vmem:[%s1 + $0x28] sm:$0xf]
        %v557 = vld [vmem:[%s1 + $0x2c] sm:$0xf]
        %v558 = vld [vmem:[%s1 + $0x30] sm:$0xf]
        %v559 = vld [vmem:[%s1 + $0x34] sm:$0xf]
        %v560 = vld [vmem:[%s1 + $0x38] sm:$0xf]
        %v561 = vld [vmem:[%s1 + $0x3c] sm:$0xf]
        %v562 = vld [vmem:[%s1 + $0x40] sm:$0xf]
        %v563 = vld [vmem:[%s1 + $0x44] sm:$0xf]
        %v564 = vld [vmem:[%s1 + $0x48] sm:$0xf]
        %v565 = vld [vmem:[%s1 + $0x4c] sm:$0xf]
        %v566 = vld [vmem:[%s1 + $0x50] sm:$0xf]
        %v567 = vld [vmem:[%s1 + $0x54] sm:$0xf]
        %v568 = vld [vmem:[%s1 + $0x58] sm:$0xf]
        %v569 = vld [vmem:[%s1 + $0x5c] sm:$0xf]
        %v570 = vld [vmem:[%s1 + $0x60] sm:$0xf]
        %v571 = vld [vmem:[%s1 + $0x64] sm:$0xf]
        %v572 = vld [vmem:[%s1 + $0x68] sm:$0xf]
        %v573 = vld [vmem:[%s1 + $0x6c] sm:$0xf]
        %v574 = vld [vmem:[%s1 + $0x70] sm:$0xf]
        %v575 = vld [vmem:[%s1 + $0x74] sm:$0xf]
        %v576 = vld [vmem:[%s1 + $0x78] sm:$0xf]
        %v577 = vld [vmem:[%s1 + $0x7c] sm:$0xf]
        %v578 = vld [vmem:[%s1 + $0x80] sm:$0xf]
        %v579 = vld [vmem:[%s1 + $0x84] sm:$0xf]
        %v580 = vld [vmem:[%s1 + $0x88] sm:$0xf]
        %v581 = vld [vmem:[%s1 + $0x8c] sm:$0xf]
        %v582 = vld [vmem:[%s1 + $0x90] sm:$0xf]
        %v583 = vld [vmem:[%s1 + $0x94] sm:$0xf]
        %v584 = vld [vmem:[%s1 + $0x98] sm:$0xf]
        %v585 = vld [vmem:[%s1 + $0x9c] sm:$0xf]
        %v586 = vld [vmem:[%s1 + $0xa0] sm:$0xf]
        %v587 = vld [vmem:[%s1 + $0xa4] sm:$0xf]
        %v588 = vld [vmem:[%s1 + $0xa8] sm:$0xf]
        %v589 = vld [vmem:[%s1 + $0xac] sm:$0xf]
        %v590 = vld [vmem:[%s1 + $0xb0] sm:$0xf]
        %v591 = vld [vmem:[%s1 + $0xb4] sm:$0xf]
        %v592 = vld [vmem:[%s1 + $0xb8] sm:$0xf]
        %v593 = vld [vmem:[%s1 + $0xbc] sm:$0xf]
        %v594 = vld [vmem:[%s1 + $0xc0] sm:$0xf]
        %v595 = vld [vmem:[%s1 + $0xc4] sm:$0xf]
        %v596 = vld [vmem:[%s1 + $0xc8] sm:$0xf]
        %v597 = vld [vmem:[%s1 + $0xcc] sm:$0xf]
        %v598 = vld [vmem:[%s1 + $0xd0] sm:$0xf]
        %v599 = vld [vmem:[%s1 + $0xd4] sm:$0xf]
        %v600 = vld [vmem:[%s1 + $0xd8] sm:$0xf]
        %v601 = vld [vmem:[%s1 + $0xdc] sm:$0xf]
        %v602 = vld [vmem:[%s1 + $0xe0] sm:$0xf]
        %v603 = vld [vmem:[%s1 + $0xe4] sm:$0xf]
        %v604 = vld [vmem:[%s1 + $0xe8] sm:$0xf]
        %v605 = vld [vmem:[%s1 + $0xec] sm:$0xf]
        %v606 = vld [vmem:[%s1 + $0xf0] sm:$0xf]
        %v607 = vld [vmem:[%s1 + $0xf4] sm:$0xf]
        %v608 = vld [vmem:[%s1 + $0xf8] sm:$0xf]
        %v609 = vld [vmem:[%s1 + $0xfc] sm:$0xf]
        %v610 = vld [vmem:[%s2] sm:$0x1]
        %v611 = vld [vmem:[%s2 + $0x1] sm:$0x1]
        %v612 = vld [vmem:[%s2 + $0x2] sm:$0x1]
        %v613 = vld [vmem:[%s2 + $0x3] sm:$0x1]
        %v614 = vunpack.c.l.bf16 %v610
        %v615 = vunpack.c.l.bf16 %v611
        %v616 = vunpack.c.l.bf16 %v612
        %v617 = vunpack.c.l.bf16 %v613
        %v618 = vlaneseq
        %v619 = vshrl.u32 %v618, 7
        %v620 = vsub.s32 0, %v619
        %v621 = vrot.slane %v614, %v620
        %v622 = vlaneseq
        %v623 = vshrl.u32 %v622, 7
        %v624 = vsub.s32 0, %v623
        %v625 = vrot.slane %v615, %v624
        %v626 = vlaneseq
        %v627 = vshrl.u32 %v626, 7
        %v628 = vsub.s32 0, %v627
        %v629 = vrot.slane %v616, %v628
        %v630 = vlaneseq
        %v631 = vshrl.u32 %v630, 7
        %v632 = vsub.s32 0, %v631
        %v633 = vrot.slane %v617, %v632
        %v650 = vunpack.c.l.b16 %v546
        %v651 = vunpack.c.l.b16 %v547
        %v652 = vunpack.c.l.b16 %v548
        %v653 = vunpack.c.l.b16 %v549
        %v654 = vunpack.c.l.b16 %v550
        %v655 = vunpack.c.l.b16 %v551
        %v656 = vunpack.c.l.b16 %v552
        %v657 = vunpack.c.l.b16 %v553
        %v658 = vunpack.c.l.b16 %v554
        %v659 = vunpack.c.l.b16 %v555
        %v660 = vunpack.c.l.b16 %v556
        %v661 = vunpack.c.l.b16 %v557
        %v662 = vunpack.c.l.b16 %v558
        %v663 = vunpack.c.l.b16 %v559
        %v664 = vunpack.c.l.b16 %v560
        %v665 = vunpack.c.l.b16 %v561
        %v666 = vpack.c.b16 %v651, %v650
        %v667 = vpack.c.b16 %v653, %v652
        %v668 = vpack.c.b16 %v655, %v654
        %v669 = vpack.c.b16 %v657, %v656
        %v670 = vpack.c.b16 %v659, %v658
        %v671 = vpack.c.b16 %v661, %v660
        %v672 = vpack.c.b16 %v663, %v662
        %v673 = vpack.c.b16 %v665, %v664
        %682 = vmatprep.subr.bf16.mxu0 0
        %683 = vmatpush1.bf16.msra.mxu0 %v666
        %684 = vmatprep.subr.bf16.mxu0 0
        %685 = vmatpush1.bf16.msra.mxu0 %v667
        %686 = vmatprep.subr.bf16.mxu0 0
        %687 = vmatpush1.bf16.msra.mxu0 %v668
        %688 = vmatprep.subr.bf16.mxu0 0
        %689 = vmatpush1.bf16.msra.mxu0 %v669
        %690 = vmatprep.subr.bf16.mxu0 0
        %691 = vmatpush1.bf16.msra.mxu0 %v670
        %692 = vmatprep.subr.bf16.mxu0 0
        %693 = vmatpush1.bf16.msra.mxu0 %v671
        %694 = vmatprep.subr.bf16.mxu0 0
        %695 = vmatpush1.bf16.msra.mxu0 %v672
        %696 = vmatprep.subr.bf16.mxu0 0
        %697 = vmatpush1.bf16.msra.mxu0 %v673
        %698 = vmatprep.subr.bf16.mxu0 0
        %699 = vmatpush1.bf16.msra.mxu0 0
        %700 = vmatprep.subr.bf16.mxu0 0
        %701 = vmatpush1.bf16.msra.mxu0 0
        %702 = vmatprep.subr.bf16.mxu0 0
        %703 = vmatpush1.bf16.msra.mxu0 0
        %704 = vmatprep.subr.bf16.mxu0 0
        %705 = vmatpush1.bf16.msra.mxu0 0
        %706 = vmatprep.subr.bf16.mxu0 0
        %707 = vmatpush1.bf16.msra.mxu0 0
        %708 = vmatprep.subr.bf16.mxu0 0
        %709 = vmatpush1.bf16.msra.mxu0 0
        %710 = vmatprep.subr.bf16.mxu0 0
        %711 = vmatpush1.bf16.msra.mxu0 0
        %712 = vmatprep.subr.bf16.mxu0 0
        %713 = vmatpush1.bf16.msra.mxu0 0
        %714 = vmatprep.mubr.bf16.mxu0 0
        %715 = vmatmul.mubr.bf16.gmra.mrb[0].mxu0 %v545
        %v716 = vpop.f32.mrb[0].mxu0
        %v717 = vadd.f32 %v621, %v716
        %v718 = vpop.f32.mrb[0].mxu0
        %v719 = vpop.f32.mrb[0].mxu0
        %v720 = vpop.f32.mrb[0].mxu0
        %721 = vdwg.mxu0
        %v738 = vunpack.c.l.b16 %v562
        %v739 = vunpack.c.l.b16 %v563
        %v740 = vunpack.c.l.b16 %v564
        %v741 = vunpack.c.l.b16 %v565
        %v742 = vunpack.c.l.b16 %v566
        %v743 = vunpack.c.l.b16 %v567
        %v744 = vunpack.c.l.b16 %v568
        %v745 = vunpack.c.l.b16 %v569
        %v746 = vunpack.c.l.b16 %v570
        %v747 = vunpack.c.l.b16 %v571
        %v748 = vunpack.c.l.b16 %v572
        %v749 = vunpack.c.l.b16 %v573
        %v750 = vunpack.c.l.b16 %v574
        %v751 = vunpack.c.l.b16 %v575
        %v752 = vunpack.c.l.b16 %v576
        %v753 = vunpack.c.l.b16 %v577
        %v754 = vpack.c.b16 %v739, %v738
        %v755 = vpack.c.b16 %v741, %v740
        %v756 = vpack.c.b16 %v743, %v742
        %v757 = vpack.c.b16 %v745, %v744
        %v758 = vpack.c.b16 %v747, %v746
        %v759 = vpack.c.b16 %v749, %v748
        %v760 = vpack.c.b16 %v751, %v750
        %v761 = vpack.c.b16 %v753, %v752
        %770 = vmatprep.subr.bf16.mxu0 0
        %771 = vmatpush1.bf16.msra.mxu0 %v754
        %772 = vmatprep.subr.bf16.mxu0 0
        %773 = vmatpush1.bf16.msra.mxu0 %v755
        %774 = vmatprep.subr.bf16.mxu0 0
        %775 = vmatpush1.bf16.msra.mxu0 %v756
        %776 = vmatprep.subr.bf16.mxu0 0
        %777 = vmatpush1.bf16.msra.mxu0 %v757
        %778 = vmatprep.subr.bf16.mxu0 0
        %779 = vmatpush1.bf16.msra.mxu0 %v758
        %780 = vmatprep.subr.bf16.mxu0 0
        %781 = vmatpush1.bf16.msra.mxu0 %v759
        %782 = vmatprep.subr.bf16.mxu0 0
        %783 = vmatpush1.bf16.msra.mxu0 %v760
        %784 = vmatprep.subr.bf16.mxu0 0
        %785 = vmatpush1.bf16.msra.mxu0 %v761
        %786 = vmatprep.subr.bf16.mxu0 0
        %787 = vmatpush1.bf16.msra.mxu0 0
        %788 = vmatprep.subr.bf16.mxu0 0
        %789 = vmatpush1.bf16.msra.mxu0 0
        %790 = vmatprep.subr.bf16.mxu0 0
        %791 = vmatpush1.bf16.msra.mxu0 0
        %792 = vmatprep.subr.bf16.mxu0 0
        %793 = vmatpush1.bf16.msra.mxu0 0
        %794 = vmatprep.subr.bf16.mxu0 0
        %795 = vmatpush1.bf16.msra.mxu0 0
        %796 = vmatprep.subr.bf16.mxu0 0
        %797 = vmatpush1.bf16.msra.mxu0 0
        %798 = vmatprep.subr.bf16.mxu0 0
        %799 = vmatpush1.bf16.msra.mxu0 0
        %800 = vmatprep.subr.bf16.mxu0 0
        %801 = vmatpush1.bf16.msra.mxu0 0
        %802 = vmatprep.mubr.bf16.mxu0 0
        %803 = vmatmul.mubr.bf16.gmra.mrb[0].mxu0 %v545
        %v804 = vpop.f32.mrb[0].mxu0
        %v805 = vadd.f32 %v625, %v804
        %v806 = vpop.f32.mrb[0].mxu0
        %v807 = vpop.f32.mrb[0].mxu0
        %v808 = vpop.f32.mrb[0].mxu0
        %809 = vdwg.mxu0
        %v826 = vunpack.c.l.b16 %v578
        %v827 = vunpack.c.l.b16 %v579
        %v828 = vunpack.c.l.b16 %v580
        %v829 = vunpack.c.l.b16 %v581
        %v830 = vunpack.c.l.b16 %v582
        %v831 = vunpack.c.l.b16 %v583
        %v832 = vunpack.c.l.b16 %v584
        %v833 = vunpack.c.l.b16 %v585
        %v834 = vunpack.c.l.b16 %v586
        %v835 = vunpack.c.l.b16 %v587
        %v836 = vunpack.c.l.b16 %v588
        %v837 = vunpack.c.l.b16 %v589
        %v838 = vunpack.c.l.b16 %v590
        %v839 = vunpack.c.l.b16 %v591
        %v840 = vunpack.c.l.b16 %v592
        %v841 = vunpack.c.l.b16 %v593
        %v842 = vpack.c.b16 %v827, %v826
        %v843 = vpack.c.b16 %v829, %v828
        %v844 = vpack.c.b16 %v831, %v830
        %v845 = vpack.c.b16 %v833, %v832
        %v846 = vpack.c.b16 %v835, %v834
        %v847 = vpack.c.b16 %v837, %v836
        %v848 = vpack.c.b16 %v839, %v838
        %v849 = vpack.c.b16 %v841, %v840
        %858 = vmatprep.subr.bf16.mxu0 0
        %859 = vmatpush1.bf16.msra.mxu0 %v842
        %860 = vmatprep.subr.bf16.mxu0 0
        %861 = vmatpush1.bf16.msra.mxu0 %v843
        %862 = vmatprep.subr.bf16.mxu0 0
        %863 = vmatpush1.bf16.msra.mxu0 %v844
        %864 = vmatprep.subr.bf16.mxu0 0
        %865 = vmatpush1.bf16.msra.mxu0 %v845
        %866 = vmatprep.subr.bf16.mxu0 0
        %867 = vmatpush1.bf16.msra.mxu0 %v846
        %868 = vmatprep.subr.bf16.mxu0 0
        %869 = vmatpush1.bf16.msra.mxu0 %v847
        %870 = vmatprep.subr.bf16.mxu0 0
        %871 = vmatpush1.bf16.msra.mxu0 %v848
        %872 = vmatprep.subr.bf16.mxu0 0
        %873 = vmatpush1.bf16.msra.mxu0 %v849
        %874 = vmatprep.subr.bf16.mxu0 0
        %875 = vmatpush1.bf16.msra.mxu0 0
        %876 = vmatprep.subr.bf16.mxu0 0
        %877 = vmatpush1.bf16.msra.mxu0 0
        %878 = vmatprep.subr.bf16.mxu0 0
        %879 = vmatpush1.bf16.msra.mxu0 0
        %880 = vmatprep.subr.bf16.mxu0 0
        %881 = vmatpush1.bf16.msra.mxu0 0
        %882 = vmatprep.subr.bf16.mxu0 0
        %883 = vmatpush1.bf16.msra.mxu0 0
        %884 = vmatprep.subr.bf16.mxu0 0
        %885 = vmatpush1.bf16.msra.mxu0 0
        %886 = vmatprep.subr.bf16.mxu0 0
        %887 = vmatpush1.bf16.msra.mxu0 0
        %888 = vmatprep.subr.bf16.mxu0 0
        %889 = vmatpush1.bf16.msra.mxu0 0
        %890 = vmatprep.mubr.bf16.mxu0 0
        %891 = vmatmul.mubr.bf16.gmra.mrb[0].mxu0 %v545
        %v892 = vpop.f32.mrb[0].mxu0
        %v893 = vadd.f32 %v629, %v892
        %v894 = vpop.f32.mrb[0].mxu0
        %v895 = vpop.f32.mrb[0].mxu0
        %v896 = vpop.f32.mrb[0].mxu0
        %897 = vdwg.mxu0
        %v914 = vunpack.c.l.b16 %v594
        %v915 = vunpack.c.l.b16 %v595
        %v916 = vunpack.c.l.b16 %v596
        %v917 = vunpack.c.l.b16 %v597
        %v918 = vunpack.c.l.b16 %v598
        %v919 = vunpack.c.l.b16 %v599
        %v920 = vunpack.c.l.b16 %v600
        %v921 = vunpack.c.l.b16 %v601
        %v922 = vunpack.c.l.b16 %v602
        %v923 = vunpack.c.l.b16 %v603
        %v924 = vunpack.c.l.b16 %v604
        %v925 = vunpack.c.l.b16 %v605
        %v926 = vunpack.c.l.b16 %v606
        %v927 = vunpack.c.l.b16 %v607
        %v928 = vunpack.c.l.b16 %v608
        %v929 = vunpack.c.l.b16 %v609
        %v930 = vpack.c.b16 %v915, %v914
        %v931 = vpack.c.b16 %v917, %v916
        %v932 = vpack.c.b16 %v919, %v918
        %v933 = vpack.c.b16 %v921, %v920
        %v934 = vpack.c.b16 %v923, %v922
        %v935 = vpack.c.b16 %v925, %v924
        %v936 = vpack.c.b16 %v927, %v926
        %v937 = vpack.c.b16 %v929, %v928
        %946 = vmatprep.subr.bf16.mxu0 0
        %947 = vmatpush1.bf16.msra.mxu0 %v930
        %948 = vmatprep.subr.bf16.mxu0 0
        %949 = vmatpush1.bf16.msra.mxu0 %v931
        %950 = vmatprep.subr.bf16.mxu0 0
        %951 = vmatpush1.bf16.msra.mxu0 %v932
        %952 = vmatprep.subr.bf16.mxu0 0
        %953 = vmatpush1.bf16.msra.mxu0 %v933
        %954 = vmatprep.subr.bf16.mxu0 0
        %955 = vmatpush1.bf16.msra.mxu0 %v934
        %956 = vmatprep.subr.bf16.mxu0 0
        %957 = vmatpush1.bf16.msra.mxu0 %v935
        %958 = vmatprep.subr.bf16.mxu0 0
        %959 = vmatpush1.bf16.msra.mxu0 %v936
        %960 = vmatprep.subr.bf16.mxu0 0
        %961 = vmatpush1.bf16.msra.mxu0 %v937
        %962 = vmatprep.subr.bf16.mxu0 0
        %963 = vmatpush1.bf16.msra.mxu0 0
        %964 = vmatprep.subr.bf16.mxu0 0
        %965 = vmatpush1.bf16.msra.mxu0 0
        %966 = vmatprep.subr.bf16.mxu0 0
        %967 = vmatpush1.bf16.msra.mxu0 0
        %968 = vmatprep.subr.bf16.mxu0 0
        %969 = vmatpush1.bf16.msra.mxu0 0
        %970 = vmatprep.subr.bf16.mxu0 0
        %971 = vmatpush1.bf16.msra.mxu0 0
        %972 = vmatprep.subr.bf16.mxu0 0
        %973 = vmatpush1.bf16.msra.mxu0 0
        %974 = vmatprep.subr.bf16.mxu0 0
        %975 = vmatpush1.bf16.msra.mxu0 0
        %976 = vmatprep.subr.bf16.mxu0 0
        %977 = vmatpush1.bf16.msra.mxu0 0
        %978 = vmatprep.mubr.bf16.mxu0 0
        %979 = vmatmul.mubr.bf16.gmra.mrb[0].mxu0 %v545
        %v980 = vpop.f32.mrb[0].mxu0
        %v981 = vadd.f32 %v633, %v980
        %v982 = vpop.f32.mrb[0].mxu0
        %v983 = vpop.f32.mrb[0].mxu0
        %v984 = vpop.f32.mrb[0].mxu0
        %985 = vdwg.mxu0
        %v986 = vmul.f32 %v717, 0.17677669
        %v987 = vmul.f32 %v805, 0.17677669
        %v988 = vmul.f32 %v893, 0.17677669
        %v989 = vmul.f32 %v981, 0.17677669
        %v990 = vld [vmem:[%s3] sm:$0xf]
        %v991 = vld [vmem:[%s3 + $0x4] sm:$0xf]
        %v992 = vld [vmem:[%s3 + $0x8] sm:$0xf]
        %v993 = vld [vmem:[%s3 + $0xc] sm:$0xf]
        %v994 = vld [vmem:[%s3 + $0x10] sm:$0xf]
        %v995 = vld [vmem:[%s3 + $0x14] sm:$0xf]
        %v996 = vld [vmem:[%s3 + $0x18] sm:$0xf]
        %v997 = vld [vmem:[%s3 + $0x1c] sm:$0xf]
        %v998 = vld [vmem:[%s3 + $0x20] sm:$0xf]
        %v999 = vld [vmem:[%s3 + $0x24] sm:$0xf]
        %v1000 = vld [vmem:[%s3 + $0x28] sm:$0xf]
        %v1001 = vld [vmem:[%s3 + $0x2c] sm:$0xf]
        %v1002 = vld [vmem:[%s3 + $0x30] sm:$0xf]
        %v1003 = vld [vmem:[%s3 + $0x34] sm:$0xf]
        %v1004 = vld [vmem:[%s3 + $0x38] sm:$0xf]
        %v1005 = vld [vmem:[%s3 + $0x3c] sm:$0xf]
        %v1006 = vld [vmem:[%s3 + $0x40] sm:$0xf]
        %v1007 = vld [vmem:[%s3 + $0x44] sm:$0xf]
        %v1008 = vld [vmem:[%s3 + $0x48] sm:$0xf]
        %v1009 = vld [vmem:[%s3 + $0x4c] sm:$0xf]
        %v1010 = vld [vmem:[%s3 + $0x50] sm:$0xf]
        %v1011 = vld [vmem:[%s3 + $0x54] sm:$0xf]
        %v1012 = vld [vmem:[%s3 + $0x58] sm:$0xf]
        %v1013 = vld [vmem:[%s3 + $0x5c] sm:$0xf]
        %v1014 = vld [vmem:[%s3 + $0x60] sm:$0xf]
        %v1015 = vld [vmem:[%s3 + $0x64] sm:$0xf]
        %v1016 = vld [vmem:[%s3 + $0x68] sm:$0xf]
        %v1017 = vld [vmem:[%s3 + $0x6c] sm:$0xf]
        %v1018 = vld [vmem:[%s3 + $0x70] sm:$0xf]
        %v1019 = vld [vmem:[%s3 + $0x74] sm:$0xf]
        %v1020 = vld [vmem:[%s3 + $0x78] sm:$0xf]
        %v1021 = vld [vmem:[%s3 + $0x7c] sm:$0xf]
        %v1022 = vld [vmem:[%s3 + $0x80] sm:$0xf]
        %v1023 = vld [vmem:[%s3 + $0x84] sm:$0xf]
        %v1024 = vld [vmem:[%s3 + $0x88] sm:$0xf]
        %v1025 = vld [vmem:[%s3 + $0x8c] sm:$0xf]
        %v1026 = vld [vmem:[%s3 + $0x90] sm:$0xf]
        %v1027 = vld [vmem:[%s3 + $0x94] sm:$0xf]
        %v1028 = vld [vmem:[%s3 + $0x98] sm:$0xf]
        %v1029 = vld [vmem:[%s3 + $0x9c] sm:$0xf]
        %v1030 = vld [vmem:[%s3 + $0xa0] sm:$0xf]
        %v1031 = vld [vmem:[%s3 + $0xa4] sm:$0xf]
        %v1032 = vld [vmem:[%s3 + $0xa8] sm:$0xf]
        %v1033 = vld [vmem:[%s3 + $0xac] sm:$0xf]
        %v1034 = vld [vmem:[%s3 + $0xb0] sm:$0xf]
        %v1035 = vld [vmem:[%s3 + $0xb4] sm:$0xf]
        %v1036 = vld [vmem:[%s3 + $0xb8] sm:$0xf]
        %v1037 = vld [vmem:[%s3 + $0xbc] sm:$0xf]
        %v1038 = vld [vmem:[%s3 + $0xc0] sm:$0xf]
        %v1039 = vld [vmem:[%s3 + $0xc4] sm:$0xf]
        %v1040 = vld [vmem:[%s3 + $0xc8] sm:$0xf]
        %v1041 = vld [vmem:[%s3 + $0xcc] sm:$0xf]
        %v1042 = vld [vmem:[%s3 + $0xd0] sm:$0xf]
        %v1043 = vld [vmem:[%s3 + $0xd4] sm:$0xf]
        %v1044 = vld [vmem:[%s3 + $0xd8] sm:$0xf]
        %v1045 = vld [vmem:[%s3 + $0xdc] sm:$0xf]
        %v1046 = vld [vmem:[%s3 + $0xe0] sm:$0xf]
        %v1047 = vld [vmem:[%s3 + $0xe4] sm:$0xf]
        %v1048 = vld [vmem:[%s3 + $0xe8] sm:$0xf]
        %v1049 = vld [vmem:[%s3 + $0xec] sm:$0xf]
        %v1050 = vld [vmem:[%s3 + $0xf0] sm:$0xf]
        %v1051 = vld [vmem:[%s3 + $0xf4] sm:$0xf]
        %v1052 = vld [vmem:[%s3 + $0xf8] sm:$0xf]
        %v1053 = vld [vmem:[%s3 + $0xfc] sm:$0xf]
        %v1054 = vld [vmem:[%s4] sm:$0x1]
        %v1055 = vld [vmem:[%s4 + $0x1] sm:$0x1]
        %v1056 = vld [vmem:[%s4 + $0x2] sm:$0x1]
        %v1057 = vld [vmem:[%s4 + $0x3] sm:$0x1]
        %v1058 = vunpack.c.l.bf16 %v1054
        %v1059 = vunpack.c.l.bf16 %v1055
        %v1060 = vunpack.c.l.bf16 %v1056
        %v1061 = vunpack.c.l.bf16 %v1057
        %v1062 = vlaneseq
        %v1063 = vshrl.u32 %v1062, 7
        %v1064 = vsub.s32 0, %v1063
        %v1065 = vrot.slane %v1058, %v1064
        %v1066 = vlaneseq
        %v1067 = vshrl.u32 %v1066, 7
        %v1068 = vsub.s32 0, %v1067
        %v1069 = vrot.slane %v1059, %v1068
        %v1070 = vlaneseq
        %v1071 = vshrl.u32 %v1070, 7
        %v1072 = vsub.s32 0, %v1071
        %v1073 = vrot.slane %v1060, %v1072
        %v1074 = vlaneseq
        %v1075 = vshrl.u32 %v1074, 7
        %v1076 = vsub.s32 0, %v1075
        %v1077 = vrot.slane %v1061, %v1076
        %v1094 = vunpack.c.l.b16 %v990
        %v1095 = vunpack.c.l.b16 %v991
        %v1096 = vunpack.c.l.b16 %v992
        %v1097 = vunpack.c.l.b16 %v993
        %v1098 = vunpack.c.l.b16 %v994
        %v1099 = vunpack.c.l.b16 %v995
        %v1100 = vunpack.c.l.b16 %v996
        %v1101 = vunpack.c.l.b16 %v997
        %v1102 = vunpack.c.l.b16 %v998
        %v1103 = vunpack.c.l.b16 %v999
        %v1104 = vunpack.c.l.b16 %v1000
        %v1105 = vunpack.c.l.b16 %v1001
        %v1106 = vunpack.c.l.b16 %v1002
        %v1107 = vunpack.c.l.b16 %v1003
        %v1108 = vunpack.c.l.b16 %v1004
        %v1109 = vunpack.c.l.b16 %v1005
        %v1110 = vpack.c.b16 %v1095, %v1094
        %v1111 = vpack.c.b16 %v1097, %v1096
        %v1112 = vpack.c.b16 %v1099, %v1098
        %v1113 = vpack.c.b16 %v1101, %v1100
        %v1114 = vpack.c.b16 %v1103, %v1102
        %v1115 = vpack.c.b16 %v1105, %v1104
        %v1116 = vpack.c.b16 %v1107, %v1106
        %v1117 = vpack.c.b16 %v1109, %v1108
        %1126 = vmatprep.subr.bf16.mxu0 0
        %1127 = vmatpush1.bf16.msra.mxu0 %v1110
        %1128 = vmatprep.subr.bf16.mxu0 0
        %1129 = vmatpush1.bf16.msra.mxu0 %v1111
        %1130 = vmatprep.subr.bf16.mxu0 0
        %1131 = vmatpush1.bf16.msra.mxu0 %v1112
        %1132 = vmatprep.subr.bf16.mxu0 0
        %1133 = vmatpush1.bf16.msra.mxu0 %v1113
        %1134 = vmatprep.subr.bf16.mxu0 0
        %1135 = vmatpush1.bf16.msra.mxu0 %v1114
        %1136 = vmatprep.subr.bf16.mxu0 0
        %1137 = vmatpush1.bf16.msra.mxu0 %v1115
        %1138 = vmatprep.subr.bf16.mxu0 0
        %1139 = vmatpush1.bf16.msra.mxu0 %v1116
        %1140 = vmatprep.subr.bf16.mxu0 0
        %1141 = vmatpush1.bf16.msra.mxu0 %v1117
        %1142 = vmatprep.subr.bf16.mxu0 0
        %1143 = vmatpush1.bf16.msra.mxu0 0
        %1144 = vmatprep.subr.bf16.mxu0 0
        %1145 = vmatpush1.bf16.msra.mxu0 0
        %1146 = vmatprep.subr.bf16.mxu0 0
        %1147 = vmatpush1.bf16.msra.mxu0 0
        %1148 = vmatprep.subr.bf16.mxu0 0
        %1149 = vmatpush1.bf16.msra.mxu0 0
        %1150 = vmatprep.subr.bf16.mxu0 0
        %1151 = vmatpush1.bf16.msra.mxu0 0
        %1152 = vmatprep.subr.bf16.mxu0 0
        %1153 = vmatpush1.bf16.msra.mxu0 0
        %1154 = vmatprep.subr.bf16.mxu0 0
        %1155 = vmatpush1.bf16.msra.mxu0 0
        %1156 = vmatprep.subr.bf16.mxu0 0
        %1157 = vmatpush1.bf16.msra.mxu0 0
        %1158 = vmatprep.mubr.bf16.mxu0 0
        %1159 = vmatmul.mubr.bf16.gmra.mrb[0].mxu0 %v545
        %v1160 = vpop.f32.mrb[0].mxu0
        %v1161 = vadd.f32 %v1065, %v1160
        %v1162 = vpop.f32.mrb[0].mxu0
        %v1163 = vpop.f32.mrb[0].mxu0
        %v1164 = vpop.f32.mrb[0].mxu0
        %1165 = vdwg.mxu0
        %v1182 = vunpack.c.l.b16 %v1006
        %v1183 = vunpack.c.l.b16 %v1007
        %v1184 = vunpack.c.l.b16 %v1008
        %v1185 = vunpack.c.l.b16 %v1009
        %v1186 = vunpack.c.l.b16 %v1010
        %v1187 = vunpack.c.l.b16 %v1011
        %v1188 = vunpack.c.l.b16 %v1012
        %v1189 = vunpack.c.l.b16 %v1013
        %v1190 = vunpack.c.l.b16 %v1014
        %v1191 = vunpack.c.l.b16 %v1015
        %v1192 = vunpack.c.l.b16 %v1016
        %v1193 = vunpack.c.l.b16 %v1017
        %v1194 = vunpack.c.l.b16 %v1018
        %v1195 = vunpack.c.l.b16 %v1019
        %v1196 = vunpack.c.l.b16 %v1020
        %v1197 = vunpack.c.l.b16 %v1021
        %v1198 = vpack.c.b16 %v1183, %v1182
        %v1199 = vpack.c.b16 %v1185, %v1184
        %v1200 = vpack.c.b16 %v1187, %v1186
        %v1201 = vpack.c.b16 %v1189, %v1188
        %v1202 = vpack.c.b16 %v1191, %v1190
        %v1203 = vpack.c.b16 %v1193, %v1192
        %v1204 = vpack.c.b16 %v1195, %v1194
        %v1205 = vpack.c.b16 %v1197, %v1196
        %1214 = vmatprep.subr.bf16.mxu0 0
        %1215 = vmatpush1.bf16.msra.mxu0 %v1198
        %1216 = vmatprep.subr.bf16.mxu0 0
        %1217 = vmatpush1.bf16.msra.mxu0 %v1199
        %1218 = vmatprep.subr.bf16.mxu0 0
        %1219 = vmatpush1.bf16.msra.mxu0 %v1200
        %1220 = vmatprep.subr.bf16.mxu0 0
        %1221 = vmatpush1.bf16.msra.mxu0 %v1201
        %1222 = vmatprep.subr.bf16.mxu0 0
        %1223 = vmatpush1.bf16.msra.mxu0 %v1202
        %1224 = vmatprep.subr.bf16.mxu0 0
        %1225 = vmatpush1.bf16.msra.mxu0 %v1203
        %1226 = vmatprep.subr.bf16.mxu0 0
        %1227 = vmatpush1.bf16.msra.mxu0 %v1204
        %1228 = vmatprep.subr.bf16.mxu0 0
        %1229 = vmatpush1.bf16.msra.mxu0 %v1205
        %1230 = vmatprep.subr.bf16.mxu0 0
        %1231 = vmatpush1.bf16.msra.mxu0 0
        %1232 = vmatprep.subr.bf16.mxu0 0
        %1233 = vmatpush1.bf16.msra.mxu0 0
        %1234 = vmatprep.subr.bf16.mxu0 0
        %1235 = vmatpush1.bf16.msra.mxu0 0
        %1236 = vmatprep.subr.bf16.mxu0 0
        %1237 = vmatpush1.bf16.msra.mxu0 0
        %1238 = vmatprep.subr.bf16.mxu0 0
        %1239 = vmatpush1.bf16.msra.mxu0 0
        %1240 = vmatprep.subr.bf16.mxu0 0
        %1241 = vmatpush1.bf16.msra.mxu0 0
        %1242 = vmatprep.subr.bf16.mxu0 0
        %1243 = vmatpush1.bf16.msra.mxu0 0
        %1244 = vmatprep.subr.bf16.mxu0 0
        %1245 = vmatpush1.bf16.msra.mxu0 0
        %1246 = vmatprep.mubr.bf16.mxu0 0
        %1247 = vmatmul.mubr.bf16.gmra.mrb[0].mxu0 %v545
        %v1248 = vpop.f32.mrb[0].mxu0
        %v1249 = vadd.f32 %v1069, %v1248
        %v1250 = vpop.f32.mrb[0].mxu0
        %v1251 = vpop.f32.mrb[0].mxu0
        %v1252 = vpop.f32.mrb[0].mxu0
        %1253 = vdwg.mxu0
        %v1270 = vunpack.c.l.b16 %v1022
        %v1271 = vunpack.c.l.b16 %v1023
        %v1272 = vunpack.c.l.b16 %v1024
        %v1273 = vunpack.c.l.b16 %v1025
        %v1274 = vunpack.c.l.b16 %v1026
        %v1275 = vunpack.c.l.b16 %v1027
        %v1276 = vunpack.c.l.b16 %v1028
        %v1277 = vunpack.c.l.b16 %v1029
        %v1278 = vunpack.c.l.b16 %v1030
        %v1279 = vunpack.c.l.b16 %v1031
        %v1280 = vunpack.c.l.b16 %v1032
        %v1281 = vunpack.c.l.b16 %v1033
        %v1282 = vunpack.c.l.b16 %v1034
        %v1283 = vunpack.c.l.b16 %v1035
        %v1284 = vunpack.c.l.b16 %v1036
        %v1285 = vunpack.c.l.b16 %v1037
        %v1286 = vpack.c.b16 %v1271, %v1270
        %v1287 = vpack.c.b16 %v1273, %v1272
        %v1288 = vpack.c.b16 %v1275, %v1274
        %v1289 = vpack.c.b16 %v1277, %v1276
        %v1290 = vpack.c.b16 %v1279, %v1278
        %v1291 = vpack.c.b16 %v1281, %v1280
        %v1292 = vpack.c.b16 %v1283, %v1282
        %v1293 = vpack.c.b16 %v1285, %v1284
        %1302 = vmatprep.subr.bf16.mxu0 0
        %1303 = vmatpush1.bf16.msra.mxu0 %v1286
        %1304 = vmatprep.subr.bf16.mxu0 0
        %1305 = vmatpush1.bf16.msra.mxu0 %v1287
        %1306 = vmatprep.subr.bf16.mxu0 0
        %1307 = vmatpush1.bf16.msra.mxu0 %v1288
        %1308 = vmatprep.subr.bf16.mxu0 0
        %1309 = vmatpush1.bf16.msra.mxu0 %v1289
        %1310 = vmatprep.subr.bf16.mxu0 0
        %1311 = vmatpush1.bf16.msra.mxu0 %v1290
        %1312 = vmatprep.subr.bf16.mxu0 0
        %1313 = vmatpush1.bf16.msra.mxu0 %v1291
        %1314 = vmatprep.subr.bf16.mxu0 0
        %1315 = vmatpush1.bf16.msra.mxu0 %v1292
        %1316 = vmatprep.subr.bf16.mxu0 0
        %1317 = vmatpush1.bf16.msra.mxu0 %v1293
        %1318 = vmatprep.subr.bf16.mxu0 0
        %1319 = vmatpush1.bf16.msra.mxu0 0
        %1320 = vmatprep.subr.bf16.mxu0 0
        %1321 = vmatpush1.bf16.msra.mxu0 0
        %1322 = vmatprep.subr.bf16.mxu0 0
        %1323 = vmatpush1.bf16.msra.mxu0 0
        %1324 = vmatprep.subr.bf16.mxu0 0
        %1325 = vmatpush1.bf16.msra.mxu0 0
        %1326 = vmatprep.subr.bf16.mxu0 0
        %1327 = vmatpush1.bf16.msra.mxu0 0
        %1328 = vmatprep.subr.bf16.mxu0 0
        %1329 = vmatpush1.bf16.msra.mxu0 0
        %1330 = vmatprep.subr.bf16.mxu0 0
        %1331 = vmatpush1.bf16.msra.mxu0 0
        %1332 = vmatprep.subr.bf16.mxu0 0
        %1333 = vmatpush1.bf16.msra.mxu0 0
        %1334 = vmatprep.mubr.bf16.mxu0 0
        %1335 = vmatmul.mubr.bf16.gmra.mrb[0].mxu0 %v545
        %v1336 = vpop.f32.mrb[0].mxu0
        %v1337 = vadd.f32 %v1073, %v1336
        %v1338 = vpop.f32.mrb[0].mxu0
        %v1339 = vpop.f32.mrb[0].mxu0
        %v1340 = vpop.f32.mrb[0].mxu0
        %1341 = vdwg.mxu0
        %v1358 = vunpack.c.l.b16 %v1038
        %v1359 = vunpack.c.l.b16 %v1039
        %v1360 = vunpack.c.l.b16 %v1040
        %v1361 = vunpack.c.l.b16 %v1041
        %v1362 = vunpack.c.l.b16 %v1042
        %v1363 = vunpack.c.l.b16 %v1043
        %v1364 = vunpack.c.l.b16 %v1044
        %v1365 = vunpack.c.l.b16 %v1045
        %v1366 = vunpack.c.l.b16 %v1046
        %v1367 = vunpack.c.l.b16 %v1047
        %v1368 = vunpack.c.l.b16 %v1048
        %v1369 = vunpack.c.l.b16 %v1049
        %v1370 = vunpack.c.l.b16 %v1050
        %v1371 = vunpack.c.l.b16 %v1051
        %v1372 = vunpack.c.l.b16 %v1052
        %v1373 = vunpack.c.l.b16 %v1053
        %v1374 = vpack.c.b16 %v1359, %v1358
        %v1375 = vpack.c.b16 %v1361, %v1360
        %v1376 = vpack.c.b16 %v1363, %v1362
        %v1377 = vpack.c.b16 %v1365, %v1364
        %v1378 = vpack.c.b16 %v1367, %v1366
        %v1379 = vpack.c.b16 %v1369, %v1368
        %v1380 = vpack.c.b16 %v1371, %v1370
        %v1381 = vpack.c.b16 %v1373, %v1372
        %1390 = vmatprep.subr.bf16.mxu0 0
        %1391 = vmatpush1.bf16.msra.mxu0 %v1374
        %1392 = vmatprep.subr.bf16.mxu0 0
        %1393 = vmatpush1.bf16.msra.mxu0 %v1375
        %1394 = vmatprep.subr.bf16.mxu0 0
        %1395 = vmatpush1.bf16.msra.mxu0 %v1376
        %1396 = vmatprep.subr.bf16.mxu0 0
        %1397 = vmatpush1.bf16.msra.mxu0 %v1377
        %1398 = vmatprep.subr.bf16.mxu0 0
        %1399 = vmatpush1.bf16.msra.mxu0 %v1378
        %1400 = vmatprep.subr.bf16.mxu0 0
        %1401 = vmatpush1.bf16.msra.mxu0 %v1379
        %1402 = vmatprep.subr.bf16.mxu0 0
        %1403 = vmatpush1.bf16.msra.mxu0 %v1380
        %1404 = vmatprep.subr.bf16.mxu0 0
        %1405 = vmatpush1.bf16.msra.mxu0 %v1381
        %1406 = vmatprep.subr.bf16.mxu0 0
        %1407 = vmatpush1.bf16.msra.mxu0 0
        %1408 = vmatprep.subr.bf16.mxu0 0
        %1409 = vmatpush1.bf16.msra.mxu0 0
        %1410 = vmatprep.subr.bf16.mxu0 0
        %1411 = vmatpush1.bf16.msra.mxu0 0
        %1412 = vmatprep.subr.bf16.mxu0 0
        %1413 = vmatpush1.bf16.msra.mxu0 0
        %1414 = vmatprep.subr.bf16.mxu0 0
        %1415 = vmatpush1.bf16.msra.mxu0 0
        %1416 = vmatprep.subr.bf16.mxu0 0
        %1417 = vmatpush1.bf16.msra.mxu0 0
        %1418 = vmatprep.subr.bf16.mxu0 0
        %1419 = vmatpush1.bf16.msra.mxu0 0
        %1420 = vmatprep.subr.bf16.mxu0 0
        %1421 = vmatpush1.bf16.msra.mxu0 0
        %1422 = vmatprep.mubr.bf16.mxu0 0
        %1423 = vmatmul.mubr.bf16.gmra.mrb[0].mxu0 %v545
        %v1424 = vpop.f32.mrb[0].mxu0
        %v1425 = vadd.f32 %v1077, %v1424
        %v1426 = vpop.f32.mrb[0].mxu0
        %v1427 = vpop.f32.mrb[0].mxu0
        %v1428 = vpop.f32.mrb[0].mxu0
        %1429 = vdwg.mxu0
        %v1430 = vld [vmem:[%s5] sm:$0xf]
        %v1431 = vld [vmem:[%s5 + $0x4] sm:$0xf]
        %v1432 = vld [vmem:[%s5 + $0x8] sm:$0xf]
        %v1433 = vld [vmem:[%s5 + $0xc] sm:$0xf]
        %v1434 = vld [vmem:[%s5 + $0x10] sm:$0xf]
        %v1435 = vld [vmem:[%s5 + $0x14] sm:$0xf]
        %v1436 = vld [vmem:[%s5 + $0x18] sm:$0xf]
        %v1437 = vld [vmem:[%s5 + $0x1c] sm:$0xf]
        %v1438 = vld [vmem:[%s5 + $0x20] sm:$0xf]
        %v1439 = vld [vmem:[%s5 + $0x24] sm:$0xf]
        %v1440 = vld [vmem:[%s5 + $0x28] sm:$0xf]
        %v1441 = vld [vmem:[%s5 + $0x2c] sm:$0xf]
        %v1442 = vld [vmem:[%s5 + $0x30] sm:$0xf]
        %v1443 = vld [vmem:[%s5 + $0x34] sm:$0xf]
        %v1444 = vld [vmem:[%s5 + $0x38] sm:$0xf]
        %v1445 = vld [vmem:[%s5 + $0x3c] sm:$0xf]
        %v1446 = vld [vmem:[%s5 + $0x40] sm:$0xf]
        %v1447 = vld [vmem:[%s5 + $0x44] sm:$0xf]
        %v1448 = vld [vmem:[%s5 + $0x48] sm:$0xf]
        %v1449 = vld [vmem:[%s5 + $0x4c] sm:$0xf]
        %v1450 = vld [vmem:[%s5 + $0x50] sm:$0xf]
        %v1451 = vld [vmem:[%s5 + $0x54] sm:$0xf]
        %v1452 = vld [vmem:[%s5 + $0x58] sm:$0xf]
        %v1453 = vld [vmem:[%s5 + $0x5c] sm:$0xf]
        %v1454 = vld [vmem:[%s5 + $0x60] sm:$0xf]
        %v1455 = vld [vmem:[%s5 + $0x64] sm:$0xf]
        %v1456 = vld [vmem:[%s5 + $0x68] sm:$0xf]
        %v1457 = vld [vmem:[%s5 + $0x6c] sm:$0xf]
        %v1458 = vld [vmem:[%s5 + $0x70] sm:$0xf]
        %v1459 = vld [vmem:[%s5 + $0x74] sm:$0xf]
        %v1460 = vld [vmem:[%s5 + $0x78] sm:$0xf]
        %v1461 = vld [vmem:[%s5 + $0x7c] sm:$0xf]
        %v1462 = vld [vmem:[%s5 + $0x80] sm:$0xf]
        %v1463 = vld [vmem:[%s5 + $0x84] sm:$0xf]
        %v1464 = vld [vmem:[%s5 + $0x88] sm:$0xf]
        %v1465 = vld [vmem:[%s5 + $0x8c] sm:$0xf]
        %v1466 = vld [vmem:[%s5 + $0x90] sm:$0xf]
        %v1467 = vld [vmem:[%s5 + $0x94] sm:$0xf]
        %v1468 = vld [vmem:[%s5 + $0x98] sm:$0xf]
        %v1469 = vld [vmem:[%s5 + $0x9c] sm:$0xf]
        %v1470 = vld [vmem:[%s5 + $0xa0] sm:$0xf]
        %v1471 = vld [vmem:[%s5 + $0xa4] sm:$0xf]
        %v1472 = vld [vmem:[%s5 + $0xa8] sm:$0xf]
        %v1473 = vld [vmem:[%s5 + $0xac] sm:$0xf]
        %v1474 = vld [vmem:[%s5 + $0xb0] sm:$0xf]
        %v1475 = vld [vmem:[%s5 + $0xb4] sm:$0xf]
        %v1476 = vld [vmem:[%s5 + $0xb8] sm:$0xf]
        %v1477 = vld [vmem:[%s5 + $0xbc] sm:$0xf]
        %v1478 = vld [vmem:[%s5 + $0xc0] sm:$0xf]
        %v1479 = vld [vmem:[%s5 + $0xc4] sm:$0xf]
        %v1480 = vld [vmem:[%s5 + $0xc8] sm:$0xf]
        %v1481 = vld [vmem:[%s5 + $0xcc] sm:$0xf]
        %v1482 = vld [vmem:[%s5 + $0xd0] sm:$0xf]
        %v1483 = vld [vmem:[%s5 + $0xd4] sm:$0xf]
        %v1484 = vld [vmem:[%s5 + $0xd8] sm:$0xf]
        %v1485 = vld [vmem:[%s5 + $0xdc] sm:$0xf]
        %v1486 = vld [vmem:[%s5 + $0xe0] sm:$0xf]
        %v1487 = vld [vmem:[%s5 + $0xe4] sm:$0xf]
        %v1488 = vld [vmem:[%s5 + $0xe8] sm:$0xf]
        %v1489 = vld [vmem:[%s5 + $0xec] sm:$0xf]
        %v1490 = vld [vmem:[%s5 + $0xf0] sm:$0xf]
        %v1491 = vld [vmem:[%s5 + $0xf4] sm:$0xf]
        %v1492 = vld [vmem:[%s5 + $0xf8] sm:$0xf]
        %v1493 = vld [vmem:[%s5 + $0xfc] sm:$0xf]
        %v1494 = vld [vmem:[%s6] sm:$0x1]
        %v1495 = vld [vmem:[%s6 + $0x1] sm:$0x1]
        %v1496 = vld [vmem:[%s6 + $0x2] sm:$0x1]
        %v1497 = vld [vmem:[%s6 + $0x3] sm:$0x1]
        %v1498 = vunpack.c.l.bf16 %v1494
        %v1499 = vunpack.c.l.bf16 %v1495
        %v1500 = vunpack.c.l.bf16 %v1496
        %v1501 = vunpack.c.l.bf16 %v1497
        %v1502 = vlaneseq
        %v1503 = vshrl.u32 %v1502, 7
        %v1504 = vsub.s32 0, %v1503
        %v1505 = vrot.slane %v1498, %v1504
        %v1506 = vlaneseq
        %v1507 = vshrl.u32 %v1506, 7
        %v1508 = vsub.s32 0, %v1507
        %v1509 = vrot.slane %v1499, %v1508
        %v1510 = vlaneseq
        %v1511 = vshrl.u32 %v1510, 7
        %v1512 = vsub.s32 0, %v1511
        %v1513 = vrot.slane %v1500, %v1512
        %v1514 = vlaneseq
        %v1515 = vshrl.u32 %v1514, 7
        %v1516 = vsub.s32 0, %v1515
        %v1517 = vrot.slane %v1501, %v1516
        %v1534 = vunpack.c.l.b16 %v1430
        %v1535 = vunpack.c.l.b16 %v1431
        %v1536 = vunpack.c.l.b16 %v1432
        %v1537 = vunpack.c.l.b16 %v1433
        %v1538 = vunpack.c.l.b16 %v1434
        %v1539 = vunpack.c.l.b16 %v1435
        %v1540 = vunpack.c.l.b16 %v1436
        %v1541 = vunpack.c.l.b16 %v1437
        %v1542 = vunpack.c.l.b16 %v1438
        %v1543 = vunpack.c.l.b16 %v1439
        %v1544 = vunpack.c.l.b16 %v1440
        %v1545 = vunpack.c.l.b16 %v1441
        %v1546 = vunpack.c.l.b16 %v1442
        %v1547 = vunpack.c.l.b16 %v1443
        %v1548 = vunpack.c.l.b16 %v1444
        %v1549 = vunpack.c.l.b16 %v1445
        %v1550 = vpack.c.b16 %v1535, %v1534
        %v1551 = vpack.c.b16 %v1537, %v1536
        %v1552 = vpack.c.b16 %v1539, %v1538
        %v1553 = vpack.c.b16 %v1541, %v1540
        %v1554 = vpack.c.b16 %v1543, %v1542
        %v1555 = vpack.c.b16 %v1545, %v1544
        %v1556 = vpack.c.b16 %v1547, %v1546
        %v1557 = vpack.c.b16 %v1549, %v1548
        %1566 = vmatprep.subr.bf16.mxu0 0
        %1567 = vmatpush1.bf16.msra.mxu0 %v1550
        %1568 = vmatprep.subr.bf16.mxu0 0
        %1569 = vmatpush1.bf16.msra.mxu0 %v1551
        %1570 = vmatprep.subr.bf16.mxu0 0
        %1571 = vmatpush1.bf16.msra.mxu0 %v1552
        %1572 = vmatprep.subr.bf16.mxu0 0
        %1573 = vmatpush1.bf16.msra.mxu0 %v1553
        %1574 = vmatprep.subr.bf16.mxu0 0
        %1575 = vmatpush1.bf16.msra.mxu0 %v1554
        %1576 = vmatprep.subr.bf16.mxu0 0
        %1577 = vmatpush1.bf16.msra.mxu0 %v1555
        %1578 = vmatprep.subr.bf16.mxu0 0
        %1579 = vmatpush1.bf16.msra.mxu0 %v1556
        %1580 = vmatprep.subr.bf16.mxu0 0
        %1581 = vmatpush1.bf16.msra.mxu0 %v1557
        %1582 = vmatprep.subr.bf16.mxu0 0
        %1583 = vmatpush1.bf16.msra.mxu0 0
        %1584 = vmatprep.subr.bf16.mxu0 0
        %1585 = vmatpush1.bf16.msra.mxu0 0
        %1586 = vmatprep.subr.bf16.mxu0 0
        %1587 = vmatpush1.bf16.msra.mxu0 0
        %1588 = vmatprep.subr.bf16.mxu0 0
        %1589 = vmatpush1.bf16.msra.mxu0 0
        %1590 = vmatprep.subr.bf16.mxu0 0
        %1591 = vmatpush1.bf16.msra.mxu0 0
        %1592 = vmatprep.subr.bf16.mxu0 0
        %1593 = vmatpush1.bf16.msra.mxu0 0
        %1594 = vmatprep.subr.bf16.mxu0 0
        %1595 = vmatpush1.bf16.msra.mxu0 0
        %1596 = vmatprep.subr.bf16.mxu0 0
        %1597 = vmatpush1.bf16.msra.mxu0 0
        %1598 = vmatprep.mubr.bf16.mxu0 0
        %1599 = vmatmul.mubr.bf16.gmra.mrb[0].mxu0 %v545
        %v1600 = vpop.f32.mrb[0].mxu0
        %v1601 = vadd.f32 %v1505, %v1600
        %v1602 = vpop.f32.mrb[0].mxu0
        %v1603 = vpop.f32.mrb[0].mxu0
        %v1604 = vpop.f32.mrb[0].mxu0
        %1605 = vdwg.mxu0
        %v1622 = vunpack.c.l.b16 %v1446
        %v1623 = vunpack.c.l.b16 %v1447
        %v1624 = vunpack.c.l.b16 %v1448
        %v1625 = vunpack.c.l.b16 %v1449
        %v1626 = vunpack.c.l.b16 %v1450
        %v1627 = vunpack.c.l.b16 %v1451
        %v1628 = vunpack.c.l.b16 %v1452
        %v1629 = vunpack.c.l.b16 %v1453
        %v1630 = vunpack.c.l.b16 %v1454
        %v1631 = vunpack.c.l.b16 %v1455
        %v1632 = vunpack.c.l.b16 %v1456
        %v1633 = vunpack.c.l.b16 %v1457
        %v1634 = vunpack.c.l.b16 %v1458
        %v1635 = vunpack.c.l.b16 %v1459
        %v1636 = vunpack.c.l.b16 %v1460
        %v1637 = vunpack.c.l.b16 %v1461
        %v1638 = vpack.c.b16 %v1623, %v1622
        %v1639 = vpack.c.b16 %v1625, %v1624
        %v1640 = vpack.c.b16 %v1627, %v1626
        %v1641 = vpack.c.b16 %v1629, %v1628
        %v1642 = vpack.c.b16 %v1631, %v1630
        %v1643 = vpack.c.b16 %v1633, %v1632
        %v1644 = vpack.c.b16 %v1635, %v1634
        %v1645 = vpack.c.b16 %v1637, %v1636
        %1654 = vmatprep.subr.bf16.mxu0 0
        %1655 = vmatpush1.bf16.msra.mxu0 %v1638
        %1656 = vmatprep.subr.bf16.mxu0 0
        %1657 = vmatpush1.bf16.msra.mxu0 %v1639
        %1658 = vmatprep.subr.bf16.mxu0 0
        %1659 = vmatpush1.bf16.msra.mxu0 %v1640
        %1660 = vmatprep.subr.bf16.mxu0 0
        %1661 = vmatpush1.bf16.msra.mxu0 %v1641
        %1662 = vmatprep.subr.bf16.mxu0 0
        %1663 = vmatpush1.bf16.msra.mxu0 %v1642
        %1664 = vmatprep.subr.bf16.mxu0 0
        %1665 = vmatpush1.bf16.msra.mxu0 %v1643
        %1666 = vmatprep.subr.bf16.mxu0 0
        %1667 = vmatpush1.bf16.msra.mxu0 %v1644
        %1668 = vmatprep.subr.bf16.mxu0 0
        %1669 = vmatpush1.bf16.msra.mxu0 %v1645
        %1670 = vmatprep.subr.bf16.mxu0 0
        %1671 = vmatpush1.bf16.msra.mxu0 0
        %1672 = vmatprep.subr.bf16.mxu0 0
        %1673 = vmatpush1.bf16.msra.mxu0 0
        %1674 = vmatprep.subr.bf16.mxu0 0
        %1675 = vmatpush1.bf16.msra.mxu0 0
        %1676 = vmatprep.subr.bf16.mxu0 0
        %1677 = vmatpush1.bf16.msra.mxu0 0
        %1678 = vmatprep.subr.bf16.mxu0 0
        %1679 = vmatpush1.bf16.msra.mxu0 0
        %1680 = vmatprep.subr.bf16.mxu0 0
        %1681 = vmatpush1.bf16.msra.mxu0 0
        %1682 = vmatprep.subr.bf16.mxu0 0
        %1683 = vmatpush1.bf16.msra.mxu0 0
        %1684 = vmatprep.subr.bf16.mxu0 0
        %1685 = vmatpush1.bf16.msra.mxu0 0
        %1686 = vmatprep.mubr.bf16.mxu0 0
        %1687 = vmatmul.mubr.bf16.gmra.mrb[0].mxu0 %v545
        %v1688 = vpop.f32.mrb[0].mxu0
        %v1689 = vadd.f32 %v1509, %v1688
        %v1690 = vpop.f32.mrb[0].mxu0
        %v1691 = vpop.f32.mrb[0].mxu0
        %v1692 = vpop.f32.mrb[0].mxu0
        %1693 = vdwg.mxu0
        %v1710 = vunpack.c.l.b16 %v1462
        %v1711 = vunpack.c.l.b16 %v1463
        %v1712 = vunpack.c.l.b16 %v1464
        %v1713 = vunpack.c.l.b16 %v1465
        %v1714 = vunpack.c.l.b16 %v1466
        %v1715 = vunpack.c.l.b16 %v1467
        %v1716 = vunpack.c.l.b16 %v1468
        %v1717 = vunpack.c.l.b16 %v1469
        %v1718 = vunpack.c.l.b16 %v1470
        %v1719 = vunpack.c.l.b16 %v1471
        %v1720 = vunpack.c.l.b16 %v1472
        %v1721 = vunpack.c.l.b16 %v1473
        %v1722 = vunpack.c.l.b16 %v1474
        %v1723 = vunpack.c.l.b16 %v1475
        %v1724 = vunpack.c.l.b16 %v1476
        %v1725 = vunpack.c.l.b16 %v1477
        %v1726 = vpack.c.b16 %v1711, %v1710
        %v1727 = vpack.c.b16 %v1713, %v1712
        %v1728 = vpack.c.b16 %v1715, %v1714
        %v1729 = vpack.c.b16 %v1717, %v1716
        %v1730 = vpack.c.b16 %v1719, %v1718
        %v1731 = vpack.c.b16 %v1721, %v1720
        %v1732 = vpack.c.b16 %v1723, %v1722
        %v1733 = vpack.c.b16 %v1725, %v1724
        %1742 = vmatprep.subr.bf16.mxu0 0
        %1743 = vmatpush1.bf16.msra.mxu0 %v1726
        %1744 = vmatprep.subr.bf16.mxu0 0
        %1745 = vmatpush1.bf16.msra.mxu0 %v1727
        %1746 = vmatprep.subr.bf16.mxu0 0
        %1747 = vmatpush1.bf16.msra.mxu0 %v1728
        %1748 = vmatprep.subr.bf16.mxu0 0
        %1749 = vmatpush1.bf16.msra.mxu0 %v1729
        %1750 = vmatprep.subr.bf16.mxu0 0
        %1751 = vmatpush1.bf16.msra.mxu0 %v1730
        %1752 = vmatprep.subr.bf16.mxu0 0
        %1753 = vmatpush1.bf16.msra.mxu0 %v1731
        %1754 = vmatprep.subr.bf16.mxu0 0
        %1755 = vmatpush1.bf16.msra.mxu0 %v1732
        %1756 = vmatprep.subr.bf16.mxu0 0
        %1757 = vmatpush1.bf16.msra.mxu0 %v1733
        %1758 = vmatprep.subr.bf16.mxu0 0
        %1759 = vmatpush1.bf16.msra.mxu0 0
        %1760 = vmatprep.subr.bf16.mxu0 0
        %1761 = vmatpush1.bf16.msra.mxu0 0
        %1762 = vmatprep.subr.bf16.mxu0 0
        %1763 = vmatpush1.bf16.msra.mxu0 0
        %1764 = vmatprep.subr.bf16.mxu0 0
        %1765 = vmatpush1.bf16.msra.mxu0 0
        %1766 = vmatprep.subr.bf16.mxu0 0
        %1767 = vmatpush1.bf16.msra.mxu0 0
        %1768 = vmatprep.subr.bf16.mxu0 0
        %1769 = vmatpush1.bf16.msra.mxu0 0
        %1770 = vmatprep.subr.bf16.mxu0 0
        %1771 = vmatpush1.bf16.msra.mxu0 0
        %1772 = vmatprep.subr.bf16.mxu0 0
        %1773 = vmatpush1.bf16.msra.mxu0 0
        %1774 = vmatprep.mubr.bf16.mxu0 0
        %1775 = vmatmul.mubr.bf16.gmra.mrb[0].mxu0 %v545
        %v1776 = vpop.f32.mrb[0].mxu0
        %v1777 = vadd.f32 %v1513, %v1776
        %v1778 = vpop.f32.mrb[0].mxu0
        %v1779 = vpop.f32.mrb[0].mxu0
        %v1780 = vpop.f32.mrb[0].mxu0
        %1781 = vdwg.mxu0
        %v1798 = vunpack.c.l.b16 %v1478
        %v1799 = vunpack.c.l.b16 %v1479
        %v1800 = vunpack.c.l.b16 %v1480
        %v1801 = vunpack.c.l.b16 %v1481
        %v1802 = vunpack.c.l.b16 %v1482
        %v1803 = vunpack.c.l.b16 %v1483
        %v1804 = vunpack.c.l.b16 %v1484
        %v1805 = vunpack.c.l.b16 %v1485
        %v1806 = vunpack.c.l.b16 %v1486
        %v1807 = vunpack.c.l.b16 %v1487
        %v1808 = vunpack.c.l.b16 %v1488
        %v1809 = vunpack.c.l.b16 %v1489
        %v1810 = vunpack.c.l.b16 %v1490
        %v1811 = vunpack.c.l.b16 %v1491
        %v1812 = vunpack.c.l.b16 %v1492
        %v1813 = vunpack.c.l.b16 %v1493
        %v1814 = vpack.c.b16 %v1799, %v1798
        %v1815 = vpack.c.b16 %v1801, %v1800
        %v1816 = vpack.c.b16 %v1803, %v1802
        %v1817 = vpack.c.b16 %v1805, %v1804
        %v1818 = vpack.c.b16 %v1807, %v1806
        %v1819 = vpack.c.b16 %v1809, %v1808
        %v1820 = vpack.c.b16 %v1811, %v1810
        %v1821 = vpack.c.b16 %v1813, %v1812
        %1830 = vmatprep.subr.bf16.mxu0 0
        %1831 = vmatpush1.bf16.msra.mxu0 %v1814
        %1832 = vmatprep.subr.bf16.mxu0 0
        %1833 = vmatpush1.bf16.msra.mxu0 %v1815
        %1834 = vmatprep.subr.bf16.mxu0 0
        %1835 = vmatpush1.bf16.msra.mxu0 %v1816
        %1836 = vmatprep.subr.bf16.mxu0 0
        %1837 = vmatpush1.bf16.msra.mxu0 %v1817
        %1838 = vmatprep.subr.bf16.mxu0 0
        %1839 = vmatpush1.bf16.msra.mxu0 %v1818
        %1840 = vmatprep.subr.bf16.mxu0 0
        %1841 = vmatpush1.bf16.msra.mxu0 %v1819
        %1842 = vmatprep.subr.bf16.mxu0 0
        %1843 = vmatpush1.bf16.msra.mxu0 %v1820
        %1844 = vmatprep.subr.bf16.mxu0 0
        %1845 = vmatpush1.bf16.msra.mxu0 %v1821
        %1846 = vmatprep.subr.bf16.mxu0 0
        %1847 = vmatpush1.bf16.msra.mxu0 0
        %1848 = vmatprep.subr.bf16.mxu0 0
        %1849 = vmatpush1.bf16.msra.mxu0 0
        %1850 = vmatprep.subr.bf16.mxu0 0
        %1851 = vmatpush1.bf16.msra.mxu0 0
        %1852 = vmatprep.subr.bf16.mxu0 0
        %1853 = vmatpush1.bf16.msra.mxu0 0
        %1854 = vmatprep.subr.bf16.mxu0 0
        %1855 = vmatpush1.bf16.msra.mxu0 0
        %1856 = vmatprep.subr.bf16.mxu0 0
        %1857 = vmatpush1.bf16.msra.mxu0 0
        %1858 = vmatprep.subr.bf16.mxu0 0
        %1859 = vmatpush1.bf16.msra.mxu0 0
        %1860 = vmatprep.subr.bf16.mxu0 0
        %1861 = vmatpush1.bf16.msra.mxu0 0
        %1862 = vmatprep.mubr.bf16.mxu0 0
        %1863 = vmatmul.mubr.bf16.gmra.mrb[0].mxu0 %v545
        %v1864 = vpop.f32.mrb[0].mxu0
        %v1865 = vadd.f32 %v1517, %v1864
        %v1866 = vpop.f32.mrb[0].mxu0
        %v1867 = vpop.f32.mrb[0].mxu0
        %v1868 = vpop.f32.mrb[0].mxu0
        %1869 = vdwg.mxu0
        %v1870 = vpack.c.bf16 %v986, %v986
        %v1871 = vpack.c.bf16 %v987, %v987
        %v1872 = vpack.c.bf16 %v988, %v988
        %v1873 = vpack.c.bf16 %v989, %v989
        %v1874 = vpack.c.bf16 %v1161, %v1161
        %v1875 = vpack.c.bf16 %v1249, %v1249
        %v1876 = vpack.c.bf16 %v1337, %v1337
        %v1877 = vpack.c.bf16 %v1425, %v1425
        %vm1878 = vcmask 261120
        %v1880 = vsel %vm1878, %v1870, 0
        %v1883 = vsel %vm1878, %v1874, 0
        %1885 = vmatprep.subr.bf16.mxu0 0
        %1886 = vmatpush1.bf16.xpose.msra.mxu0 %v1883
        %1887 = vmatprep.subr.bf16.mxu0 0
        %1888 = vmatpush1.bf16.xpose.msra.mxu0 0
        %1889 = vmatprep.subr.bf16.mxu0 0
        %1890 = vmatpush1.bf16.xpose.msra.mxu0 0
        %1891 = vmatprep.subr.bf16.mxu0 0
        %1892 = vmatpush1.bf16.xpose.msra.mxu0 0
        %1893 = vmatprep.subr.bf16.mxu0 0
        %1894 = vmatpush1.bf16.xpose.msra.mxu0 0
        %1895 = vmatprep.subr.bf16.mxu0 0
        %1896 = vmatpush1.bf16.xpose.msra.mxu0 0
        %1897 = vmatprep.subr.bf16.mxu0 0
        %1898 = vmatpush1.bf16.xpose.msra.mxu0 0
        %1899 = vmatprep.subr.bf16.mxu0 0
        %1900 = vmatpush1.bf16.xpose.msra.mxu0 0
        %1901 = vmatprep.subr.bf16.mxu0 0
        %1902 = vmatpush1.bf16.xpose.msra.mxu0 0
        %1903 = vmatprep.subr.bf16.mxu0 0
        %1904 = vmatpush1.bf16.xpose.msra.mxu0 0
        %1905 = vmatprep.subr.bf16.mxu0 0
        %1906 = vmatpush1.bf16.xpose.msra.mxu0 0
        %1907 = vmatprep.subr.bf16.mxu0 0
        %1908 = vmatpush1.bf16.xpose.msra.mxu0 0
        %1909 = vmatprep.subr.bf16.mxu0 0
        %1910 = vmatpush1.bf16.xpose.msra.mxu0 0
        %1911 = vmatprep.subr.bf16.mxu0 0
        %1912 = vmatpush1.bf16.xpose.msra.mxu0 0
        %1913 = vmatprep.subr.bf16.mxu0 0
        %1914 = vmatpush1.bf16.xpose.msra.mxu0 0
        %1915 = vmatprep.subr.bf16.mxu0 0
        %1916 = vmatpush1.bf16.xpose.msra.mxu0 0
        %1917 = vmatprep.mubr.bf16.mxu0 0
        %1918 = vmatmul.mubr.bf16.gmra.mrb[0].mxu0 %v1880
        %v1919 = vpop.f32.mrb[0].mxu0
        %v1920 = vadd.f32 0.0, %v1919
        %v1921 = vpop.f32.mrb[0].mxu0
        %v1922 = vpop.f32.mrb[0].mxu0
        %v1923 = vpop.f32.mrb[0].mxu0
        %1924 = vdwg.mxu0
        %v1926 = vsel %vm1878, %v1871, 0
        %v1929 = vsel %vm1878, %v1875, 0
        %1931 = vmatprep.subr.bf16.mxu0 0
        %1932 = vmatpush1.bf16.xpose.msra.mxu0 %v1929
        %1933 = vmatprep.subr.bf16.mxu0 0
        %1934 = vmatpush1.bf16.xpose.msra.mxu0 0
        %1935 = vmatprep.subr.bf16.mxu0 0
        %1936 = vmatpush1.bf16.xpose.msra.mxu0 0
        %1937 = vmatprep.subr.bf16.mxu0 0
        %1938 = vmatpush1.bf16.xpose.msra.mxu0 0
        %1939 = vmatprep.subr.bf16.mxu0 0
        %1940 = vmatpush1.bf16.xpose.msra.mxu0 0
        %1941 = vmatprep.subr.bf16.mxu0 0
        %1942 = vmatpush1.bf16.xpose.msra.mxu0 0
        %1943 = vmatprep.subr.bf16.mxu0 0
        %1944 = vmatpush1.bf16.xpose.msra.mxu0 0
        %1945 = vmatprep.subr.bf16.mxu0 0
        %1946 = vmatpush1.bf16.xpose.msra.mxu0 0
        %1947 = vmatprep.subr.bf16.mxu0 0
        %1948 = vmatpush1.bf16.xpose.msra.mxu0 0
        %1949 = vmatprep.subr.bf16.mxu0 0
        %1950 = vmatpush1.bf16.xpose.msra.mxu0 0
        %1951 = vmatprep.subr.bf16.mxu0 0
        %1952 = vmatpush1.bf16.xpose.msra.mxu0 0
        %1953 = vmatprep.subr.bf16.mxu0 0
        %1954 = vmatpush1.bf16.xpose.msra.mxu0 0
        %1955 = vmatprep.subr.bf16.mxu0 0
        %1956 = vmatpush1.bf16.xpose.msra.mxu0 0
        %1957 = vmatprep.subr.bf16.mxu0 0
        %1958 = vmatpush1.bf16.xpose.msra.mxu0 0
        %1959 = vmatprep.subr.bf16.mxu0 0
        %1960 = vmatpush1.bf16.xpose.msra.mxu0 0
        %1961 = vmatprep.subr.bf16.mxu0 0
        %1962 = vmatpush1.bf16.xpose.msra.mxu0 0
        %1963 = vmatprep.mubr.bf16.mxu0 0
        %1964 = vmatmul.mubr.bf16.gmra.mrb[0].mxu0 %v1926
        %v1965 = vpop.f32.mrb[0].mxu0
        %v1966 = vadd.f32 0.0, %v1965
        %v1967 = vpop.f32.mrb[0].mxu0
        %v1968 = vpop.f32.mrb[0].mxu0
        %v1969 = vpop.f32.mrb[0].mxu0
        %1970 = vdwg.mxu0
        %v1972 = vsel %vm1878, %v1872, 0
        %v1975 = vsel %vm1878, %v1876, 0
        %1977 = vmatprep.subr.bf16.mxu0 0
        %1978 = vmatpush1.bf16.xpose.msra.mxu0 %v1975
        %1979 = vmatprep.subr.bf16.mxu0 0
        %1980 = vmatpush1.bf16.xpose.msra.mxu0 0
        %1981 = vmatprep.subr.bf16.mxu0 0
        %1982 = vmatpush1.bf16.xpose.msra.mxu0 0
        %1983 = vmatprep.subr.bf16.mxu0 0
        %1984 = vmatpush1.bf16.xpose.msra.mxu0 0
        %1985 = vmatprep.subr.bf16.mxu0 0
        %1986 = vmatpush1.bf16.xpose.msra.mxu0 0
        %1987 = vmatprep.subr.bf16.mxu0 0
        %1988 = vmatpush1.bf16.xpose.msra.mxu0 0
        %1989 = vmatprep.subr.bf16.mxu0 0
        %1990 = vmatpush1.bf16.xpose.msra.mxu0 0
        %1991 = vmatprep.subr.bf16.mxu0 0
        %1992 = vmatpush1.bf16.xpose.msra.mxu0 0
        %1993 = vmatprep.subr.bf16.mxu0 0
        %1994 = vmatpush1.bf16.xpose.msra.mxu0 0
        %1995 = vmatprep.subr.bf16.mxu0 0
        %1996 = vmatpush1.bf16.xpose.msra.mxu0 0
        %1997 = vmatprep.subr.bf16.mxu0 0
        %1998 = vmatpush1.bf16.xpose.msra.mxu0 0
        %1999 = vmatprep.subr.bf16.mxu0 0
        %2000 = vmatpush1.bf16.xpose.msra.mxu0 0
        %2001 = vmatprep.subr.bf16.mxu0 0
        %2002 = vmatpush1.bf16.xpose.msra.mxu0 0
        %2003 = vmatprep.subr.bf16.mxu0 0
        %2004 = vmatpush1.bf16.xpose.msra.mxu0 0
        %2005 = vmatprep.subr.bf16.mxu0 0
        %2006 = vmatpush1.bf16.xpose.msra.mxu0 0
        %2007 = vmatprep.subr.bf16.mxu0 0
        %2008 = vmatpush1.bf16.xpose.msra.mxu0 0
        %2009 = vmatprep.mubr.bf16.mxu0 0
        %2010 = vmatmul.mubr.bf16.gmra.mrb[0].mxu0 %v1972
        %v2011 = vpop.f32.mrb[0].mxu0
        %v2012 = vadd.f32 0.0, %v2011
        %v2013 = vpop.f32.mrb[0].mxu0
        %v2014 = vpop.f32.mrb[0].mxu0
        %v2015 = vpop.f32.mrb[0].mxu0
        %2016 = vdwg.mxu0
        %v2018 = vsel %vm1878, %v1873, 0
        %v2021 = vsel %vm1878, %v1877, 0
        %2023 = vmatprep.subr.bf16.mxu0 0
        %2024 = vmatpush1.bf16.xpose.msra.mxu0 %v2021
        %2025 = vmatprep.subr.bf16.mxu0 0
        %2026 = vmatpush1.bf16.xpose.msra.mxu0 0
        %2027 = vmatprep.subr.bf16.mxu0 0
        %2028 = vmatpush1.bf16.xpose.msra.mxu0 0
        %2029 = vmatprep.subr.bf16.mxu0 0
        %2030 = vmatpush1.bf16.xpose.msra.mxu0 0
        %2031 = vmatprep.subr.bf16.mxu0 0
        %2032 = vmatpush1.bf16.xpose.msra.mxu0 0
        %2033 = vmatprep.subr.bf16.mxu0 0
        %2034 = vmatpush1.bf16.xpose.msra.mxu0 0
        %2035 = vmatprep.subr.bf16.mxu0 0
        %2036 = vmatpush1.bf16.xpose.msra.mxu0 0
        %2037 = vmatprep.subr.bf16.mxu0 0
        %2038 = vmatpush1.bf16.xpose.msra.mxu0 0
        %2039 = vmatprep.subr.bf16.mxu0 0
        %2040 = vmatpush1.bf16.xpose.msra.mxu0 0
        %2041 = vmatprep.subr.bf16.mxu0 0
        %2042 = vmatpush1.bf16.xpose.msra.mxu0 0
        %2043 = vmatprep.subr.bf16.mxu0 0
        %2044 = vmatpush1.bf16.xpose.msra.mxu0 0
        %2045 = vmatprep.subr.bf16.mxu0 0
        %2046 = vmatpush1.bf16.xpose.msra.mxu0 0
        %2047 = vmatprep.subr.bf16.mxu0 0
        %2048 = vmatpush1.bf16.xpose.msra.mxu0 0
        %2049 = vmatprep.subr.bf16.mxu0 0
        %2050 = vmatpush1.bf16.xpose.msra.mxu0 0
        %2051 = vmatprep.subr.bf16.mxu0 0
        %2052 = vmatpush1.bf16.xpose.msra.mxu0 0
        %2053 = vmatprep.subr.bf16.mxu0 0
        %2054 = vmatpush1.bf16.xpose.msra.mxu0 0
        %2055 = vmatprep.mubr.bf16.mxu0 0
        %2056 = vmatmul.mubr.bf16.gmra.mrb[0].mxu0 %v2018
        %v2057 = vpop.f32.mrb[0].mxu0
        %v2058 = vadd.f32 0.0, %v2057
        %v2059 = vpop.f32.mrb[0].mxu0
        %v2060 = vpop.f32.mrb[0].mxu0
        %v2061 = vpop.f32.mrb[0].mxu0
        %2062 = vdwg.mxu0
        %vm2063 = vcmask 64512
        %v2064 = vsel %vm2063, %v1920, -inf
        %2065 = vmax.xlane.f32.xlu0 %v2064
        %v2066 = vpop.xlane.xlu0 %2065
        %v2067 = vsel %vm2063, %v1966, -inf
        %2068 = vmax.xlane.f32.xlu0 %v2067
        %v2069 = vpop.xlane.xlu0 %2068
        %v2070 = vsel %vm2063, %v2012, -inf
        %2071 = vmax.xlane.f32.xlu0 %v2070
        %v2072 = vpop.xlane.xlu0 %2071
        %v2073 = vsel %vm2063, %v2058, -inf
        %2074 = vmax.xlane.f32.xlu0 %v2073
        %v2075 = vpop.xlane.xlu0 %2074
        %v2076 = vsub.f32 %v1920, %v2066
        %v2077 = vsub.f32 %v1966, %v2069
        %v2078 = vsub.f32 %v2012, %v2072
        %v2079 = vsub.f32 %v2058, %v2075
        %v2080 = vmul.f32 %v2076, 1.442695
        %v2081 = vpow.pop %v2080
        %v2082 = vmul.f32 %v2077, 1.442695
        %v2083 = vpow.pop %v2082
        %v2084 = vmul.f32 %v2078, 1.442695
        %v2085 = vpow.pop %v2084
        %v2086 = vmul.f32 %v2079, 1.442695
        %v2087 = vpow.pop %v2086
        %v2088 = vsel %vm2063, %v2081, 0.0
        %2089 = vadd.xlane.f32.xlu0 %v2088
        %v2090 = vpop.xlane.xlu0 %2089
        %v2091 = vsel %vm2063, %v2083, 0.0
        %2092 = vadd.xlane.f32.xlu0 %v2091
        %v2093 = vpop.xlane.xlu0 %2092
        %v2094 = vsel %vm2063, %v2085, 0.0
        %2095 = vadd.xlane.f32.xlu0 %v2094
        %v2096 = vpop.xlane.xlu0 %2095
        %v2097 = vsel %vm2063, %v2087, 0.0
        %2098 = vadd.xlane.f32.xlu0 %v2097
        %v2099 = vpop.xlane.xlu0 %2098
        %v2100 = vrcp.pop %v2090
        %v2101 = vrcp.pop %v2093
        %v2102 = vrcp.pop %v2096
        %v2103 = vrcp.pop %v2099
        %v2104 = vmul.f32 %v2081, %v2100
        %v2105 = vmul.f32 %v2083, %v2101
        %v2106 = vmul.f32 %v2085, %v2102
        %v2107 = vmul.f32 %v2087, %v2103
        %v2108 = vpack.c.bf16 %v2104, %v2104
        %v2109 = vpack.c.bf16 %v2105, %v2105
        %v2110 = vpack.c.bf16 %v2106, %v2106
        %v2111 = vpack.c.bf16 %v2107, %v2107
        %v2112 = vpack.c.bf16 %v1601, %v1601
        %v2113 = vpack.c.bf16 %v1689, %v1689
        %v2114 = vpack.c.bf16 %v1777, %v1777
        %v2115 = vpack.c.bf16 %v1865, %v1865
        %v2117 = vsel %vm2063, %v2108, 0
        %vm2119 = vcmask 1043456
        %v2121 = vsel %vm2119, %v2112, 0
        %2123 = vmatprep.subr.bf16.mxu0 0
        %2124 = vmatpush1.bf16.msra.mxu0 %v2121
        %2125 = vmatprep.subr.bf16.mxu0 0
        %2126 = vmatpush1.bf16.msra.mxu0 0
        %2127 = vmatprep.subr.bf16.mxu0 0
        %2128 = vmatpush1.bf16.msra.mxu0 0
        %2129 = vmatprep.subr.bf16.mxu0 0
        %2130 = vmatpush1.bf16.msra.mxu0 0
        %2131 = vmatprep.subr.bf16.mxu0 0
        %2132 = vmatpush1.bf16.msra.mxu0 0
        %2133 = vmatprep.subr.bf16.mxu0 0
        %2134 = vmatpush1.bf16.msra.mxu0 0
        %2135 = vmatprep.subr.bf16.mxu0 0
        %2136 = vmatpush1.bf16.msra.mxu0 0
        %2137 = vmatprep.subr.bf16.mxu0 0
        %2138 = vmatpush1.bf16.msra.mxu0 0
        %2139 = vmatprep.subr.bf16.mxu0 0
        %2140 = vmatpush1.bf16.msra.mxu0 0
        %2141 = vmatprep.subr.bf16.mxu0 0
        %2142 = vmatpush1.bf16.msra.mxu0 0
        %2143 = vmatprep.subr.bf16.mxu0 0
        %2144 = vmatpush1.bf16.msra.mxu0 0
        %2145 = vmatprep.subr.bf16.mxu0 0
        %2146 = vmatpush1.bf16.msra.mxu0 0
        %2147 = vmatprep.subr.bf16.mxu0 0
        %2148 = vmatpush1.bf16.msra.mxu0 0
        %2149 = vmatprep.subr.bf16.mxu0 0
        %2150 = vmatpush1.bf16.msra.mxu0 0
        %2151 = vmatprep.subr.bf16.mxu0 0
        %2152 = vmatpush1.bf16.msra.mxu0 0
        %2153 = vmatprep.subr.bf16.mxu0 0
        %2154 = vmatpush1.bf16.msra.mxu0 0
        %2155 = vmatprep.mubr.bf16.mxu0 0
        %2156 = vmatmul.mubr.bf16.gmra.mrb[0].mxu0 %v2117
        %v2157 = vpop.f32.mrb[0].mxu0
        %v2158 = vadd.f32 0.0, %v2157
        %v2159 = vpop.f32.mrb[0].mxu0
        %v2160 = vpop.f32.mrb[0].mxu0
        %v2161 = vpop.f32.mrb[0].mxu0
        %2162 = vdwg.mxu0
        %v2164 = vsel %vm2063, %v2109, 0
        %v2167 = vsel %vm2119, %v2113, 0
        %2169 = vmatprep.subr.bf16.mxu0 0
        %2170 = vmatpush1.bf16.msra.mxu0 %v2167
        %2171 = vmatprep.subr.bf16.mxu0 0
        %2172 = vmatpush1.bf16.msra.mxu0 0
        %2173 = vmatprep.subr.bf16.mxu0 0
        %2174 = vmatpush1.bf16.msra.mxu0 0
        %2175 = vmatprep.subr.bf16.mxu0 0
        %2176 = vmatpush1.bf16.msra.mxu0 0
        %2177 = vmatprep.subr.bf16.mxu0 0
        %2178 = vmatpush1.bf16.msra.mxu0 0
        %2179 = vmatprep.subr.bf16.mxu0 0
        %2180 = vmatpush1.bf16.msra.mxu0 0
        %2181 = vmatprep.subr.bf16.mxu0 0
        %2182 = vmatpush1.bf16.msra.mxu0 0
        %2183 = vmatprep.subr.bf16.mxu0 0
        %2184 = vmatpush1.bf16.msra.mxu0 0
        %2185 = vmatprep.subr.bf16.mxu0 0
        %2186 = vmatpush1.bf16.msra.mxu0 0
        %2187 = vmatprep.subr.bf16.mxu0 0
        %2188 = vmatpush1.bf16.msra.mxu0 0
        %2189 = vmatprep.subr.bf16.mxu0 0
        %2190 = vmatpush1.bf16.msra.mxu0 0
        %2191 = vmatprep.subr.bf16.mxu0 0
        %2192 = vmatpush1.bf16.msra.mxu0 0
        %2193 = vmatprep.subr.bf16.mxu0 0
        %2194 = vmatpush1.bf16.msra.mxu0 0
        %2195 = vmatprep.subr.bf16.mxu0 0
        %2196 = vmatpush1.bf16.msra.mxu0 0
        %2197 = vmatprep.subr.bf16.mxu0 0
        %2198 = vmatpush1.bf16.msra.mxu0 0
        %2199 = vmatprep.subr.bf16.mxu0 0
        %2200 = vmatpush1.bf16.msra.mxu0 0
        %2201 = vmatprep.mubr.bf16.mxu0 0
        %2202 = vmatmul.mubr.bf16.gmra.mrb[0].mxu0 %v2164
        %v2203 = vpop.f32.mrb[0].mxu0
        %v2204 = vadd.f32 0.0, %v2203
        %v2205 = vpop.f32.mrb[0].mxu0
        %v2206 = vpop.f32.mrb[0].mxu0
        %v2207 = vpop.f32.mrb[0].mxu0
        %2208 = vdwg.mxu0
        %v2210 = vsel %vm2063, %v2110, 0
        %v2213 = vsel %vm2119, %v2114, 0
        %2215 = vmatprep.subr.bf16.mxu0 0
        %2216 = vmatpush1.bf16.msra.mxu0 %v2213
        %2217 = vmatprep.subr.bf16.mxu0 0
        %2218 = vmatpush1.bf16.msra.mxu0 0
        %2219 = vmatprep.subr.bf16.mxu0 0
        %2220 = vmatpush1.bf16.msra.mxu0 0
        %2221 = vmatprep.subr.bf16.mxu0 0
        %2222 = vmatpush1.bf16.msra.mxu0 0
        %2223 = vmatprep.subr.bf16.mxu0 0
        %2224 = vmatpush1.bf16.msra.mxu0 0
        %2225 = vmatprep.subr.bf16.mxu0 0
        %2226 = vmatpush1.bf16.msra.mxu0 0
        %2227 = vmatprep.subr.bf16.mxu0 0
        %2228 = vmatpush1.bf16.msra.mxu0 0
        %2229 = vmatprep.subr.bf16.mxu0 0
        %2230 = vmatpush1.bf16.msra.mxu0 0
        %2231 = vmatprep.subr.bf16.mxu0 0
        %2232 = vmatpush1.bf16.msra.mxu0 0
        %2233 = vmatprep.subr.bf16.mxu0 0
        %2234 = vmatpush1.bf16.msra.mxu0 0
        %2235 = vmatprep.subr.bf16.mxu0 0
        %2236 = vmatpush1.bf16.msra.mxu0 0
        %2237 = vmatprep.subr.bf16.mxu0 0
        %2238 = vmatpush1.bf16.msra.mxu0 0
        %2239 = vmatprep.subr.bf16.mxu0 0
        %2240 = vmatpush1.bf16.msra.mxu0 0
        %2241 = vmatprep.subr.bf16.mxu0 0
        %2242 = vmatpush1.bf16.msra.mxu0 0
        %2243 = vmatprep.subr.bf16.mxu0 0
        %2244 = vmatpush1.bf16.msra.mxu0 0
        %2245 = vmatprep.subr.bf16.mxu0 0
        %2246 = vmatpush1.bf16.msra.mxu0 0
        %2247 = vmatprep.mubr.bf16.mxu0 0
        %2248 = vmatmul.mubr.bf16.gmra.mrb[0].mxu0 %v2210
        %v2249 = vpop.f32.mrb[0].mxu0
        %v2250 = vadd.f32 0.0, %v2249
        %v2251 = vpop.f32.mrb[0].mxu0
        %v2252 = vpop.f32.mrb[0].mxu0
        %v2253 = vpop.f32.mrb[0].mxu0
        %2254 = vdwg.mxu0
        %v2256 = vsel %vm2063, %v2111, 0
        %v2259 = vsel %vm2119, %v2115, 0
        %2261 = vmatprep.subr.bf16.mxu0 0
        %2262 = vmatpush1.bf16.msra.mxu0 %v2259
        %2263 = vmatprep.subr.bf16.mxu0 0
        %2264 = vmatpush1.bf16.msra.mxu0 0
        %2265 = vmatprep.subr.bf16.mxu0 0
        %2266 = vmatpush1.bf16.msra.mxu0 0
        %2267 = vmatprep.subr.bf16.mxu0 0
        %2268 = vmatpush1.bf16.msra.mxu0 0
        %2269 = vmatprep.subr.bf16.mxu0 0
        %2270 = vmatpush1.bf16.msra.mxu0 0
        %2271 = vmatprep.subr.bf16.mxu0 0
        %2272 = vmatpush1.bf16.msra.mxu0 0
        %2273 = vmatprep.subr.bf16.mxu0 0
        %2274 = vmatpush1.bf16.msra.mxu0 0
        %2275 = vmatprep.subr.bf16.mxu0 0
        %2276 = vmatpush1.bf16.msra.mxu0 0
        %2277 = vmatprep.subr.bf16.mxu0 0
        %2278 = vmatpush1.bf16.msra.mxu0 0
        %2279 = vmatprep.subr.bf16.mxu0 0
        %2280 = vmatpush1.bf16.msra.mxu0 0
        %2281 = vmatprep.subr.bf16.mxu0 0
        %2282 = vmatpush1.bf16.msra.mxu0 0
        %2283 = vmatprep.subr.bf16.mxu0 0
        %2284 = vmatpush1.bf16.msra.mxu0 0
        %2285 = vmatprep.subr.bf16.mxu0 0
        %2286 = vmatpush1.bf16.msra.mxu0 0
        %2287 = vmatprep.subr.bf16.mxu0 0
        %2288 = vmatpush1.bf16.msra.mxu0 0
        %2289 = vmatprep.subr.bf16.mxu0 0
        %2290 = vmatpush1.bf16.msra.mxu0 0
        %2291 = vmatprep.subr.bf16.mxu0 0
        %2292 = vmatpush1.bf16.msra.mxu0 0
        %2293 = vmatprep.mubr.bf16.mxu0 0
        %2294 = vmatmul.mubr.bf16.gmra.mrb[0].mxu0 %v2256
        %v2295 = vpop.f32.mrb[0].mxu0
        %v2296 = vadd.f32 0.0, %v2295
        %v2297 = vpop.f32.mrb[0].mxu0
        %v2298 = vpop.f32.mrb[0].mxu0
        %v2299 = vpop.f32.mrb[0].mxu0
        %2300 = vdwg.mxu0
        %v2301 = vpack.c.bf16 %v2158, %v2158
        %v2302 = vpack.c.bf16 %v2204, %v2204
        %v2303 = vpack.c.bf16 %v2250, %v2250
        %v2304 = vpack.c.bf16 %v2296, %v2296
        %v2305 = vld [vmem:[%s7] sm:$0xf]
        %v2306 = vld [vmem:[%s7 + $0x4] sm:$0xf]
        %v2307 = vld [vmem:[%s7 + $0x8] sm:$0xf]
        %v2308 = vld [vmem:[%s7 + $0xc] sm:$0xf]
        %v2309 = vld [vmem:[%s7 + $0x10] sm:$0xf]
        %v2310 = vld [vmem:[%s7 + $0x14] sm:$0xf]
        %v2311 = vld [vmem:[%s7 + $0x18] sm:$0xf]
        %v2312 = vld [vmem:[%s7 + $0x1c] sm:$0xf]
        %v2313 = vld [vmem:[%s7 + $0x20] sm:$0xf]
        %v2314 = vld [vmem:[%s7 + $0x24] sm:$0xf]
        %v2315 = vld [vmem:[%s7 + $0x28] sm:$0xf]
        %v2316 = vld [vmem:[%s7 + $0x2c] sm:$0xf]
        %v2317 = vld [vmem:[%s7 + $0x30] sm:$0xf]
        %v2318 = vld [vmem:[%s7 + $0x34] sm:$0xf]
        %v2319 = vld [vmem:[%s7 + $0x38] sm:$0xf]
        %v2320 = vld [vmem:[%s7 + $0x3c] sm:$0xf]
        %v2325 = vunpack.c.l.b16 %v2305
        %v2326 = vunpack.c.l.b16 %v2306
        %v2327 = vunpack.c.l.b16 %v2307
        %v2328 = vunpack.c.l.b16 %v2308
        %v2329 = vpack.c.b16 %v2326, %v2325
        %v2330 = vpack.c.b16 %v2328, %v2327
        %v2334 = vsel %vm1878, %v2301, 0
        %2336 = vmatprep.subr.bf16.mxu0 0
        %2337 = vmatpush1.bf16.msra.mxu0 %v2329
        %2338 = vmatprep.subr.bf16.mxu0 0
        %2339 = vmatpush1.bf16.msra.mxu0 %v2330
        %2340 = vmatprep.subr.bf16.mxu0 0
        %2341 = vmatpush1.bf16.msra.mxu0 0
        %2342 = vmatprep.subr.bf16.mxu0 0
        %2343 = vmatpush1.bf16.msra.mxu0 0
        %2344 = vmatprep.subr.bf16.mxu0 0
        %2345 = vmatpush1.bf16.msra.mxu0 0
        %2346 = vmatprep.subr.bf16.mxu0 0
        %2347 = vmatpush1.bf16.msra.mxu0 0
        %2348 = vmatprep.subr.bf16.mxu0 0
        %2349 = vmatpush1.bf16.msra.mxu0 0
        %2350 = vmatprep.subr.bf16.mxu0 0
        %2351 = vmatpush1.bf16.msra.mxu0 0
        %2352 = vmatprep.subr.bf16.mxu0 0
        %2353 = vmatpush1.bf16.msra.mxu0 0
        %2354 = vmatprep.subr.bf16.mxu0 0
        %2355 = vmatpush1.bf16.msra.mxu0 0
        %2356 = vmatprep.subr.bf16.mxu0 0
        %2357 = vmatpush1.bf16.msra.mxu0 0
        %2358 = vmatprep.subr.bf16.mxu0 0
        %2359 = vmatpush1.bf16.msra.mxu0 0
        %2360 = vmatprep.subr.bf16.mxu0 0
        %2361 = vmatpush1.bf16.msra.mxu0 0
        %2362 = vmatprep.subr.bf16.mxu0 0
        %2363 = vmatpush1.bf16.msra.mxu0 0
        %2364 = vmatprep.subr.bf16.mxu0 0
        %2365 = vmatpush1.bf16.msra.mxu0 0
        %2366 = vmatprep.subr.bf16.mxu0 0
        %2367 = vmatpush1.bf16.msra.mxu0 0
        %2368 = vmatprep.mubr.bf16.mxu0 0
        %2369 = vmatmul.mubr.bf16.gmra.mrb[0].mxu0 %v2334
        %v2370 = vpop.f32.mrb[0].mxu0
        %v2371 = vadd.f32 0.0, %v2370
        %v2372 = vpop.f32.mrb[0].mxu0
        %v2373 = vpop.f32.mrb[0].mxu0
        %v2374 = vpop.f32.mrb[0].mxu0
        %2375 = vdwg.mxu0
        %v2380 = vunpack.c.l.b16 %v2309
        %v2381 = vunpack.c.l.b16 %v2310
        %v2382 = vunpack.c.l.b16 %v2311
        %v2383 = vunpack.c.l.b16 %v2312
        %v2384 = vpack.c.b16 %v2381, %v2380
        %v2385 = vpack.c.b16 %v2383, %v2382
        %v2389 = vsel %vm1878, %v2302, 0
        %2391 = vmatprep.subr.bf16.mxu0 0
        %2392 = vmatpush1.bf16.msra.mxu0 %v2384
        %2393 = vmatprep.subr.bf16.mxu0 0
        %2394 = vmatpush1.bf16.msra.mxu0 %v2385
        %2395 = vmatprep.subr.bf16.mxu0 0
        %2396 = vmatpush1.bf16.msra.mxu0 0
        %2397 = vmatprep.subr.bf16.mxu0 0
        %2398 = vmatpush1.bf16.msra.mxu0 0
        %2399 = vmatprep.subr.bf16.mxu0 0
        %2400 = vmatpush1.bf16.msra.mxu0 0
        %2401 = vmatprep.subr.bf16.mxu0 0
        %2402 = vmatpush1.bf16.msra.mxu0 0
        %2403 = vmatprep.subr.bf16.mxu0 0
        %2404 = vmatpush1.bf16.msra.mxu0 0
        %2405 = vmatprep.subr.bf16.mxu0 0
        %2406 = vmatpush1.bf16.msra.mxu0 0
        %2407 = vmatprep.subr.bf16.mxu0 0
        %2408 = vmatpush1.bf16.msra.mxu0 0
        %2409 = vmatprep.subr.bf16.mxu0 0
        %2410 = vmatpush1.bf16.msra.mxu0 0
        %2411 = vmatprep.subr.bf16.mxu0 0
        %2412 = vmatpush1.bf16.msra.mxu0 0
        %2413 = vmatprep.subr.bf16.mxu0 0
        %2414 = vmatpush1.bf16.msra.mxu0 0
        %2415 = vmatprep.subr.bf16.mxu0 0
        %2416 = vmatpush1.bf16.msra.mxu0 0
        %2417 = vmatprep.subr.bf16.mxu0 0
        %2418 = vmatpush1.bf16.msra.mxu0 0
        %2419 = vmatprep.subr.bf16.mxu0 0
        %2420 = vmatpush1.bf16.msra.mxu0 0
        %2421 = vmatprep.subr.bf16.mxu0 0
        %2422 = vmatpush1.bf16.msra.mxu0 0
        %2423 = vmatprep.mubr.bf16.mxu0 0
        %2424 = vmatmul.mubr.bf16.gmra.mrb[0].mxu0 %v2389
        %v2425 = vpop.f32.mrb[0].mxu0
        %v2426 = vadd.f32 0.0, %v2425
        %v2427 = vpop.f32.mrb[0].mxu0
        %v2428 = vpop.f32.mrb[0].mxu0
        %v2429 = vpop.f32.mrb[0].mxu0
        %2430 = vdwg.mxu0
        %v2435 = vunpack.c.l.b16 %v2313
        %v2436 = vunpack.c.l.b16 %v2314
        %v2437 = vunpack.c.l.b16 %v2315
        %v2438 = vunpack.c.l.b16 %v2316
        %v2439 = vpack.c.b16 %v2436, %v2435
        %v2440 = vpack.c.b16 %v2438, %v2437
        %v2444 = vsel %vm1878, %v2303, 0
        %2446 = vmatprep.subr.bf16.mxu0 0
        %2447 = vmatpush1.bf16.msra.mxu0 %v2439
        %2448 = vmatprep.subr.bf16.mxu0 0
        %2449 = vmatpush1.bf16.msra.mxu0 %v2440
        %2450 = vmatprep.subr.bf16.mxu0 0
        %2451 = vmatpush1.bf16.msra.mxu0 0
        %2452 = vmatprep.subr.bf16.mxu0 0
        %2453 = vmatpush1.bf16.msra.mxu0 0
        %2454 = vmatprep.subr.bf16.mxu0 0
        %2455 = vmatpush1.bf16.msra.mxu0 0
        %2456 = vmatprep.subr.bf16.mxu0 0
        %2457 = vmatpush1.bf16.msra.mxu0 0
        %2458 = vmatprep.subr.bf16.mxu0 0
        %2459 = vmatpush1.bf16.msra.mxu0 0
        %2460 = vmatprep.subr.bf16.mxu0 0
        %2461 = vmatpush1.bf16.msra.mxu0 0
        %2462 = vmatprep.subr.bf16.mxu0 0
        %2463 = vmatpush1.bf16.msra.mxu0 0
        %2464 = vmatprep.subr.bf16.mxu0 0
        %2465 = vmatpush1.bf16.msra.mxu0 0
        %2466 = vmatprep.subr.bf16.mxu0 0
        %2467 = vmatpush1.bf16.msra.mxu0 0
        %2468 = vmatprep.subr.bf16.mxu0 0
        %2469 = vmatpush1.bf16.msra.mxu0 0
        %2470 = vmatprep.subr.bf16.mxu0 0
        %2471 = vmatpush1.bf16.msra.mxu0 0
        %2472 = vmatprep.subr.bf16.mxu0 0
        %2473 = vmatpush1.bf16.msra.mxu0 0
        %2474 = vmatprep.subr.bf16.mxu0 0
        %2475 = vmatpush1.bf16.msra.mxu0 0
        %2476 = vmatprep.subr.bf16.mxu0 0
        %2477 = vmatpush1.bf16.msra.mxu0 0
        %2478 = vmatprep.mubr.bf16.mxu0 0
        %2479 = vmatmul.mubr.bf16.gmra.mrb[0].mxu0 %v2444
        %v2480 = vpop.f32.mrb[0].mxu0
        %v2481 = vadd.f32 0.0, %v2480
        %v2482 = vpop.f32.mrb[0].mxu0
        %v2483 = vpop.f32.mrb[0].mxu0
        %v2484 = vpop.f32.mrb[0].mxu0
        %2485 = vdwg.mxu0
        %v2490 = vunpack.c.l.b16 %v2317
        %v2491 = vunpack.c.l.b16 %v2318
        %v2492 = vunpack.c.l.b16 %v2319
        %v2493 = vunpack.c.l.b16 %v2320
        %v2494 = vpack.c.b16 %v2491, %v2490
        %v2495 = vpack.c.b16 %v2493, %v2492
        %v2499 = vsel %vm1878, %v2304, 0
        %2501 = vmatprep.subr.bf16.mxu0 0
        %2502 = vmatpush1.bf16.msra.mxu0 %v2494
        %2503 = vmatprep.subr.bf16.mxu0 0
        %2504 = vmatpush1.bf16.msra.mxu0 %v2495
        %2505 = vmatprep.subr.bf16.mxu0 0
        %2506 = vmatpush1.bf16.msra.mxu0 0
        %2507 = vmatprep.subr.bf16.mxu0 0
        %2508 = vmatpush1.bf16.msra.mxu0 0
        %2509 = vmatprep.subr.bf16.mxu0 0
        %2510 = vmatpush1.bf16.msra.mxu0 0
        %2511 = vmatprep.subr.bf16.mxu0 0
        %2512 = vmatpush1.bf16.msra.mxu0 0
        %2513 = vmatprep.subr.bf16.mxu0 0
        %2514 = vmatpush1.bf16.msra.mxu0 0
        %2515 = vmatprep.subr.bf16.mxu0 0
        %2516 = vmatpush1.bf16.msra.mxu0 0
        %2517 = vmatprep.subr.bf16.mxu0 0
        %2518 = vmatpush1.bf16.msra.mxu0 0
        %2519 = vmatprep.subr.bf16.mxu0 0
        %2520 = vmatpush1.bf16.msra.mxu0 0
        %2521 = vmatprep.subr.bf16.mxu0 0
        %2522 = vmatpush1.bf16.msra.mxu0 0
        %2523 = vmatprep.subr.bf16.mxu0 0
        %2524 = vmatpush1.bf16.msra.mxu0 0
        %2525 = vmatprep.subr.bf16.mxu0 0
        %2526 = vmatpush1.bf16.msra.mxu0 0
        %2527 = vmatprep.subr.bf16.mxu0 0
        %2528 = vmatpush1.bf16.msra.mxu0 0
        %2529 = vmatprep.subr.bf16.mxu0 0
        %2530 = vmatpush1.bf16.msra.mxu0 0
        %2531 = vmatprep.subr.bf16.mxu0 0
        %2532 = vmatpush1.bf16.msra.mxu0 0
        %2533 = vmatprep.mubr.bf16.mxu0 0
        %2534 = vmatmul.mubr.bf16.gmra.mrb[0].mxu0 %v2499
        %v2535 = vpop.f32.mrb[0].mxu0
        %v2536 = vadd.f32 0.0, %v2535
        %v2537 = vpop.f32.mrb[0].mxu0
        %v2538 = vpop.f32.mrb[0].mxu0
        %v2539 = vpop.f32.mrb[0].mxu0
        %2540 = vdwg.mxu0
        %v2541 = vadd.f32 %v2371, %v2426
        %v2542 = vadd.f32 %v2541, %v2481
        %v2543 = vadd.f32 %v2542, %v2536
        %v2544 = vld [vmem:[%s8] sm:$0x1]
        %v2545 = vunpack.c.l.bf16 %v2544
        %v2546 = vlaneseq
        %v2547 = vshrl.u32 %v2546, 7
        %v2548 = vsub.s32 0, %v2547
        %v2549 = vrot.slane %v2545, %v2548
        %v2550 = vadd.f32 %v2543, %v2549
        %v2551 = vunpack.c.l.bf16 %v545
        %v2552 = vadd.f32 %v2551, %v2550
        %v2553 = vld [vmem:[%s9] sm:$0x1]
        %v2554 = vunpack.c.l.bf16 %v2553
        %v2555 = vld [vmem:[%s10] sm:$0x1]
        %v2556 = vunpack.c.l.bf16 %v2555
        %2557 = vadd.xlane.f32.xlu0 %v2552
        %v2558 = vpop.xlane.xlu0 %2557
        %v2559 = vrcp.pop 128.0
        %v2560 = vmul.f32 %v2558, %v2559
        %v2561 = vsub.f32 %v2552, %v2560
        %v2562 = vmul.f32 %v2561, %v2561
        %2563 = vadd.xlane.f32.xlu0 %v2562
        %v2564 = vpop.xlane.xlu0 %2563
        %v2565 = vmul.f32 %v2564, %v2559
        %v2566 = vadd.f32 %v2565, 1e-05
        %v2567 = vrsqrt.pop %v2566
        %v2568 = vmul.f32 %v2561, %v2567
        %v2569 = vlaneseq
        %v2570 = vshrl.u32 %v2569, 7
        %v2571 = vsub.s32 0, %v2570
        %v2572 = vrot.slane %v2554, %v2571
        %v2573 = vmul.f32 %v2568, %v2572
        %v2574 = vlaneseq
        %v2575 = vshrl.u32 %v2574, 7
        %v2576 = vsub.s32 0, %v2575
        %v2577 = vrot.slane %v2556, %v2576
        %v2578 = vadd.f32 %v2573, %v2577
        %v2579 = vpack.c.bf16 %v2578, %v2578
        %v2580 = vld [vmem:[%s11] sm:$0xff]
        %v2581 = vld [vmem:[%s11 + $0x8] sm:$0xff]
        %v2582 = vld [vmem:[%s11 + $0x10] sm:$0xff]
        %v2583 = vld [vmem:[%s11 + $0x18] sm:$0xff]
        %v2584 = vld [vmem:[%s11 + $0x20] sm:$0xff]
        %v2585 = vld [vmem:[%s11 + $0x28] sm:$0xff]
        %v2586 = vld [vmem:[%s11 + $0x30] sm:$0xff]
        %v2587 = vld [vmem:[%s11 + $0x38] sm:$0xff]
        %v2588 = vld [vmem:[%s11 + $0x40] sm:$0xff]
        %v2589 = vld [vmem:[%s11 + $0x48] sm:$0xff]
        %v2590 = vld [vmem:[%s11 + $0x50] sm:$0xff]
        %v2591 = vld [vmem:[%s11 + $0x58] sm:$0xff]
        %v2592 = vld [vmem:[%s11 + $0x60] sm:$0xff]
        %v2593 = vld [vmem:[%s11 + $0x68] sm:$0xff]
        %v2594 = vld [vmem:[%s11 + $0x70] sm:$0xff]
        %v2595 = vld [vmem:[%s11 + $0x78] sm:$0xff]
        %v2596 = vld [vmem:[%s12] sm:$0x3]
        %v2597 = vunpack.c.l.bf16 %v2596
        %v2599 = vlaneseq
        %v2600 = vshrl.u32 %v2599, 7
        %v2601 = vsub.s32 0, %v2600
        %v2602 = vrot.slane %v2597, %v2601
        %v2603 = vlaneseq
        %v2604 = vshrl.u32 %v2603, 7
        %v2605 = vsub.s32 2, %v2604
        %v2606 = vrot.slane %v2597, %v2605
        %v2609 = vlaneseq
        %v2610 = vshrl.u32 %v2609, 7
        %v2611 = vsub.s32 0, %v2610
        %v2612 = vrot.slane %v2602, %v2611
        %v2613 = vlaneseq
        %v2614 = vshrl.u32 %v2613, 7
        %v2615 = vsub.s32 0, %v2614
        %v2616 = vrot.slane %v2606, %v2615
        %v2633 = vunpack.c.l.b16 %v2580
        %v2634 = vunpack.c.h.b16 %v2580
        %v2635 = vunpack.c.l.b16 %v2581
        %v2636 = vunpack.c.h.b16 %v2581
        %v2637 = vunpack.c.l.b16 %v2582
        %v2638 = vunpack.c.h.b16 %v2582
        %v2639 = vunpack.c.l.b16 %v2583
        %v2640 = vunpack.c.h.b16 %v2583
        %v2641 = vunpack.c.l.b16 %v2584
        %v2642 = vunpack.c.h.b16 %v2584
        %v2643 = vunpack.c.l.b16 %v2585
        %v2644 = vunpack.c.h.b16 %v2585
        %v2645 = vunpack.c.l.b16 %v2586
        %v2646 = vunpack.c.h.b16 %v2586
        %v2647 = vunpack.c.l.b16 %v2587
        %v2648 = vunpack.c.h.b16 %v2587
        %v2649 = vunpack.c.l.b16 %v2588
        %v2650 = vunpack.c.h.b16 %v2588
        %v2651 = vunpack.c.l.b16 %v2589
        %v2652 = vunpack.c.h.b16 %v2589
        %v2653 = vunpack.c.l.b16 %v2590
        %v2654 = vunpack.c.h.b16 %v2590
        %v2655 = vunpack.c.l.b16 %v2591
        %v2656 = vunpack.c.h.b16 %v2591
        %v2657 = vunpack.c.l.b16 %v2592
        %v2658 = vunpack.c.h.b16 %v2592
        %v2659 = vunpack.c.l.b16 %v2593
        %v2660 = vunpack.c.h.b16 %v2593
        %v2661 = vunpack.c.l.b16 %v2594
        %v2662 = vunpack.c.h.b16 %v2594
        %v2663 = vunpack.c.l.b16 %v2595
        %v2664 = vunpack.c.h.b16 %v2595
        %v2665 = vpack.c.b16 %v2635, %v2633
        %v2666 = vpack.c.b16 %v2636, %v2634
        %v2667 = vpack.c.b16 %v2639, %v2637
        %v2668 = vpack.c.b16 %v2640, %v2638
        %v2669 = vpack.c.b16 %v2643, %v2641
        %v2670 = vpack.c.b16 %v2644, %v2642
        %v2671 = vpack.c.b16 %v2647, %v2645
        %v2672 = vpack.c.b16 %v2648, %v2646
        %v2673 = vpack.c.b16 %v2651, %v2649
        %v2674 = vpack.c.b16 %v2652, %v2650
        %v2675 = vpack.c.b16 %v2655, %v2653
        %v2676 = vpack.c.b16 %v2656, %v2654
        %v2677 = vpack.c.b16 %v2659, %v2657
        %v2678 = vpack.c.b16 %v2660, %v2658
        %v2679 = vpack.c.b16 %v2663, %v2661
        %v2680 = vpack.c.b16 %v2664, %v2662
        %2697 = vmatprep.subr.bf16.mxu0 %v2666
        %2698 = vmatpush1.bf16.msra.mxu0 %v2665
        %2699 = vmatprep.subr.bf16.mxu0 %v2668
        %2700 = vmatpush1.bf16.msra.mxu0 %v2667
        %2701 = vmatprep.subr.bf16.mxu0 %v2670
        %2702 = vmatpush1.bf16.msra.mxu0 %v2669
        %2703 = vmatprep.subr.bf16.mxu0 %v2672
        %2704 = vmatpush1.bf16.msra.mxu0 %v2671
        %2705 = vmatprep.subr.bf16.mxu0 %v2674
        %2706 = vmatpush1.bf16.msra.mxu0 %v2673
        %2707 = vmatprep.subr.bf16.mxu0 %v2676
        %2708 = vmatpush1.bf16.msra.mxu0 %v2675
        %2709 = vmatprep.subr.bf16.mxu0 %v2678
        %2710 = vmatpush1.bf16.msra.mxu0 %v2677
        %2711 = vmatprep.subr.bf16.mxu0 %v2680
        %2712 = vmatpush1.bf16.msra.mxu0 %v2679
        %2713 = vmatprep.subr.bf16.mxu0 0
        %2714 = vmatpush1.bf16.msra.mxu0 0
        %2715 = vmatprep.subr.bf16.mxu0 0
        %2716 = vmatpush1.bf16.msra.mxu0 0
        %2717 = vmatprep.subr.bf16.mxu0 0
        %2718 = vmatpush1.bf16.msra.mxu0 0
        %2719 = vmatprep.subr.bf16.mxu0 0
        %2720 = vmatpush1.bf16.msra.mxu0 0
        %2721 = vmatprep.subr.bf16.mxu0 0
        %2722 = vmatpush1.bf16.msra.mxu0 0
        %2723 = vmatprep.subr.bf16.mxu0 0
        %2724 = vmatpush1.bf16.msra.mxu0 0
        %2725 = vmatprep.subr.bf16.mxu0 0
        %2726 = vmatpush1.bf16.msra.mxu0 0
        %2727 = vmatprep.subr.bf16.mxu0 0
        %2728 = vmatpush1.bf16.msra.mxu0 0
        %2729 = vmatprep.mubr.bf16.mxu0 0
        %2730 = vmatmul.mubr.bf16.gmra.mrb[0].mxu0 %v2579
        %v2731 = vpop.f32.mrb[0].mxu0
        %v2732 = vadd.f32 %v2612, %v2731
        %v2733 = vpop.f32.mrb[0].mxu0
        %v2734 = vadd.f32 %v2616, %v2733
        %v2735 = vpop.f32.mrb[0].mxu0
        %v2736 = vpop.f32.mrb[0].mxu0
        %2737 = vdwg.mxu0
        %v2738 = vmax.f32 %v2732, 0.0
        %v2739 = vmax.f32 %v2734, 0.0
        %v2740 = vpack.c.bf16 %v2738, %v2738
        %v2741 = vpack.c.bf16 %v2739, %v2739
        %v2742 = vld [vmem:[%s13] sm:$0xf]
        %v2743 = vld [vmem:[%s13 + $0x4] sm:$0xf]
        %v2744 = vld [vmem:[%s13 + $0x8] sm:$0xf]
        %v2745 = vld [vmem:[%s13 + $0xc] sm:$0xf]
        %v2746 = vld [vmem:[%s13 + $0x10] sm:$0xf]
        %v2747 = vld [vmem:[%s13 + $0x14] sm:$0xf]
        %v2748 = vld [vmem:[%s13 + $0x18] sm:$0xf]
        %v2749 = vld [vmem:[%s13 + $0x1c] sm:$0xf]
        %v2750 = vld [vmem:[%s13 + $0x20] sm:$0xf]
        %v2751 = vld [vmem:[%s13 + $0x24] sm:$0xf]
        %v2752 = vld [vmem:[%s13 + $0x28] sm:$0xf]
        %v2753 = vld [vmem:[%s13 + $0x2c] sm:$0xf]
        %v2754 = vld [vmem:[%s13 + $0x30] sm:$0xf]
        %v2755 = vld [vmem:[%s13 + $0x34] sm:$0xf]
        %v2756 = vld [vmem:[%s13 + $0x38] sm:$0xf]
        %v2757 = vld [vmem:[%s13 + $0x3c] sm:$0xf]
        %v2758 = vld [vmem:[%s13 + $0x40] sm:$0xf]
        %v2759 = vld [vmem:[%s13 + $0x44] sm:$0xf]
        %v2760 = vld [vmem:[%s13 + $0x48] sm:$0xf]
        %v2761 = vld [vmem:[%s13 + $0x4c] sm:$0xf]
        %v2762 = vld [vmem:[%s13 + $0x50] sm:$0xf]
        %v2763 = vld [vmem:[%s13 + $0x54] sm:$0xf]
        %v2764 = vld [vmem:[%s13 + $0x58] sm:$0xf]
        %v2765 = vld [vmem:[%s13 + $0x5c] sm:$0xf]
        %v2766 = vld [vmem:[%s13 + $0x60] sm:$0xf]
        %v2767 = vld [vmem:[%s13 + $0x64] sm:$0xf]
        %v2768 = vld [vmem:[%s13 + $0x68] sm:$0xf]
        %v2769 = vld [vmem:[%s13 + $0x6c] sm:$0xf]
        %v2770 = vld [vmem:[%s13 + $0x70] sm:$0xf]
        %v2771 = vld [vmem:[%s13 + $0x74] sm:$0xf]
        %v2772 = vld [vmem:[%s13 + $0x78] sm:$0xf]
        %v2773 = vld [vmem:[%s13 + $0x7c] sm:$0xf]
        %v2774 = vld [vmem:[%s14] sm:$0x1]
        %v2775 = vunpack.c.l.bf16 %v2774
        %v2776 = vlaneseq
        %v2777 = vshrl.u32 %v2776, 7
        %v2778 = vsub.s32 0, %v2777
        %v2779 = vrot.slane %v2775, %v2778
        %v2812 = vunpack.c.l.b16 %v2742
        %v2813 = vunpack.c.l.b16 %v2743
        %v2814 = vunpack.c.l.b16 %v2744
        %v2815 = vunpack.c.l.b16 %v2745
        %v2816 = vunpack.c.l.b16 %v2746
        %v2817 = vunpack.c.l.b16 %v2747
        %v2818 = vunpack.c.l.b16 %v2748
        %v2819 = vunpack.c.l.b16 %v2749
        %v2820 = vunpack.c.l.b16 %v2750
        %v2821 = vunpack.c.l.b16 %v2751
        %v2822 = vunpack.c.l.b16 %v2752
        %v2823 = vunpack.c.l.b16 %v2753
        %v2824 = vunpack.c.l.b16 %v2754
        %v2825 = vunpack.c.l.b16 %v2755
        %v2826 = vunpack.c.l.b16 %v2756
        %v2827 = vunpack.c.l.b16 %v2757
        %v2828 = vunpack.c.l.b16 %v2758
        %v2829 = vunpack.c.l.b16 %v2759
        %v2830 = vunpack.c.l.b16 %v2760
        %v2831 = vunpack.c.l.b16 %v2761
        %v2832 = vunpack.c.l.b16 %v2762
        %v2833 = vunpack.c.l.b16 %v2763
        %v2834 = vunpack.c.l.b16 %v2764
        %v2835 = vunpack.c.l.b16 %v2765
        %v2836 = vunpack.c.l.b16 %v2766
        %v2837 = vunpack.c.l.b16 %v2767
        %v2838 = vunpack.c.l.b16 %v2768
        %v2839 = vunpack.c.l.b16 %v2769
        %v2840 = vunpack.c.l.b16 %v2770
        %v2841 = vunpack.c.l.b16 %v2771
        %v2842 = vunpack.c.l.b16 %v2772
        %v2843 = vunpack.c.l.b16 %v2773
        %v2844 = vpack.c.b16 %v2813, %v2812
        %v2845 = vpack.c.b16 %v2815, %v2814
        %v2846 = vpack.c.b16 %v2817, %v2816
        %v2847 = vpack.c.b16 %v2819, %v2818
        %v2848 = vpack.c.b16 %v2821, %v2820
        %v2849 = vpack.c.b16 %v2823, %v2822
        %v2850 = vpack.c.b16 %v2825, %v2824
        %v2851 = vpack.c.b16 %v2827, %v2826
        %v2852 = vpack.c.b16 %v2829, %v2828
        %v2853 = vpack.c.b16 %v2831, %v2830
        %v2854 = vpack.c.b16 %v2833, %v2832
        %v2855 = vpack.c.b16 %v2835, %v2834
        %v2856 = vpack.c.b16 %v2837, %v2836
        %v2857 = vpack.c.b16 %v2839, %v2838
        %v2858 = vpack.c.b16 %v2841, %v2840
        %v2859 = vpack.c.b16 %v2843, %v2842
        %2876 = vmatprep.subr.bf16.mxu0 0
        %2877 = vmatpush1.bf16.msra.mxu0 %v2844
        %2878 = vmatprep.subr.bf16.mxu0 0
        %2879 = vmatpush1.bf16.msra.mxu0 %v2845
        %2880 = vmatprep.subr.bf16.mxu0 0
        %2881 = vmatpush1.bf16.msra.mxu0 %v2846
        %2882 = vmatprep.subr.bf16.mxu0 0
        %2883 = vmatpush1.bf16.msra.mxu0 %v2847
        %2884 = vmatprep.subr.bf16.mxu0 0
        %2885 = vmatpush1.bf16.msra.mxu0 %v2848
        %2886 = vmatprep.subr.bf16.mxu0 0
        %2887 = vmatpush1.bf16.msra.mxu0 %v2849
        %2888 = vmatprep.subr.bf16.mxu0 0
        %2889 = vmatpush1.bf16.msra.mxu0 %v2850
        %2890 = vmatprep.subr.bf16.mxu0 0
        %2891 = vmatpush1.bf16.msra.mxu0 %v2851
        %2892 = vmatprep.subr.bf16.mxu0 0
        %2893 = vmatpush1.bf16.msra.mxu0 %v2852
        %2894 = vmatprep.subr.bf16.mxu0 0
        %2895 = vmatpush1.bf16.msra.mxu0 %v2853
        %2896 = vmatprep.subr.bf16.mxu0 0
        %2897 = vmatpush1.bf16.msra.mxu0 %v2854
        %2898 = vmatprep.subr.bf16.mxu0 0
        %2899 = vmatpush1.bf16.msra.mxu0 %v2855
        %2900 = vmatprep.subr.bf16.mxu0 0
        %2901 = vmatpush1.bf16.msra.mxu0 %v2856
        %2902 = vmatprep.subr.bf16.mxu0 0
        %2903 = vmatpush1.bf16.msra.mxu0 %v2857
        %2904 = vmatprep.subr.bf16.mxu0 0
        %2905 = vmatpush1.bf16.msra.mxu0 %v2858
        %2906 = vmatprep.subr.bf16.mxu0 0
        %2907 = vmatpush1.bf16.msra.mxu0 %v2859
        %2908 = vmatprep.mubr.bf16.mxu0 %v2741
        %2909 = vmatmul.mubr.bf16.gmra.mrb[0].mxu0 %v2740
        %v2910 = vpop.f32.mrb[0].mxu0
        %v2911 = vadd.f32 %v2779, %v2910
        %v2912 = vpop.f32.mrb[0].mxu0
        %v2913 = vpop.f32.mrb[0].mxu0
        %v2914 = vpop.f32.mrb[0].mxu0
        %2915 = vdwg.mxu0
        %v2916 = vunpack.c.l.bf16 %v2579
        %v2917 = vadd.f32 %v2916, %v2911
        %v2918 = vld [vmem:[%s15] sm:$0x1]
        %v2919 = vunpack.c.l.bf16 %v2918
        %v2920 = vld [vmem:[%s16] sm:$0x1]
        %v2921 = vunpack.c.l.bf16 %v2920
        %2922 = vadd.xlane.f32.xlu0 %v2917
        %v2923 = vpop.xlane.xlu0 %2922
        %v2924 = vmul.f32 %v2923, %v2559
        %v2925 = vsub.f32 %v2917, %v2924
        %v2926 = vmul.f32 %v2925, %v2925
        %2927 = vadd.xlane.f32.xlu0 %v2926
        %v2928 = vpop.xlane.xlu0 %2927
        %v2929 = vmul.f32 %v2928, %v2559
        %v2930 = vadd.f32 %v2929, 1e-05
        %v2931 = vrsqrt.pop %v2930
        %v2932 = vmul.f32 %v2925, %v2931
        %v2933 = vlaneseq
        %v2934 = vshrl.u32 %v2933, 7
        %v2935 = vsub.s32 0, %v2934
        %v2936 = vrot.slane %v2919, %v2935
        %v2937 = vmul.f32 %v2932, %v2936
        %v2938 = vlaneseq
        %v2939 = vshrl.u32 %v2938, 7
        %v2940 = vsub.s32 0, %v2939
        %v2941 = vrot.slane %v2921, %v2940
        %v2942 = vadd.f32 %v2937, %v2941
        %v2943 = vpack.c.bf16 %v2942, %v2942
        %2944 = vst [vmem:[%s539] sm:$0xf] %v2943
        %s2945 = sand.u32 %s401, 1
        %s2946 = scalar_lea.sflag [#allocation3], %s2945
        %s2947 = sand.u32 %s401, 1
        %s2948 = smul.addr %s2947, 4
        %s2949 = scalar_lea.vmem [#allocation2], %s2948
        // Predicated region
        $region89: #{tpu_custom_call.1} parent=87 // pred_check
          %p2950 = pneg %p411
        $region90: #{tpu_custom_call.1} parent=87 // pred_check_branch
          %2952 = sbr.rel (%p2950) target = $region92
        $region91: #{tpu_custom_call.1} parent=87 // pred_region
          %s2954 = ssub.s32 64, 64
          %2955 = vsyncadd %s2946, %s2954
          %s2956 = smul.addr %s31, 64
          %s2957 = scalar_lea.hbm %s17, %s2956
          %s2959 = sshll.u32 %s2949, 4
          %s2960 = int_to_ptr.vmem [resolvable:$true] %s2959
          %2962 = dma.vmem_to_hbm [thread:$0]  %s2960, 64, %s2957, %s2946
        $region92: #{tpu_custom_call.1} parent=87 // pred_fallthru
          _
      $region88: #{tpu_custom_call.1} parent=5 // pred_fallthru
        _
      %p2963 = scmp.le.s32.totalorder 2, %s26
      // Predicated region
      $region93: #{tpu_custom_call.1} parent=5 // pred_check
        %p2964 = pneg %p2963
      $region94: #{tpu_custom_call.1} parent=5 // pred_check_branch
        %2966 = sbr.rel (%p2964) target = $region96
      $region95: #{tpu_custom_call.1} parent=5 // pred_region
        %s2967 = ssub.s32 %s26, 2
        // Predicated region
        $region97: #{tpu_custom_call.1} parent=95 // pred_check
          %p2968 = pneg %p417
        $region98: #{tpu_custom_call.1} parent=95 // pred_check_branch
          %2970 = sbr.rel (%p2968) target = $region100
        $region99: #{tpu_custom_call.1} parent=95 // pred_region
          %s2971 = sand.u32 %s402, 1
          %s2972 = scalar_lea.sflag [#allocation3], %s2971
          %s2973 = sand.u32 %s402, 1
          %s2974 = smul.addr %s2973, 4
          %s2975 = scalar_lea.vmem [#allocation2], %s2974
          %2976 = dma.done %s2972, 64
        $region100: #{tpu_custom_call.1} parent=95 // pred_fallthru
          _
      $region96: #{tpu_custom_call.1} parent=5 // pred_fallthru
        _
    $region6: #{tpu_custom_call.1} parent=1 // loop_footer
      %s30 = sadd.s32 1, %s26
    $region7: #{tpu_custom_call.1} parent=1 // loop_footer_branch
      %25 = sbr.rel target = $region3
    $region8: #{tpu_custom_call.1} parent=1 // loop_exit
      _
    %2977 = vsyncpa [#allocation3], 1
    %s2978 = scalar_lea.sflag [#allocation3], 1
    %2979 = vsyncpa %s2978, 1

</llo_original>
